<compile_context>
chip_gen: v7x
topology: tpu7x:2x2x1
jax: 0.10.0
libtpu: 0.0.40
codegen_flags: <defaults>
</compile_context>

<pallas_src>
import math
import functools

import jax
import jax.numpy as jnp
from jax.experimental import pallas as pl
from jax.experimental.pallas import tpu as pltpu


# ----------------------------- Pallas kernel --------------------------------

def _layernorm(x, gamma, beta, eps=1e-5):
    mean = jnp.mean(x, axis=-1, keepdims=True)
    var = jnp.mean((x - mean) ** 2, axis=-1, keepdims=True)
    return (x - mean) * jax.lax.rsqrt(var + eps) * gamma + beta


def temporal_transformer_kernel(
    x_ref,
    wq_ref, bq_ref, wk_ref, bk_ref, wv_ref, bv_ref, wo_ref, bo_ref,
    w1_ref, b1_ref, w2_ref, b2_ref,
    g1_ref, be1_ref, g2_ref, be2_ref,
    out_ref,
    *, block_b, seq_len, n_heads, dim_k, dim_v):
    n_rows = block_b * seq_len
    xf = x_ref[...].astype(jnp.float32)                               # (TB*L, D)

    # --- Q/K/V projections: full-width matmuls on the flattened row slab.
    # Wq/bq are pre-scaled by 1/sqrt(dim_k) in the wrapper.
    q = jnp.dot(xf, wq_ref[...], preferred_element_type=jnp.float32) + bq_ref[0]
    k = jnp.dot(xf, wk_ref[...], preferred_element_type=jnp.float32) + bk_ref[0]
    v = jnp.dot(xf, wv_ref[...], preferred_element_type=jnp.float32) + bv_ref[0]

    wo = wo_ref[...]                                                  # (H*dv, D)

    # --- per-head attention, batched over the block's batch elements (no .T,
    # --- no concat; output projection accumulated head by head).
    x_attn = None
    for h in range(n_heads):                                          # static loop
        qh = q[:, h * dim_k:(h + 1) * dim_k].reshape(block_b, seq_len, dim_k)
        kh = k[:, h * dim_k:(h + 1) * dim_k].reshape(block_b, seq_len, dim_k)
        vh = v[:, h * dim_v:(h + 1) * dim_v].reshape(block_b, seq_len, dim_v)

        s = jnp.einsum('bqd,bkd->bqk', qh, kh,
                       preferred_element_type=jnp.float32)            # (TB, L, L)
        s = s - jnp.max(s, axis=-1, keepdims=True)
        p = jnp.exp(s)
        p = p * pl.reciprocal(jnp.sum(p, axis=-1, keepdims=True), approx=True)

        oh = jnp.einsum('bqk,bkd->bqd', p, vh,
                        preferred_element_type=jnp.float32)           # (TB, L, dv)
        contrib = jnp.dot(oh.reshape(n_rows, dim_v),
                          wo[h * dim_v:(h + 1) * dim_v, :],
                          preferred_element_type=jnp.float32)         # (TB*L, D)
        x_attn = contrib if x_attn is None else x_attn + contrib
    x_attn = x_attn + bo_ref[0]

    # --- residual + norm1 (dropout == identity in eval) ---
    x1 = _layernorm(xf + x_attn, g1_ref[0], be1_ref[0])

    # --- conv1 (1x1 conv == feature matmul) + relu ---
    h1 = jnp.maximum(
        jnp.dot(x1, w1_ref[...], preferred_element_type=jnp.float32) + b1_ref[0],
        0.0)                                                          # (TB*L, dim_fc)

    # --- conv2 (1x1 conv == feature matmul), residual + norm2 ---
    y = jnp.dot(h1, w2_ref[...], preferred_element_type=jnp.float32) + b2_ref[0]
    out_ref[...] = _layernorm(x1 + y, g2_ref[0], be2_ref[0]).astype(out_ref.dtype)


# ------------------------------ Wrapper --------------------------------------

def temporal_transformer(x, params, *, n_heads, dim_k, dim_v, block_b=None):
    B, L, D = x.shape

    if block_b is None:
        # Aim for >=256 rows per grid step, but keep >=2 grid blocks when B
        # allows (v7x has 2 TensorCores/chip) and require block_b | B.
        want = max(1, min(B, (256 + L - 1) // L))
        if B >= 2:
            want = min(want, max(1, B // 2))
        block_b = max(d for d in range(1, want + 1) if B % d == 0)
    assert B % block_b == 0, "block_b must divide B"
    grid_b = B // block_b
    n_rows = block_b * L

    scale = 1.0 / math.sqrt(dim_k)
    weights = [
        params["wq"] * scale, params["bq"] * scale,   # fold 1/sqrt(dk) into Q
        params["wk"], params["bk"],
        params["wv"], params["bv"],
        params["wo"], params["bo"],
        params["w1"], params["b1"],
        params["w2"], params["b2"],
        params["g1"], params["be1"], params["g2"], params["be2"],
    ]

    def full_spec(arr):
        nd = arr.ndim
        return pl.BlockSpec(arr.shape, lambda b, _nd=nd: (0,) * _nd)

    in_specs = [pl.BlockSpec((n_rows, D), lambda b: (b, 0))]
    in_specs += [full_spec(w) for w in weights]

    kernel = functools.partial(
        temporal_transformer_kernel,
        block_b=block_b, seq_len=L, n_heads=n_heads, dim_k=dim_k, dim_v=dim_v)

    x2d = x.reshape(B * L, D)
    out2d = pl.pallas_call(
        kernel,
        out_shape=jax.ShapeDtypeStruct((B * L, D), x.dtype),
        grid_spec=pltpu.PrefetchScalarGridSpec(
            num_scalar_prefetch=0,
            grid=(grid_b,),
            in_specs=in_specs,
            out_specs=pl.BlockSpec((n_rows, D), lambda b: (b, 0)),
        ),
        compiler_params=pltpu.CompilerParams(
            dimension_semantics=("parallel",)),
    )(x2d, *weights)
    return out2d.reshape(B, L, D)


# ---------------------------- Reference (plain JAX) ---------------------------

def temporal_transformer_ref(x, params, *, n_heads, dim_k, dim_v):
    def one(xb):
        q = xb @ params["wq"] + params["bq"][0]
        k = xb @ params["wk"] + params["bk"][0]
        v = xb @ params["wv"] + params["bv"][0]
        scale = 1.0 / math.sqrt(dim_k)
        outs = []
        for h in range(n_heads):
            qh = q[:, h * dim_k:(h + 1) * dim_k]
            kh = k[:, h * dim_k:(h + 1) * dim_k]
            vh = v[:, h * dim_v:(h + 1) * dim_v]
            s = qh @ kh.T * scale
            p = jax.nn.softmax(s, axis=-1)
            outs.append(p @ vh)
        x_attn = jnp.concatenate(outs, axis=-1) @ params["wo"] + params["bo"][0]
        x1 = _layernorm(xb + x_attn, params["g1"][0], params["be1"][0])
        h1 = jax.nn.relu(x1 @ params["w1"] + params["b1"][0])
        y = h1 @ params["w2"] + params["b2"][0]
        return _layernorm(x1 + y, params["g2"][0], params["be2"][0])
    return jax.vmap(one)(x)


# ------------------------------- Main ----------------------------------------

if __name__ == "__main__":
    # Small, deterministic config.
    B, L = 4, 16
    d_model, dim_k, dim_v, n_heads, dim_fc = 32, 16, 16, 4, 64

    key = jax.random.PRNGKey(0)
    keys = jax.random.split(key, 16)

    def init(k, shape, scale=0.05):
        return scale * jax.random.normal(k, shape, jnp.float32)

    params = {
        # attention projections (Linear weights stored as (in, out))
        "wq": init(keys[0], (d_model, n_heads * dim_k)),
        "bq": init(keys[1], (1, n_heads * dim_k)),
        "wk": init(keys[2], (d_model, n_heads * dim_k)),
        "bk": init(keys[3], (1, n_heads * dim_k)),
        "wv": init(keys[4], (d_model, n_heads * dim_v)),
        "bv": init(keys[5], (1, n_heads * dim_v)),
        "wo": init(keys[6], (n_heads * dim_v, d_model)),
        "bo": init(keys[7], (1, d_model)),
        # conv1: PyTorch weight (dim_fc, d_model, 1) -> matmul weight (d_model, dim_fc)
        "w1": init(keys[8], (d_model, dim_fc)),
        "b1": init(keys[9], (1, dim_fc)),
        # conv2: PyTorch weight (d_model, dim_fc, 1) -> matmul weight (dim_fc, d_model)
        "w2": init(keys[10], (dim_fc, d_model)),
        "b2": init(keys[11], (1, d_model)),
        # LayerNorms (PyTorch default init: weight=1, bias=0)
        "g1": jnp.ones((1, d_model), jnp.float32),
        "be1": jnp.zeros((1, d_model), jnp.float32),
        "g2": jnp.ones((1, d_model), jnp.float32),
        "be2": jnp.zeros((1, d_model), jnp.float32),
    }

    x = jax.random.normal(keys[12], (B, L, d_model), jnp.float32)

    out = temporal_transformer(x, params, n_heads=n_heads, dim_k=dim_k, dim_v=dim_v)
    out = jax.block_until_ready(out)

    ref = temporal_transformer_ref(x, params, n_heads=n_heads, dim_k=dim_k, dim_v=dim_v)
    assert out.shape == (B, L, d_model)
    # approx reciprocal in the softmax => slightly looser tolerance than exact f32
    assert jnp.allclose(out, ref, atol=5e-3, rtol=5e-3), "mismatch vs reference"

    print("KERNEL_OK")
</pallas_src>

<mosaic_0001>
module attributes {stable_mosaic.version = 11 : i64} {
  func.func @temporal_transformer_kernel(%arg0: i32, %arg1: memref<32x32xf32, #tpu.memory_space<vmem>>, %arg2: memref<32x64xf32, #tpu.memory_space<vmem>>, %arg3: memref<1x64xf32, #tpu.memory_space<vmem>>, %arg4: memref<32x64xf32, #tpu.memory_space<vmem>>, %arg5: memref<1x64xf32, #tpu.memory_space<vmem>>, %arg6: memref<32x64xf32, #tpu.memory_space<vmem>>, %arg7: memref<1x64xf32, #tpu.memory_space<vmem>>, %arg8: memref<64x32xf32, #tpu.memory_space<vmem>>, %arg9: memref<1x32xf32, #tpu.memory_space<vmem>>, %arg10: memref<32x64xf32, #tpu.memory_space<vmem>>, %arg11: memref<1x64xf32, #tpu.memory_space<vmem>>, %arg12: memref<64x32xf32, #tpu.memory_space<vmem>>, %arg13: memref<1x32xf32, #tpu.memory_space<vmem>>, %arg14: memref<1x32xf32, #tpu.memory_space<vmem>>, %arg15: memref<1x32xf32, #tpu.memory_space<vmem>>, %arg16: memref<1x32xf32, #tpu.memory_space<vmem>>, %arg17: memref<1x32xf32, #tpu.memory_space<vmem>>, %arg18: memref<32x32xf32, #tpu.memory_space<vmem>>) attributes {dimension_semantics = [#tpu.dimension_semantics<parallel>], iteration_bounds = array<i64: 2>, scalar_prefetch = 0 : i64, scratch_operands = 0 : i64, tpu.core_type = #tpu.core_type<tc>, window_params = [{transform_indices = @transform_0, window_bounds = array<i64: 32, 32>}, {pipeline_mode = #tpu.pipeline_mode<synchronous>, transform_indices = @transform_1, window_bounds = array<i64: 32, 64>}, {pipeline_mode = #tpu.pipeline_mode<synchronous>, transform_indices = @transform_2, window_bounds = array<i64: 1, 64>}, {pipeline_mode = #tpu.pipeline_mode<synchronous>, transform_indices = @transform_3, window_bounds = array<i64: 32, 64>}, {pipeline_mode = #tpu.pipeline_mode<synchronous>, transform_indices = @transform_4, window_bounds = array<i64: 1, 64>}, {pipeline_mode = #tpu.pipeline_mode<synchronous>, transform_indices = @transform_5, window_bounds = array<i64: 32, 64>}, {pipeline_mode = #tpu.pipeline_mode<synchronous>, transform_indices = @transform_6, window_bounds = array<i64: 1, 64>}, {pipeline_mode = #tpu.pipeline_mode<synchronous>, transform_indices = @transform_7, window_bounds = array<i64: 64, 32>}, {pipeline_mode = #tpu.pipeline_mode<synchronous>, transform_indices = @transform_8, window_bounds = array<i64: 1, 32>}, {pipeline_mode = #tpu.pipeline_mode<synchronous>, transform_indices = @transform_9, window_bounds = array<i64: 32, 64>}, {pipeline_mode = #tpu.pipeline_mode<synchronous>, transform_indices = @transform_10, window_bounds = array<i64: 1, 64>}, {pipeline_mode = #tpu.pipeline_mode<synchronous>, transform_indices = @transform_11, window_bounds = array<i64: 64, 32>}, {pipeline_mode = #tpu.pipeline_mode<synchronous>, transform_indices = @transform_12, window_bounds = array<i64: 1, 32>}, {pipeline_mode = #tpu.pipeline_mode<synchronous>, transform_indices = @transform_13, window_bounds = array<i64: 1, 32>}, {pipeline_mode = #tpu.pipeline_mode<synchronous>, transform_indices = @transform_14, window_bounds = array<i64: 1, 32>}, {pipeline_mode = #tpu.pipeline_mode<synchronous>, transform_indices = @transform_15, window_bounds = array<i64: 1, 32>}, {pipeline_mode = #tpu.pipeline_mode<synchronous>, transform_indices = @transform_16, window_bounds = array<i64: 1, 32>}, {transform_indices = @transform_17, window_bounds = array<i64: 32, 32>}]} {
    %c0 = arith.constant 0 : index
    %c0_0 = arith.constant 0 : index
    %0 = vector.load %arg1[%c0, %c0_0] : memref<32x32xf32, #tpu.memory_space<vmem>>, vector<32x32xf32>
    %c0_1 = arith.constant 0 : index
    %c0_2 = arith.constant 0 : index
    %1 = vector.load %arg2[%c0_1, %c0_2] : memref<32x64xf32, #tpu.memory_space<vmem>>, vector<32x64xf32>
    %cst = arith.constant dense<0.000000e+00> : vector<32x64xf32>
    %2 = tpu.matmul %0, %1, %cst {dimension_numbers = #tpu.dot_dimension_numbers<[1], [0], [0], [1], [0, 0, 1, 1], [], []>} : vector<32x32xf32>, vector<32x64xf32>, vector<32x64xf32> -> vector<32x64xf32>
    %c0_3 = arith.constant 0 : index
    %c0_4 = arith.constant 0 : index
    %3 = vector.load %arg3[%c0_3, %c0_4] : memref<1x64xf32, #tpu.memory_space<vmem>>, vector<1x64xf32>
    %4 = vector.shape_cast %3 : vector<1x64xf32> to vector<64xf32>
    %5 = vector.shape_cast %4 : vector<64xf32> to vector<1x64xf32>
    %6 = vector.broadcast %5 : vector<1x64xf32> to vector<32x64xf32>
    %7 = arith.addf %2, %6 : vector<32x64xf32>
    %c0_5 = arith.constant 0 : index
    %c0_6 = arith.constant 0 : index
    %8 = vector.load %arg4[%c0_5, %c0_6] : memref<32x64xf32, #tpu.memory_space<vmem>>, vector<32x64xf32>
    %cst_7 = arith.constant dense<0.000000e+00> : vector<32x64xf32>
    %9 = tpu.matmul %0, %8, %cst_7 {dimension_numbers = #tpu.dot_dimension_numbers<[1], [0], [0], [1], [0, 0, 1, 1], [], []>} : vector<32x32xf32>, vector<32x64xf32>, vector<32x64xf32> -> vector<32x64xf32>
    %c0_8 = arith.constant 0 : index
    %c0_9 = arith.constant 0 : index
    %10 = vector.load %arg5[%c0_8, %c0_9] : memref<1x64xf32, #tpu.memory_space<vmem>>, vector<1x64xf32>
    %11 = vector.shape_cast %10 : vector<1x64xf32> to vector<64xf32>
    %12 = vector.shape_cast %11 : vector<64xf32> to vector<1x64xf32>
    %13 = vector.broadcast %12 : vector<1x64xf32> to vector<32x64xf32>
    %14 = arith.addf %9, %13 : vector<32x64xf32>
    %c0_10 = arith.constant 0 : index
    %c0_11 = arith.constant 0 : index
    %15 = vector.load %arg6[%c0_10, %c0_11] : memref<32x64xf32, #tpu.memory_space<vmem>>, vector<32x64xf32>
    %cst_12 = arith.constant dense<0.000000e+00> : vector<32x64xf32>
    %16 = tpu.matmul %0, %15, %cst_12 {dimension_numbers = #tpu.dot_dimension_numbers<[1], [0], [0], [1], [0, 0, 1, 1], [], []>} : vector<32x32xf32>, vector<32x64xf32>, vector<32x64xf32> -> vector<32x64xf32>
    %c0_13 = arith.constant 0 : index
    %c0_14 = arith.constant 0 : index
    %17 = vector.load %arg7[%c0_13, %c0_14] : memref<1x64xf32, #tpu.memory_space<vmem>>, vector<1x64xf32>
    %18 = vector.shape_cast %17 : vector<1x64xf32> to vector<64xf32>
    %19 = vector.shape_cast %18 : vector<64xf32> to vector<1x64xf32>
    %20 = vector.broadcast %19 : vector<1x64xf32> to vector<32x64xf32>
    %21 = arith.addf %16, %20 : vector<32x64xf32>
    %c0_15 = arith.constant 0 : index
    %c0_16 = arith.constant 0 : index
    %22 = vector.load %arg8[%c0_15, %c0_16] : memref<64x32xf32, #tpu.memory_space<vmem>>, vector<64x32xf32>
    %23 = vector.extract_strided_slice %7 {offsets = [0, 0], sizes = [32, 16], strides = [1, 1]} : vector<32x64xf32> to vector<32x16xf32>
    %24 = vector.shape_cast %23 : vector<32x16xf32> to vector<2x16x16xf32>
    %25 = vector.extract_strided_slice %14 {offsets = [0, 0], sizes = [32, 16], strides = [1, 1]} : vector<32x64xf32> to vector<32x16xf32>
    %26 = vector.shape_cast %25 : vector<32x16xf32> to vector<2x16x16xf32>
    %27 = vector.extract_strided_slice %21 {offsets = [0, 0], sizes = [32, 16], strides = [1, 1]} : vector<32x64xf32> to vector<32x16xf32>
    %28 = vector.shape_cast %27 : vector<32x16xf32> to vector<2x16x16xf32>
    "tpu.trace_start"() <{level = 10 : i32, message = "bqd,bkd->bqk"}> : () -> ()
    %cst_17 = arith.constant dense<0.000000e+00> : vector<2x16x16xf32>
    %29 = tpu.matmul %24, %26, %cst_17 {dimension_numbers = #tpu.dot_dimension_numbers<[2], [2], [1], [1], [0, 0, 0, 1, 1, 1], [0], [0]>} : vector<2x16x16xf32>, vector<2x16x16xf32>, vector<2x16x16xf32> -> vector<2x16x16xf32>
    "tpu.trace_stop"() : () -> ()
    %cst_18 = arith.constant dense<0xFF800000> : vector<2x16xf32>
    %30 = vector.multi_reduction <maximumf>, %29, %cst_18 [2] : vector<2x16x16xf32> to vector<2x16xf32>
    %31 = vector.shape_cast %30 : vector<2x16xf32> to vector<2x16x1xf32>
    %32 = vector.broadcast %31 : vector<2x16x1xf32> to vector<2x16x16xf32>
    %33 = arith.subf %29, %32 : vector<2x16x16xf32>
    %34 = math.exp %33 : vector<2x16x16xf32>
    %cst_19 = arith.constant dense<0.000000e+00> : vector<2x16xf32>
    %35 = vector.multi_reduction <add>, %34, %cst_19 [2] : vector<2x16x16xf32> to vector<2x16xf32>
    %36 = vector.shape_cast %35 : vector<2x16xf32> to vector<2x16x1xf32>
    %37 = tpu.reciprocal %36 {approx = true} : vector<2x16x1xf32> -> vector<2x16x1xf32>
    %38 = vector.broadcast %37 : vector<2x16x1xf32> to vector<2x16x16xf32>
    %39 = arith.mulf %34, %38 : vector<2x16x16xf32>
    "tpu.trace_start"() <{level = 10 : i32, message = "bqk,bkd->bqd"}> : () -> ()
    %cst_20 = arith.constant dense<0.000000e+00> : vector<2x16x16xf32>
    %40 = tpu.matmul %39, %28, %cst_20 {dimension_numbers = #tpu.dot_dimension_numbers<[2], [1], [1], [2], [0, 0, 0, 1, 1, 2], [0], [0]>} : vector<2x16x16xf32>, vector<2x16x16xf32>, vector<2x16x16xf32> -> vector<2x16x16xf32>
    "tpu.trace_stop"() : () -> ()
    %41 = vector.shape_cast %40 : vector<2x16x16xf32> to vector<32x16xf32>
    %42 = vector.extract_strided_slice %22 {offsets = [0, 0], sizes = [16, 32], strides = [1, 1]} : vector<64x32xf32> to vector<16x32xf32>
    %cst_21 = arith.constant dense<0.000000e+00> : vector<32x32xf32>
    %43 = tpu.matmul %41, %42, %cst_21 {dimension_numbers = #tpu.dot_dimension_numbers<[1], [0], [0], [1], [0, 0, 1, 1], [], []>} : vector<32x16xf32>, vector<16x32xf32>, vector<32x32xf32> -> vector<32x32xf32>
    %44 = vector.extract_strided_slice %7 {offsets = [0, 16], sizes = [32, 16], strides = [1, 1]} : vector<32x64xf32> to vector<32x16xf32>
    %45 = vector.shape_cast %44 : vector<32x16xf32> to vector<2x16x16xf32>
    %46 = vector.extract_strided_slice %14 {offsets = [0, 16], sizes = [32, 16], strides = [1, 1]} : vector<32x64xf32> to vector<32x16xf32>
    %47 = vector.shape_cast %46 : vector<32x16xf32> to vector<2x16x16xf32>
    %48 = vector.extract_strided_slice %21 {offsets = [0, 16], sizes = [32, 16], strides = [1, 1]} : vector<32x64xf32> to vector<32x16xf32>
    %49 = vector.shape_cast %48 : vector<32x16xf32> to vector<2x16x16xf32>
    "tpu.trace_start"() <{level = 10 : i32, message = "bqd,bkd->bqk"}> : () -> ()
    %cst_22 = arith.constant dense<0.000000e+00> : vector<2x16x16xf32>
    %50 = tpu.matmul %45, %47, %cst_22 {dimension_numbers = #tpu.dot_dimension_numbers<[2], [2], [1], [1], [0, 0, 0, 1, 1, 1], [0], [0]>} : vector<2x16x16xf32>, vector<2x16x16xf32>, vector<2x16x16xf32> -> vector<2x16x16xf32>
    "tpu.trace_stop"() : () -> ()
    %cst_23 = arith.constant dense<0xFF800000> : vector<2x16xf32>
    %51 = vector.multi_reduction <maximumf>, %50, %cst_23 [2] : vector<2x16x16xf32> to vector<2x16xf32>
    %52 = vector.shape_cast %51 : vector<2x16xf32> to vector<2x16x1xf32>
    %53 = vector.broadcast %52 : vector<2x16x1xf32> to vector<2x16x16xf32>
    %54 = arith.subf %50, %53 : vector<2x16x16xf32>
    %55 = math.exp %54 : vector<2x16x16xf32>
    %cst_24 = arith.constant dense<0.000000e+00> : vector<2x16xf32>
    %56 = vector.multi_reduction <add>, %55, %cst_24 [2] : vector<2x16x16xf32> to vector<2x16xf32>
    %57 = vector.shape_cast %56 : vector<2x16xf32> to vector<2x16x1xf32>
    %58 = tpu.reciprocal %57 {approx = true} : vector<2x16x1xf32> -> vector<2x16x1xf32>
    %59 = vector.broadcast %58 : vector<2x16x1xf32> to vector<2x16x16xf32>
    %60 = arith.mulf %55, %59 : vector<2x16x16xf32>
    "tpu.trace_start"() <{level = 10 : i32, message = "bqk,bkd->bqd"}> : () -> ()
    %cst_25 = arith.constant dense<0.000000e+00> : vector<2x16x16xf32>
    %61 = tpu.matmul %60, %49, %cst_25 {dimension_numbers = #tpu.dot_dimension_numbers<[2], [1], [1], [2], [0, 0, 0, 1, 1, 2], [0], [0]>} : vector<2x16x16xf32>, vector<2x16x16xf32>, vector<2x16x16xf32> -> vector<2x16x16xf32>
    "tpu.trace_stop"() : () -> ()
    %62 = vector.shape_cast %61 : vector<2x16x16xf32> to vector<32x16xf32>
    %63 = vector.extract_strided_slice %22 {offsets = [16, 0], sizes = [16, 32], strides = [1, 1]} : vector<64x32xf32> to vector<16x32xf32>
    %cst_26 = arith.constant dense<0.000000e+00> : vector<32x32xf32>
    %64 = tpu.matmul %62, %63, %cst_26 {dimension_numbers = #tpu.dot_dimension_numbers<[1], [0], [0], [1], [0, 0, 1, 1], [], []>} : vector<32x16xf32>, vector<16x32xf32>, vector<32x32xf32> -> vector<32x32xf32>
    %65 = arith.addf %43, %64 : vector<32x32xf32>
    %66 = vector.extract_strided_slice %7 {offsets = [0, 32], sizes = [32, 16], strides = [1, 1]} : vector<32x64xf32> to vector<32x16xf32>
    %67 = vector.shape_cast %66 : vector<32x16xf32> to vector<2x16x16xf32>
    %68 = vector.extract_strided_slice %14 {offsets = [0, 32], sizes = [32, 16], strides = [1, 1]} : vector<32x64xf32> to vector<32x16xf32>
    %69 = vector.shape_cast %68 : vector<32x16xf32> to vector<2x16x16xf32>
    %70 = vector.extract_strided_slice %21 {offsets = [0, 32], sizes = [32, 16], strides = [1, 1]} : vector<32x64xf32> to vector<32x16xf32>
    %71 = vector.shape_cast %70 : vector<32x16xf32> to vector<2x16x16xf32>
    "tpu.trace_start"() <{level = 10 : i32, message = "bqd,bkd->bqk"}> : () -> ()
    %cst_27 = arith.constant dense<0.000000e+00> : vector<2x16x16xf32>
    %72 = tpu.matmul %67, %69, %cst_27 {dimension_numbers = #tpu.dot_dimension_numbers<[2], [2], [1], [1], [0, 0, 0, 1, 1, 1], [0], [0]>} : vector<2x16x16xf32>, vector<2x16x16xf32>, vector<2x16x16xf32> -> vector<2x16x16xf32>
    "tpu.trace_stop"() : () -> ()
    %cst_28 = arith.constant dense<0xFF800000> : vector<2x16xf32>
    %73 = vector.multi_reduction <maximumf>, %72, %cst_28 [2] : vector<2x16x16xf32> to vector<2x16xf32>
    %74 = vector.shape_cast %73 : vector<2x16xf32> to vector<2x16x1xf32>
    %75 = vector.broadcast %74 : vector<2x16x1xf32> to vector<2x16x16xf32>
    %76 = arith.subf %72, %75 : vector<2x16x16xf32>
    %77 = math.exp %76 : vector<2x16x16xf32>
    %cst_29 = arith.constant dense<0.000000e+00> : vector<2x16xf32>
    %78 = vector.multi_reduction <add>, %77, %cst_29 [2] : vector<2x16x16xf32> to vector<2x16xf32>
    %79 = vector.shape_cast %78 : vector<2x16xf32> to vector<2x16x1xf32>
    %80 = tpu.reciprocal %79 {approx = true} : vector<2x16x1xf32> -> vector<2x16x1xf32>
    %81 = vector.broadcast %80 : vector<2x16x1xf32> to vector<2x16x16xf32>
    %82 = arith.mulf %77, %81 : vector<2x16x16xf32>
    "tpu.trace_start"() <{level = 10 : i32, message = "bqk,bkd->bqd"}> : () -> ()
    %cst_30 = arith.constant dense<0.000000e+00> : vector<2x16x16xf32>
    %83 = tpu.matmul %82, %71, %cst_30 {dimension_numbers = #tpu.dot_dimension_numbers<[2], [1], [1], [2], [0, 0, 0, 1, 1, 2], [0], [0]>} : vector<2x16x16xf32>, vector<2x16x16xf32>, vector<2x16x16xf32> -> vector<2x16x16xf32>
    "tpu.trace_stop"() : () -> ()
    %84 = vector.shape_cast %83 : vector<2x16x16xf32> to vector<32x16xf32>
    %85 = vector.extract_strided_slice %22 {offsets = [32, 0], sizes = [16, 32], strides = [1, 1]} : vector<64x32xf32> to vector<16x32xf32>
    %cst_31 = arith.constant dense<0.000000e+00> : vector<32x32xf32>
    %86 = tpu.matmul %84, %85, %cst_31 {dimension_numbers = #tpu.dot_dimension_numbers<[1], [0], [0], [1], [0, 0, 1, 1], [], []>} : vector<32x16xf32>, vector<16x32xf32>, vector<32x32xf32> -> vector<32x32xf32>
    %87 = arith.addf %65, %86 : vector<32x32xf32>
    %88 = vector.extract_strided_slice %7 {offsets = [0, 48], sizes = [32, 16], strides = [1, 1]} : vector<32x64xf32> to vector<32x16xf32>
    %89 = vector.shape_cast %88 : vector<32x16xf32> to vector<2x16x16xf32>
    %90 = vector.extract_strided_slice %14 {offsets = [0, 48], sizes = [32, 16], strides = [1, 1]} : vector<32x64xf32> to vector<32x16xf32>
    %91 = vector.shape_cast %90 : vector<32x16xf32> to vector<2x16x16xf32>
    %92 = vector.extract_strided_slice %21 {offsets = [0, 48], sizes = [32, 16], strides = [1, 1]} : vector<32x64xf32> to vector<32x16xf32>
    %93 = vector.shape_cast %92 : vector<32x16xf32> to vector<2x16x16xf32>
    "tpu.trace_start"() <{level = 10 : i32, message = "bqd,bkd->bqk"}> : () -> ()
    %cst_32 = arith.constant dense<0.000000e+00> : vector<2x16x16xf32>
    %94 = tpu.matmul %89, %91, %cst_32 {dimension_numbers = #tpu.dot_dimension_numbers<[2], [2], [1], [1], [0, 0, 0, 1, 1, 1], [0], [0]>} : vector<2x16x16xf32>, vector<2x16x16xf32>, vector<2x16x16xf32> -> vector<2x16x16xf32>
    "tpu.trace_stop"() : () -> ()
    %cst_33 = arith.constant dense<0xFF800000> : vector<2x16xf32>
    %95 = vector.multi_reduction <maximumf>, %94, %cst_33 [2] : vector<2x16x16xf32> to vector<2x16xf32>
    %96 = vector.shape_cast %95 : vector<2x16xf32> to vector<2x16x1xf32>
    %97 = vector.broadcast %96 : vector<2x16x1xf32> to vector<2x16x16xf32>
    %98 = arith.subf %94, %97 : vector<2x16x16xf32>
    %99 = math.exp %98 : vector<2x16x16xf32>
    %cst_34 = arith.constant dense<0.000000e+00> : vector<2x16xf32>
    %100 = vector.multi_reduction <add>, %99, %cst_34 [2] : vector<2x16x16xf32> to vector<2x16xf32>
    %101 = vector.shape_cast %100 : vector<2x16xf32> to vector<2x16x1xf32>
    %102 = tpu.reciprocal %101 {approx = true} : vector<2x16x1xf32> -> vector<2x16x1xf32>
    %103 = vector.broadcast %102 : vector<2x16x1xf32> to vector<2x16x16xf32>
    %104 = arith.mulf %99, %103 : vector<2x16x16xf32>
    "tpu.trace_start"() <{level = 10 : i32, message = "bqk,bkd->bqd"}> : () -> ()
    %cst_35 = arith.constant dense<0.000000e+00> : vector<2x16x16xf32>
    %105 = tpu.matmul %104, %93, %cst_35 {dimension_numbers = #tpu.dot_dimension_numbers<[2], [1], [1], [2], [0, 0, 0, 1, 1, 2], [0], [0]>} : vector<2x16x16xf32>, vector<2x16x16xf32>, vector<2x16x16xf32> -> vector<2x16x16xf32>
    "tpu.trace_stop"() : () -> ()
    %106 = vector.shape_cast %105 : vector<2x16x16xf32> to vector<32x16xf32>
    %107 = vector.extract_strided_slice %22 {offsets = [48, 0], sizes = [16, 32], strides = [1, 1]} : vector<64x32xf32> to vector<16x32xf32>
    %cst_36 = arith.constant dense<0.000000e+00> : vector<32x32xf32>
    %108 = tpu.matmul %106, %107, %cst_36 {dimension_numbers = #tpu.dot_dimension_numbers<[1], [0], [0], [1], [0, 0, 1, 1], [], []>} : vector<32x16xf32>, vector<16x32xf32>, vector<32x32xf32> -> vector<32x32xf32>
    %109 = arith.addf %87, %108 : vector<32x32xf32>
    %c0_37 = arith.constant 0 : index
    %c0_38 = arith.constant 0 : index
    %110 = vector.load %arg9[%c0_37, %c0_38] : memref<1x32xf32, #tpu.memory_space<vmem>>, vector<1x32xf32>
    %111 = vector.shape_cast %110 : vector<1x32xf32> to vector<32xf32>
    %112 = vector.shape_cast %111 : vector<32xf32> to vector<1x32xf32>
    %113 = vector.broadcast %112 : vector<1x32xf32> to vector<32x32xf32>
    %114 = arith.addf %109, %113 : vector<32x32xf32>
    %115 = arith.addf %0, %114 : vector<32x32xf32>
    %c0_39 = arith.constant 0 : index
    %c0_40 = arith.constant 0 : index
    %116 = vector.load %arg14[%c0_39, %c0_40] : memref<1x32xf32, #tpu.memory_space<vmem>>, vector<1x32xf32>
    %117 = vector.shape_cast %116 : vector<1x32xf32> to vector<32xf32>
    %c0_41 = arith.constant 0 : index
    %c0_42 = arith.constant 0 : index
    %118 = vector.load %arg15[%c0_41, %c0_42] : memref<1x32xf32, #tpu.memory_space<vmem>>, vector<1x32xf32>
    %119 = vector.shape_cast %118 : vector<1x32xf32> to vector<32xf32>
    %cst_43 = arith.constant dense<0.000000e+00> : vector<32xf32>
    %120 = vector.multi_reduction <add>, %115, %cst_43 [1] : vector<32x32xf32> to vector<32xf32>
    %121 = vector.shape_cast %120 : vector<32xf32> to vector<32x1xf32>
    %cst_44 = arith.constant 3.200000e+01 : f32
    %122 = vector.broadcast %cst_44 : f32 to vector<32x1xf32>
    %123 = arith.divf %121, %122 : vector<32x1xf32>
    %124 = vector.broadcast %123 : vector<32x1xf32> to vector<32x32xf32>
    %125 = arith.subf %115, %124 : vector<32x32xf32>
    %126 = arith.mulf %125, %125 : vector<32x32xf32>
    %cst_45 = arith.constant dense<0.000000e+00> : vector<32xf32>
    %127 = vector.multi_reduction <add>, %126, %cst_45 [1] : vector<32x32xf32> to vector<32xf32>
    %128 = vector.shape_cast %127 : vector<32xf32> to vector<32x1xf32>
    %cst_46 = arith.constant 3.200000e+01 : f32
    %129 = vector.broadcast %cst_46 : f32 to vector<32x1xf32>
    %130 = arith.divf %128, %129 : vector<32x1xf32>
    %131 = vector.broadcast %123 : vector<32x1xf32> to vector<32x32xf32>
    %132 = arith.subf %115, %131 : vector<32x32xf32>
    %cst_47 = arith.constant 9.99999974E-6 : f32
    %133 = vector.broadcast %cst_47 : f32 to vector<32x1xf32>
    %134 = arith.addf %130, %133 : vector<32x1xf32>
    %135 = math.rsqrt %134 : vector<32x1xf32>
    %136 = vector.broadcast %135 : vector<32x1xf32> to vector<32x32xf32>
    %137 = arith.mulf %132, %136 : vector<32x32xf32>
    %138 = vector.shape_cast %117 : vector<32xf32> to vector<1x32xf32>
    %139 = vector.broadcast %138 : vector<1x32xf32> to vector<32x32xf32>
    %140 = arith.mulf %137, %139 : vector<32x32xf32>
    %141 = vector.shape_cast %119 : vector<32xf32> to vector<1x32xf32>
    %142 = vector.broadcast %141 : vector<1x32xf32> to vector<32x32xf32>
    %143 = arith.addf %140, %142 : vector<32x32xf32>
    %c0_48 = arith.constant 0 : index
    %c0_49 = arith.constant 0 : index
    %144 = vector.load %arg10[%c0_48, %c0_49] : memref<32x64xf32, #tpu.memory_space<vmem>>, vector<32x64xf32>
    %cst_50 = arith.constant dense<0.000000e+00> : vector<32x64xf32>
    %145 = tpu.matmul %143, %144, %cst_50 {dimension_numbers = #tpu.dot_dimension_numbers<[1], [0], [0], [1], [0, 0, 1, 1], [], []>} : vector<32x32xf32>, vector<32x64xf32>, vector<32x64xf32> -> vector<32x64xf32>
    %c0_51 = arith.constant 0 : index
    %c0_52 = arith.constant 0 : index
    %146 = vector.load %arg11[%c0_51, %c0_52] : memref<1x64xf32, #tpu.memory_space<vmem>>, vector<1x64xf32>
    %147 = vector.shape_cast %146 : vector<1x64xf32> to vector<64xf32>
    %148 = vector.shape_cast %147 : vector<64xf32> to vector<1x64xf32>
    %149 = vector.broadcast %148 : vector<1x64xf32> to vector<32x64xf32>
    %150 = arith.addf %145, %149 : vector<32x64xf32>
    %cst_53 = arith.constant 0.000000e+00 : f32
    %151 = vector.broadcast %cst_53 : f32 to vector<32x64xf32>
    %152 = arith.maximumf %150, %151 : vector<32x64xf32>
    %c0_54 = arith.constant 0 : index
    %c0_55 = arith.constant 0 : index
    %153 = vector.load %arg12[%c0_54, %c0_55] : memref<64x32xf32, #tpu.memory_space<vmem>>, vector<64x32xf32>
    %cst_56 = arith.constant dense<0.000000e+00> : vector<32x32xf32>
    %154 = tpu.matmul %152, %153, %cst_56 {dimension_numbers = #tpu.dot_dimension_numbers<[1], [0], [0], [1], [0, 0, 1, 1], [], []>} : vector<32x64xf32>, vector<64x32xf32>, vector<32x32xf32> -> vector<32x32xf32>
    %c0_57 = arith.constant 0 : index
    %c0_58 = arith.constant 0 : index
    %155 = vector.load %arg13[%c0_57, %c0_58] : memref<1x32xf32, #tpu.memory_space<vmem>>, vector<1x32xf32>
    %156 = vector.shape_cast %155 : vector<1x32xf32> to vector<32xf32>
    %157 = vector.shape_cast %156 : vector<32xf32> to vector<1x32xf32>
    %158 = vector.broadcast %157 : vector<1x32xf32> to vector<32x32xf32>
    %159 = arith.addf %154, %158 : vector<32x32xf32>
    %160 = arith.addf %143, %159 : vector<32x32xf32>
    %c0_59 = arith.constant 0 : index
    %c0_60 = arith.constant 0 : index
    %161 = vector.load %arg16[%c0_59, %c0_60] : memref<1x32xf32, #tpu.memory_space<vmem>>, vector<1x32xf32>
    %162 = vector.shape_cast %161 : vector<1x32xf32> to vector<32xf32>
    %c0_61 = arith.constant 0 : index
    %c0_62 = arith.constant 0 : index
    %163 = vector.load %arg17[%c0_61, %c0_62] : memref<1x32xf32, #tpu.memory_space<vmem>>, vector<1x32xf32>
    %164 = vector.shape_cast %163 : vector<1x32xf32> to vector<32xf32>
    %cst_63 = arith.constant dense<0.000000e+00> : vector<32xf32>
    %165 = vector.multi_reduction <add>, %160, %cst_63 [1] : vector<32x32xf32> to vector<32xf32>
    %166 = vector.shape_cast %165 : vector<32xf32> to vector<32x1xf32>
    %cst_64 = arith.constant 3.200000e+01 : f32
    %167 = vector.broadcast %cst_64 : f32 to vector<32x1xf32>
    %168 = arith.divf %166, %167 : vector<32x1xf32>
    %169 = vector.broadcast %168 : vector<32x1xf32> to vector<32x32xf32>
    %170 = arith.subf %160, %169 : vector<32x32xf32>
    %171 = arith.mulf %170, %170 : vector<32x32xf32>
    %cst_65 = arith.constant dense<0.000000e+00> : vector<32xf32>
    %172 = vector.multi_reduction <add>, %171, %cst_65 [1] : vector<32x32xf32> to vector<32xf32>
    %173 = vector.shape_cast %172 : vector<32xf32> to vector<32x1xf32>
    %cst_66 = arith.constant 3.200000e+01 : f32
    %174 = vector.broadcast %cst_66 : f32 to vector<32x1xf32>
    %175 = arith.divf %173, %174 : vector<32x1xf32>
    %176 = vector.broadcast %168 : vector<32x1xf32> to vector<32x32xf32>
    %177 = arith.subf %160, %176 : vector<32x32xf32>
    %cst_67 = arith.constant 9.99999974E-6 : f32
    %178 = vector.broadcast %cst_67 : f32 to vector<32x1xf32>
    %179 = arith.addf %175, %178 : vector<32x1xf32>
    %180 = math.rsqrt %179 : vector<32x1xf32>
    %181 = vector.broadcast %180 : vector<32x1xf32> to vector<32x32xf32>
    %182 = arith.mulf %177, %181 : vector<32x32xf32>
    %183 = vector.shape_cast %162 : vector<32xf32> to vector<1x32xf32>
    %184 = vector.broadcast %183 : vector<1x32xf32> to vector<32x32xf32>
    %185 = arith.mulf %182, %184 : vector<32x32xf32>
    %186 = vector.shape_cast %164 : vector<32xf32> to vector<1x32xf32>
    %187 = vector.broadcast %186 : vector<1x32xf32> to vector<32x32xf32>
    %188 = arith.addf %185, %187 : vector<32x32xf32>
    %c0_68 = arith.constant 0 : index
    %c0_69 = arith.constant 0 : index
    %189 = vector.load %arg18[%c0_68, %c0_69] : memref<32x32xf32, #tpu.memory_space<vmem>>, vector<32x32xf32>
    tpu.vector_store %arg18[%c0_68, %c0_69], %188 {strides = array<i32>} : memref<32x32xf32, #tpu.memory_space<vmem>>, vector<32x32xf32>,
    return
  }
  func.func @transform_0(%arg0: i32) -> (i32, i32) {
    %c0_i32 = arith.constant 0 : i32
    %c0_i32_0 = arith.constant 0 : i32
    return %arg0, %c0_i32 : i32, i32
  }
  func.func @transform_1(%arg0: i32) -> (i32, i32) {
    %c0_i32 = arith.constant 0 : i32
    %c0_i32_0 = arith.constant 0 : i32
    %c0_i32_1 = arith.constant 0 : i32
    return %c0_i32, %c0_i32_0 : i32, i32
  }
  func.func @transform_2(%arg0: i32) -> (i32, i32) {
    %c0_i32 = arith.constant 0 : i32
    %c0_i32_0 = arith.constant 0 : i32
    %c0_i32_1 = arith.constant 0 : i32
    return %c0_i32, %c0_i32_0 : i32, i32
  }
  func.func @transform_3(%arg0: i32) -> (i32, i32) {
    %c0_i32 = arith.constant 0 : i32
    %c0_i32_0 = arith.constant 0 : i32
    %c0_i32_1 = arith.constant 0 : i32
    return %c0_i32, %c0_i32_0 : i32, i32
  }
  func.func @transform_4(%arg0: i32) -> (i32, i32) {
    %c0_i32 = arith.constant 0 : i32
    %c0_i32_0 = arith.constant 0 : i32
    %c0_i32_1 = arith.constant 0 : i32
    return %c0_i32, %c0_i32_0 : i32, i32
  }
  func.func @transform_5(%arg0: i32) -> (i32, i32) {
    %c0_i32 = arith.constant 0 : i32
    %c0_i32_0 = arith.constant 0 : i32
    %c0_i32_1 = arith.constant 0 : i32
    return %c0_i32, %c0_i32_0 : i32, i32
  }
  func.func @transform_6(%arg0: i32) -> (i32, i32) {
    %c0_i32 = arith.constant 0 : i32
    %c0_i32_0 = arith.constant 0 : i32
    %c0_i32_1 = arith.constant 0 : i32
    return %c0_i32, %c0_i32_0 : i32, i32
  }
  func.func @transform_7(%arg0: i32) -> (i32, i32) {
    %c0_i32 = arith.constant 0 : i32
    %c0_i32_0 = arith.constant 0 : i32
    %c0_i32_1 = arith.constant 0 : i32
    return %c0_i32, %c0_i32_0 : i32, i32
  }
  func.func @transform_8(%arg0: i32) -> (i32, i32) {
    %c0_i32 = arith.constant 0 : i32
    %c0_i32_0 = arith.constant 0 : i32
    %c0_i32_1 = arith.constant 0 : i32
    return %c0_i32, %c0_i32_0 : i32, i32
  }
  func.func @transform_9(%arg0: i32) -> (i32, i32) {
    %c0_i32 = arith.constant 0 : i32
    %c0_i32_0 = arith.constant 0 : i32
    %c0_i32_1 = arith.constant 0 : i32
    return %c0_i32, %c0_i32_0 : i32, i32
  }
  func.func @transform_10(%arg0: i32) -> (i32, i32) {
    %c0_i32 = arith.constant 0 : i32
    %c0_i32_0 = arith.constant 0 : i32
    %c0_i32_1 = arith.constant 0 : i32
    return %c0_i32, %c0_i32_0 : i32, i32
  }
  func.func @transform_11(%arg0: i32) -> (i32, i32) {
    %c0_i32 = arith.constant 0 : i32
    %c0_i32_0 = arith.constant 0 : i32
    %c0_i32_1 = arith.constant 0 : i32
    return %c0_i32, %c0_i32_0 : i32, i32
  }
  func.func @transform_12(%arg0: i32) -> (i32, i32) {
    %c0_i32 = arith.constant 0 : i32
    %c0_i32_0 = arith.constant 0 : i32
    %c0_i32_1 = arith.constant 0 : i32
    return %c0_i32, %c0_i32_0 : i32, i32
  }
  func.func @transform_13(%arg0: i32) -> (i32, i32) {
    %c0_i32 = arith.constant 0 : i32
    %c0_i32_0 = arith.constant 0 : i32
    %c0_i32_1 = arith.constant 0 : i32
    return %c0_i32, %c0_i32_0 : i32, i32
  }
  func.func @transform_14(%arg0: i32) -> (i32, i32) {
    %c0_i32 = arith.constant 0 : i32
    %c0_i32_0 = arith.constant 0 : i32
    %c0_i32_1 = arith.constant 0 : i32
    return %c0_i32, %c0_i32_0 : i32, i32
  }
  func.func @transform_15(%arg0: i32) -> (i32, i32) {
    %c0_i32 = arith.constant 0 : i32
    %c0_i32_0 = arith.constant 0 : i32
    %c0_i32_1 = arith.constant 0 : i32
    return %c0_i32, %c0_i32_0 : i32, i32
  }
  func.func @transform_16(%arg0: i32) -> (i32, i32) {
    %c0_i32 = arith.constant 0 : i32
    %c0_i32_0 = arith.constant 0 : i32
    %c0_i32_1 = arith.constant 0 : i32
    return %c0_i32, %c0_i32_0 : i32, i32
  }
  func.func @transform_17(%arg0: i32) -> (i32, i32) {
    %c0_i32 = arith.constant 0 : i32
    %c0_i32_0 = arith.constant 0 : i32
    return %arg0, %c0_i32 : i32, i32
  }
}

</mosaic_0001>

<llo_original>
// kernel: tpu_custom_call.1
$region0: #{tpu_custom_call.1}
  #allocation0 [shape = 'u32[]', space=smem, size = 0x4, offset = 0x4, fixed_abs, tag = 'smem constant byte address 0x4 - core index']
  #allocation1 [shape = 'u32[144,128]{1,0:T(1,128)}', space=vmem, size = 0x12000, scoped, tag = 'internal scratch']
  %s0 = inlined_call_operand.vmem [shape: f32[64,32], index: 0, kind: input, shape index: {}]
  %s1 = inlined_call_operand.vmem [shape: f32[32,64], index: 1, kind: input, shape index: {}]
  %s2 = inlined_call_operand.vmem [shape: f32[1,64], index: 2, kind: input, shape index: {}]
  %s3 = inlined_call_operand.vmem [shape: f32[32,64], index: 3, kind: input, shape index: {}]
  %s4 = inlined_call_operand.vmem [shape: f32[1,64], index: 4, kind: input, shape index: {}]
  %s5 = inlined_call_operand.vmem [shape: f32[32,64], index: 5, kind: input, shape index: {}]
  %s6 = inlined_call_operand.vmem [shape: f32[1,64], index: 6, kind: input, shape index: {}]
  %s7 = inlined_call_operand.vmem [shape: f32[64,32], index: 7, kind: input, shape index: {}]
  %s8 = inlined_call_operand.vmem [shape: f32[1,32], index: 8, kind: input, shape index: {}]
  %s9 = inlined_call_operand.vmem [shape: f32[32,64], index: 9, kind: input, shape index: {}]
  %s10 = inlined_call_operand.vmem [shape: f32[1,64], index: 10, kind: input, shape index: {}]
  %s11 = inlined_call_operand.vmem [shape: f32[64,32], index: 11, kind: input, shape index: {}]
  %s12 = inlined_call_operand.vmem [shape: f32[1,32], index: 12, kind: input, shape index: {}]
  %s13 = inlined_call_operand.vmem [shape: f32[1,32], index: 13, kind: input, shape index: {}]
  %s14 = inlined_call_operand.vmem [shape: f32[1,32], index: 14, kind: input, shape index: {}]
  %s15 = inlined_call_operand.vmem [shape: f32[1,32], index: 15, kind: input, shape index: {}]
  %s16 = inlined_call_operand.vmem [shape: f32[1,32], index: 16, kind: input, shape index: {}]
  %s17 = inlined_call_operand.vmem [shape: f32[64,32], index: 17, kind: output, shape index: {}]
  %s18 = sld [smem:[#allocation0]]
  $region101: #{tpu_custom_call.1} parent=0
    _
  %s20 = ssub.s32 1, %s18
  %s21 = scalar_select 0, %s20, %s18
  loop: start=0, step=1, limit=4
  $region2: #{tpu_custom_call.1} parent=0 // loop_pre_header
    _
  $region3: #{tpu_custom_call.1} parent=0 // loop_header
    %s23 = sphi 0, %s27
    %p24 = scmp.ge.s32.totalorder %s23, 4
    %s33 = sphi 0, %s35
    %s36 = sphi 0, %s33
    %s37 = sphi 0, %s36
    %s53 = sphi 0, %s37
    %s57 = sphi 0, %s57
    %s59 = sphi 0, %s57
    %s60 = sphi 0, %s59
    %s74 = sphi 0, %s60
    %s78 = sphi 0, %s78
    %s80 = sphi 0, %s78
    %s81 = sphi 0, %s80
    %s95 = sphi 0, %s81
    %s99 = sphi 0, %s99
    %s101 = sphi 0, %s99
    %s102 = sphi 0, %s101
    %s116 = sphi 0, %s102
    %s120 = sphi 0, %s120
    %s122 = sphi 0, %s120
    %s123 = sphi 0, %s122
    %s137 = sphi 0, %s123
    %s141 = sphi 0, %s141
    %s143 = sphi 0, %s141
    %s144 = sphi 0, %s143
    %s158 = sphi 0, %s144
    %s162 = sphi 0, %s162
    %s164 = sphi 0, %s162
    %s165 = sphi 0, %s164
    %s179 = sphi 0, %s165
    %s183 = sphi 0, %s183
    %s185 = sphi 0, %s183
    %s186 = sphi 0, %s185
    %s200 = sphi 0, %s186
    %s204 = sphi 0, %s204
    %s206 = sphi 0, %s204
    %s207 = sphi 0, %s206
    %s221 = sphi 0, %s207
    %s225 = sphi 0, %s225
    %s227 = sphi 0, %s225
    %s228 = sphi 0, %s227
    %s242 = sphi 0, %s228
    %s246 = sphi 0, %s246
    %s248 = sphi 0, %s246
    %s249 = sphi 0, %s248
    %s263 = sphi 0, %s249
    %s267 = sphi 0, %s267
    %s269 = sphi 0, %s267
    %s270 = sphi 0, %s269
    %s284 = sphi 0, %s270
    %s288 = sphi 0, %s288
    %s290 = sphi 0, %s288
    %s291 = sphi 0, %s290
    %s305 = sphi 0, %s291
    %s309 = sphi 0, %s309
    %s311 = sphi 0, %s309
    %s312 = sphi 0, %s311
    %s326 = sphi 0, %s312
    %s330 = sphi 0, %s330
    %s332 = sphi 0, %s330
    %s333 = sphi 0, %s332
    %s347 = sphi 0, %s333
    %s351 = sphi 0, %s351
    %s353 = sphi 0, %s351
    %s354 = sphi 0, %s353
    %s368 = sphi 0, %s354
    %s372 = sphi 0, %s372
    %s374 = sphi 0, %s372
    %s375 = sphi 0, %s374
    %s389 = sphi 0, %s375
    %s395 = sphi 0, %s397
    %s398 = sphi 0, %s395
    %s399 = sphi 0, %s398
    %s415 = sphi 0, %s399
  $region4: #{tpu_custom_call.1} parent=0 // loop_header_branch
    %26 = sbr.rel (%p24) target = $region8
  $region5: #{tpu_custom_call.1} parent=0 // loop_body
    %s28 = ssub.s32 %s23, 1
    %s29 = ssub.s32 %s23, 2
    %s30 = sadd.s32 %s23, 1
    %s31 = ssub.s32 %s23, %s30
    %p32 = scmp.eq.s32.totalorder %s31, 0
    %s34 = sadd.s32 %s33, 1
    %s35 = scalar_select %p32, %s33, %s34
    %p38 = pneg %p32
    %p39 = scmp.eq.s32.totalorder %s23, 1
    %p40 = por %p38, %p39
    %p41 = scmp.ne.s32.totalorder %s33, %s36
    %p42 = scmp.eq.s32.totalorder %s23, 0
    %p43 = por %p41, %p42
    %p44 = scmp.ne.s32.totalorder %s33, %s36
    %p45 = scmp.eq.s32.totalorder %s28, 1
    %p46 = por %p44, %p45
    %p47 = scmp.ne.s32.totalorder %s36, %s37
    %p48 = scmp.eq.s32.totalorder %s28, 0
    %p49 = por %p47, %p48
    %p50 = scmp.ne.s32.totalorder %s36, %s37
    %p51 = scmp.eq.s32.totalorder %s29, 1
    %p52 = por %p50, %p51
    %p54 = scmp.ne.s32.totalorder %s37, %s53
    %p55 = scmp.eq.s32.totalorder %s29, 0
    %p56 = por %p54, %p55
    %s58 = sadd.s32 %s57, 1
    %p61 = scmp.eq.s32.totalorder %s23, 1
    %p62 = scmp.ne.s32.totalorder %s57, %s59
    %p63 = scmp.eq.s32.totalorder %s23, 0
    %p64 = por %p62, %p63
    %p65 = scmp.ne.s32.totalorder %s57, %s59
    %p66 = scmp.eq.s32.totalorder %s28, 1
    %p67 = por %p65, %p66
    %p68 = scmp.ne.s32.totalorder %s59, %s60
    %p69 = scmp.eq.s32.totalorder %s28, 0
    %p70 = por %p68, %p69
    %p71 = scmp.ne.s32.totalorder %s59, %s60
    %p72 = scmp.eq.s32.totalorder %s29, 1
    %p73 = por %p71, %p72
    %p75 = scmp.ne.s32.totalorder %s60, %s74
    %p76 = scmp.eq.s32.totalorder %s29, 0
    %p77 = por %p75, %p76
    %s79 = sadd.s32 %s78, 1
    %p82 = scmp.eq.s32.totalorder %s23, 1
    %p83 = scmp.ne.s32.totalorder %s78, %s80
    %p84 = scmp.eq.s32.totalorder %s23, 0
    %p85 = por %p83, %p84
    %p86 = scmp.ne.s32.totalorder %s78, %s80
    %p87 = scmp.eq.s32.totalorder %s28, 1
    %p88 = por %p86, %p87
    %p89 = scmp.ne.s32.totalorder %s80, %s81
    %p90 = scmp.eq.s32.totalorder %s28, 0
    %p91 = por %p89, %p90
    %p92 = scmp.ne.s32.totalorder %s80, %s81
    %p93 = scmp.eq.s32.totalorder %s29, 1
    %p94 = por %p92, %p93
    %p96 = scmp.ne.s32.totalorder %s81, %s95
    %p97 = scmp.eq.s32.totalorder %s29, 0
    %p98 = por %p96, %p97
    %s100 = sadd.s32 %s99, 1
    %p103 = scmp.eq.s32.totalorder %s23, 1
    %p104 = scmp.ne.s32.totalorder %s99, %s101
    %p105 = scmp.eq.s32.totalorder %s23, 0
    %p106 = por %p104, %p105
    %p107 = scmp.ne.s32.totalorder %s99, %s101
    %p108 = scmp.eq.s32.totalorder %s28, 1
    %p109 = por %p107, %p108
    %p110 = scmp.ne.s32.totalorder %s101, %s102
    %p111 = scmp.eq.s32.totalorder %s28, 0
    %p112 = por %p110, %p111
    %p113 = scmp.ne.s32.totalorder %s101, %s102
    %p114 = scmp.eq.s32.totalorder %s29, 1
    %p115 = por %p113, %p114
    %p117 = scmp.ne.s32.totalorder %s102, %s116
    %p118 = scmp.eq.s32.totalorder %s29, 0
    %p119 = por %p117, %p118
    %s121 = sadd.s32 %s120, 1
    %p124 = scmp.eq.s32.totalorder %s23, 1
    %p125 = scmp.ne.s32.totalorder %s120, %s122
    %p126 = scmp.eq.s32.totalorder %s23, 0
    %p127 = por %p125, %p126
    %p128 = scmp.ne.s32.totalorder %s120, %s122
    %p129 = scmp.eq.s32.totalorder %s28, 1
    %p130 = por %p128, %p129
    %p131 = scmp.ne.s32.totalorder %s122, %s123
    %p132 = scmp.eq.s32.totalorder %s28, 0
    %p133 = por %p131, %p132
    %p134 = scmp.ne.s32.totalorder %s122, %s123
    %p135 = scmp.eq.s32.totalorder %s29, 1
    %p136 = por %p134, %p135
    %p138 = scmp.ne.s32.totalorder %s123, %s137
    %p139 = scmp.eq.s32.totalorder %s29, 0
    %p140 = por %p138, %p139
    %s142 = sadd.s32 %s141, 1
    %p145 = scmp.eq.s32.totalorder %s23, 1
    %p146 = scmp.ne.s32.totalorder %s141, %s143
    %p147 = scmp.eq.s32.totalorder %s23, 0
    %p148 = por %p146, %p147
    %p149 = scmp.ne.s32.totalorder %s141, %s143
    %p150 = scmp.eq.s32.totalorder %s28, 1
    %p151 = por %p149, %p150
    %p152 = scmp.ne.s32.totalorder %s143, %s144
    %p153 = scmp.eq.s32.totalorder %s28, 0
    %p154 = por %p152, %p153
    %p155 = scmp.ne.s32.totalorder %s143, %s144
    %p156 = scmp.eq.s32.totalorder %s29, 1
    %p157 = por %p155, %p156
    %p159 = scmp.ne.s32.totalorder %s144, %s158
    %p160 = scmp.eq.s32.totalorder %s29, 0
    %p161 = por %p159, %p160
    %s163 = sadd.s32 %s162, 1
    %p166 = scmp.eq.s32.totalorder %s23, 1
    %p167 = scmp.ne.s32.totalorder %s162, %s164
    %p168 = scmp.eq.s32.totalorder %s23, 0
    %p169 = por %p167, %p168
    %p170 = scmp.ne.s32.totalorder %s162, %s164
    %p171 = scmp.eq.s32.totalorder %s28, 1
    %p172 = por %p170, %p171
    %p173 = scmp.ne.s32.totalorder %s164, %s165
    %p174 = scmp.eq.s32.totalorder %s28, 0
    %p175 = por %p173, %p174
    %p176 = scmp.ne.s32.totalorder %s164, %s165
    %p177 = scmp.eq.s32.totalorder %s29, 1
    %p178 = por %p176, %p177
    %p180 = scmp.ne.s32.totalorder %s165, %s179
    %p181 = scmp.eq.s32.totalorder %s29, 0
    %p182 = por %p180, %p181
    %s184 = sadd.s32 %s183, 1
    %p187 = scmp.eq.s32.totalorder %s23, 1
    %p188 = scmp.ne.s32.totalorder %s183, %s185
    %p189 = scmp.eq.s32.totalorder %s23, 0
    %p190 = por %p188, %p189
    %p191 = scmp.ne.s32.totalorder %s183, %s185
    %p192 = scmp.eq.s32.totalorder %s28, 1
    %p193 = por %p191, %p192
    %p194 = scmp.ne.s32.totalorder %s185, %s186
    %p195 = scmp.eq.s32.totalorder %s28, 0
    %p196 = por %p194, %p195
    %p197 = scmp.ne.s32.totalorder %s185, %s186
    %p198 = scmp.eq.s32.totalorder %s29, 1
    %p199 = por %p197, %p198
    %p201 = scmp.ne.s32.totalorder %s186, %s200
    %p202 = scmp.eq.s32.totalorder %s29, 0
    %p203 = por %p201, %p202
    %s205 = sadd.s32 %s204, 1
    %p208 = scmp.eq.s32.totalorder %s23, 1
    %p209 = scmp.ne.s32.totalorder %s204, %s206
    %p210 = scmp.eq.s32.totalorder %s23, 0
    %p211 = por %p209, %p210
    %p212 = scmp.ne.s32.totalorder %s204, %s206
    %p213 = scmp.eq.s32.totalorder %s28, 1
    %p214 = por %p212, %p213
    %p215 = scmp.ne.s32.totalorder %s206, %s207
    %p216 = scmp.eq.s32.totalorder %s28, 0
    %p217 = por %p215, %p216
    %p218 = scmp.ne.s32.totalorder %s206, %s207
    %p219 = scmp.eq.s32.totalorder %s29, 1
    %p220 = por %p218, %p219
    %p222 = scmp.ne.s32.totalorder %s207, %s221
    %p223 = scmp.eq.s32.totalorder %s29, 0
    %p224 = por %p222, %p223
    %s226 = sadd.s32 %s225, 1
    %p229 = scmp.eq.s32.totalorder %s23, 1
    %p230 = scmp.ne.s32.totalorder %s225, %s227
    %p231 = scmp.eq.s32.totalorder %s23, 0
    %p232 = por %p230, %p231
    %p233 = scmp.ne.s32.totalorder %s225, %s227
    %p234 = scmp.eq.s32.totalorder %s28, 1
    %p235 = por %p233, %p234
    %p236 = scmp.ne.s32.totalorder %s227, %s228
    %p237 = scmp.eq.s32.totalorder %s28, 0
    %p238 = por %p236, %p237
    %p239 = scmp.ne.s32.totalorder %s227, %s228
    %p240 = scmp.eq.s32.totalorder %s29, 1
    %p241 = por %p239, %p240
    %p243 = scmp.ne.s32.totalorder %s228, %s242
    %p244 = scmp.eq.s32.totalorder %s29, 0
    %p245 = por %p243, %p244
    %s247 = sadd.s32 %s246, 1
    %p250 = scmp.eq.s32.totalorder %s23, 1
    %p251 = scmp.ne.s32.totalorder %s246, %s248
    %p252 = scmp.eq.s32.totalorder %s23, 0
    %p253 = por %p251, %p252
    %p254 = scmp.ne.s32.totalorder %s246, %s248
    %p255 = scmp.eq.s32.totalorder %s28, 1
    %p256 = por %p254, %p255
    %p257 = scmp.ne.s32.totalorder %s248, %s249
    %p258 = scmp.eq.s32.totalorder %s28, 0
    %p259 = por %p257, %p258
    %p260 = scmp.ne.s32.totalorder %s248, %s249
    %p261 = scmp.eq.s32.totalorder %s29, 1
    %p262 = por %p260, %p261
    %p264 = scmp.ne.s32.totalorder %s249, %s263
    %p265 = scmp.eq.s32.totalorder %s29, 0
    %p266 = por %p264, %p265
    %s268 = sadd.s32 %s267, 1
    %p271 = scmp.eq.s32.totalorder %s23, 1
    %p272 = scmp.ne.s32.totalorder %s267, %s269
    %p273 = scmp.eq.s32.totalorder %s23, 0
    %p274 = por %p272, %p273
    %p275 = scmp.ne.s32.totalorder %s267, %s269
    %p276 = scmp.eq.s32.totalorder %s28, 1
    %p277 = por %p275, %p276
    %p278 = scmp.ne.s32.totalorder %s269, %s270
    %p279 = scmp.eq.s32.totalorder %s28, 0
    %p280 = por %p278, %p279
    %p281 = scmp.ne.s32.totalorder %s269, %s270
    %p282 = scmp.eq.s32.totalorder %s29, 1
    %p283 = por %p281, %p282
    %p285 = scmp.ne.s32.totalorder %s270, %s284
    %p286 = scmp.eq.s32.totalorder %s29, 0
    %p287 = por %p285, %p286
    %s289 = sadd.s32 %s288, 1
    %p292 = scmp.eq.s32.totalorder %s23, 1
    %p293 = scmp.ne.s32.totalorder %s288, %s290
    %p294 = scmp.eq.s32.totalorder %s23, 0
    %p295 = por %p293, %p294
    %p296 = scmp.ne.s32.totalorder %s288, %s290
    %p297 = scmp.eq.s32.totalorder %s28, 1
    %p298 = por %p296, %p297
    %p299 = scmp.ne.s32.totalorder %s290, %s291
    %p300 = scmp.eq.s32.totalorder %s28, 0
    %p301 = por %p299, %p300
    %p302 = scmp.ne.s32.totalorder %s290, %s291
    %p303 = scmp.eq.s32.totalorder %s29, 1
    %p304 = por %p302, %p303
    %p306 = scmp.ne.s32.totalorder %s291, %s305
    %p307 = scmp.eq.s32.totalorder %s29, 0
    %p308 = por %p306, %p307
    %s310 = sadd.s32 %s309, 1
    %p313 = scmp.eq.s32.totalorder %s23, 1
    %p314 = scmp.ne.s32.totalorder %s309, %s311
    %p315 = scmp.eq.s32.totalorder %s23, 0
    %p316 = por %p314, %p315
    %p317 = scmp.ne.s32.totalorder %s309, %s311
    %p318 = scmp.eq.s32.totalorder %s28, 1
    %p319 = por %p317, %p318
    %p320 = scmp.ne.s32.totalorder %s311, %s312
    %p321 = scmp.eq.s32.totalorder %s28, 0
    %p322 = por %p320, %p321
    %p323 = scmp.ne.s32.totalorder %s311, %s312
    %p324 = scmp.eq.s32.totalorder %s29, 1
    %p325 = por %p323, %p324
    %p327 = scmp.ne.s32.totalorder %s312, %s326
    %p328 = scmp.eq.s32.totalorder %s29, 0
    %p329 = por %p327, %p328
    %s331 = sadd.s32 %s330, 1
    %p334 = scmp.eq.s32.totalorder %s23, 1
    %p335 = scmp.ne.s32.totalorder %s330, %s332
    %p336 = scmp.eq.s32.totalorder %s23, 0
    %p337 = por %p335, %p336
    %p338 = scmp.ne.s32.totalorder %s330, %s332
    %p339 = scmp.eq.s32.totalorder %s28, 1
    %p340 = por %p338, %p339
    %p341 = scmp.ne.s32.totalorder %s332, %s333
    %p342 = scmp.eq.s32.totalorder %s28, 0
    %p343 = por %p341, %p342
    %p344 = scmp.ne.s32.totalorder %s332, %s333
    %p345 = scmp.eq.s32.totalorder %s29, 1
    %p346 = por %p344, %p345
    %p348 = scmp.ne.s32.totalorder %s333, %s347
    %p349 = scmp.eq.s32.totalorder %s29, 0
    %p350 = por %p348, %p349
    %s352 = sadd.s32 %s351, 1
    %p355 = scmp.eq.s32.totalorder %s23, 1
    %p356 = scmp.ne.s32.totalorder %s351, %s353
    %p357 = scmp.eq.s32.totalorder %s23, 0
    %p358 = por %p356, %p357
    %p359 = scmp.ne.s32.totalorder %s351, %s353
    %p360 = scmp.eq.s32.totalorder %s28, 1
    %p361 = por %p359, %p360
    %p362 = scmp.ne.s32.totalorder %s353, %s354
    %p363 = scmp.eq.s32.totalorder %s28, 0
    %p364 = por %p362, %p363
    %p365 = scmp.ne.s32.totalorder %s353, %s354
    %p366 = scmp.eq.s32.totalorder %s29, 1
    %p367 = por %p365, %p366
    %p369 = scmp.ne.s32.totalorder %s354, %s368
    %p370 = scmp.eq.s32.totalorder %s29, 0
    %p371 = por %p369, %p370
    %s373 = sadd.s32 %s372, 1
    %p376 = scmp.eq.s32.totalorder %s23, 1
    %p377 = scmp.ne.s32.totalorder %s372, %s374
    %p378 = scmp.eq.s32.totalorder %s23, 0
    %p379 = por %p377, %p378
    %p380 = scmp.ne.s32.totalorder %s372, %s374
    %p381 = scmp.eq.s32.totalorder %s28, 1
    %p382 = por %p380, %p381
    %p383 = scmp.ne.s32.totalorder %s374, %s375
    %p384 = scmp.eq.s32.totalorder %s28, 0
    %p385 = por %p383, %p384
    %p386 = scmp.ne.s32.totalorder %s374, %s375
    %p387 = scmp.eq.s32.totalorder %s29, 1
    %p388 = por %p386, %p387
    %p390 = scmp.ne.s32.totalorder %s375, %s389
    %p391 = scmp.eq.s32.totalorder %s29, 0
    %p392 = por %p390, %p391
    %s393 = ssub.s32 %s23, %s30
    %p394 = scmp.eq.s32.totalorder %s393, 0
    %s396 = sadd.s32 %s395, 1
    %s397 = scalar_select %p394, %s395, %s396
    %p400 = pneg %p394
    %p401 = scmp.eq.s32.totalorder %s23, 1
    %p402 = por %p400, %p401
    %p403 = scmp.ne.s32.totalorder %s395, %s398
    %p404 = scmp.eq.s32.totalorder %s23, 0
    %p405 = por %p403, %p404
    %p406 = scmp.ne.s32.totalorder %s395, %s398
    %p407 = scmp.eq.s32.totalorder %s28, 1
    %p408 = por %p406, %p407
    %p409 = scmp.ne.s32.totalorder %s398, %s399
    %p410 = scmp.eq.s32.totalorder %s28, 0
    %p411 = por %p409, %p410
    %p412 = scmp.ne.s32.totalorder %s398, %s399
    %p413 = scmp.eq.s32.totalorder %s29, 1
    %p414 = por %p412, %p413
    %p416 = scmp.ne.s32.totalorder %s399, %s415
    %p417 = scmp.eq.s32.totalorder %s29, 0
    %p418 = por %p416, %p417
    %p419 = scmp.le.s32.totalorder 1, %s23
    %p420 = scmp.lt.s32.totalorder %s23, 3
    %p421 = pnand %p419, %p420
    %p422 = pneg %p421
    // Predicated region
    $region9: #{tpu_custom_call.1} parent=5 // pred_check
      _
    $region10: #{tpu_custom_call.1} parent=5 // pred_check_branch
      %424 = sbr.rel (%p421) target = $region12
    $region11: #{tpu_custom_call.1} parent=5 // pred_region
      %s425 = ssub.s32 %s23, 1
      // Predicated region
      $region13: #{tpu_custom_call.1} parent=11 // pred_check
        %p426 = pneg %p70
      $region14: #{tpu_custom_call.1} parent=11 // pred_check_branch
        %428 = sbr.rel (%p426) target = $region16
      $region15: #{tpu_custom_call.1} parent=11 // pred_region
        _
      $region16: #{tpu_custom_call.1} parent=11 // pred_fallthru
        _
      // Predicated region
      $region17: #{tpu_custom_call.1} parent=11 // pred_check
        %p429 = pneg %p91
      $region18: #{tpu_custom_call.1} parent=11 // pred_check_branch
        %431 = sbr.rel (%p429) target = $region20
      $region19: #{tpu_custom_call.1} parent=11 // pred_region
        _
      $region20: #{tpu_custom_call.1} parent=11 // pred_fallthru
        _
      // Predicated region
      $region21: #{tpu_custom_call.1} parent=11 // pred_check
        %p432 = pneg %p112
      $region22: #{tpu_custom_call.1} parent=11 // pred_check_branch
        %434 = sbr.rel (%p432) target = $region24
      $region23: #{tpu_custom_call.1} parent=11 // pred_region
        _
      $region24: #{tpu_custom_call.1} parent=11 // pred_fallthru
        _
      // Predicated region
      $region25: #{tpu_custom_call.1} parent=11 // pred_check
        %p435 = pneg %p133
      $region26: #{tpu_custom_call.1} parent=11 // pred_check_branch
        %437 = sbr.rel (%p435) target = $region28
      $region27: #{tpu_custom_call.1} parent=11 // pred_region
        _
      $region28: #{tpu_custom_call.1} parent=11 // pred_fallthru
        _
      // Predicated region
      $region29: #{tpu_custom_call.1} parent=11 // pred_check
        %p438 = pneg %p154
      $region30: #{tpu_custom_call.1} parent=11 // pred_check_branch
        %440 = sbr.rel (%p438) target = $region32
      $region31: #{tpu_custom_call.1} parent=11 // pred_region
        _
      $region32: #{tpu_custom_call.1} parent=11 // pred_fallthru
        _
      // Predicated region
      $region33: #{tpu_custom_call.1} parent=11 // pred_check
        %p441 = pneg %p175
      $region34: #{tpu_custom_call.1} parent=11 // pred_check_branch
        %443 = sbr.rel (%p441) target = $region36
      $region35: #{tpu_custom_call.1} parent=11 // pred_region
        _
      $region36: #{tpu_custom_call.1} parent=11 // pred_fallthru
        _
      // Predicated region
      $region37: #{tpu_custom_call.1} parent=11 // pred_check
        %p444 = pneg %p196
      $region38: #{tpu_custom_call.1} parent=11 // pred_check_branch
        %446 = sbr.rel (%p444) target = $region40
      $region39: #{tpu_custom_call.1} parent=11 // pred_region
        _
      $region40: #{tpu_custom_call.1} parent=11 // pred_fallthru
        _
      // Predicated region
      $region41: #{tpu_custom_call.1} parent=11 // pred_check
        %p447 = pneg %p217
      $region42: #{tpu_custom_call.1} parent=11 // pred_check_branch
        %449 = sbr.rel (%p447) target = $region44
      $region43: #{tpu_custom_call.1} parent=11 // pred_region
        _
      $region44: #{tpu_custom_call.1} parent=11 // pred_fallthru
        _
      // Predicated region
      $region45: #{tpu_custom_call.1} parent=11 // pred_check
        %p450 = pneg %p238
      $region46: #{tpu_custom_call.1} parent=11 // pred_check_branch
        %452 = sbr.rel (%p450) target = $region48
      $region47: #{tpu_custom_call.1} parent=11 // pred_region
        _
      $region48: #{tpu_custom_call.1} parent=11 // pred_fallthru
        _
      // Predicated region
      $region49: #{tpu_custom_call.1} parent=11 // pred_check
        %p453 = pneg %p259
      $region50: #{tpu_custom_call.1} parent=11 // pred_check_branch
        %455 = sbr.rel (%p453) target = $region52
      $region51: #{tpu_custom_call.1} parent=11 // pred_region
        _
      $region52: #{tpu_custom_call.1} parent=11 // pred_fallthru
        _
      // Predicated region
      $region53: #{tpu_custom_call.1} parent=11 // pred_check
        %p456 = pneg %p280
      $region54: #{tpu_custom_call.1} parent=11 // pred_check_branch
        %458 = sbr.rel (%p456) target = $region56
      $region55: #{tpu_custom_call.1} parent=11 // pred_region
        _
      $region56: #{tpu_custom_call.1} parent=11 // pred_fallthru
        _
      // Predicated region
      $region57: #{tpu_custom_call.1} parent=11 // pred_check
        %p459 = pneg %p301
      $region58: #{tpu_custom_call.1} parent=11 // pred_check_branch
        %461 = sbr.rel (%p459) target = $region60
      $region59: #{tpu_custom_call.1} parent=11 // pred_region
        _
      $region60: #{tpu_custom_call.1} parent=11 // pred_fallthru
        _
      // Predicated region
      $region61: #{tpu_custom_call.1} parent=11 // pred_check
        %p462 = pneg %p322
      $region62: #{tpu_custom_call.1} parent=11 // pred_check_branch
        %464 = sbr.rel (%p462) target = $region64
      $region63: #{tpu_custom_call.1} parent=11 // pred_region
        _
      $region64: #{tpu_custom_call.1} parent=11 // pred_fallthru
        _
      // Predicated region
      $region65: #{tpu_custom_call.1} parent=11 // pred_check
        %p465 = pneg %p343
      $region66: #{tpu_custom_call.1} parent=11 // pred_check_branch
        %467 = sbr.rel (%p465) target = $region68
      $region67: #{tpu_custom_call.1} parent=11 // pred_region
        _
      $region68: #{tpu_custom_call.1} parent=11 // pred_fallthru
        _
      // Predicated region
      $region69: #{tpu_custom_call.1} parent=11 // pred_check
        %p468 = pneg %p364
      $region70: #{tpu_custom_call.1} parent=11 // pred_check_branch
        %470 = sbr.rel (%p468) target = $region72
      $region71: #{tpu_custom_call.1} parent=11 // pred_region
        _
      $region72: #{tpu_custom_call.1} parent=11 // pred_fallthru
        _
      // Predicated region
      $region73: #{tpu_custom_call.1} parent=11 // pred_check
        %p471 = pneg %p385
      $region74: #{tpu_custom_call.1} parent=11 // pred_check_branch
        %473 = sbr.rel (%p471) target = $region76
      $region75: #{tpu_custom_call.1} parent=11 // pred_region
        _
      $region76: #{tpu_custom_call.1} parent=11 // pred_fallthru
        _
    $region12: #{tpu_custom_call.1} parent=5 // pred_fallthru
      _
    %p474 = scmp.lt.s32.totalorder %s23, 2
    // Predicated region
    $region77: #{tpu_custom_call.1} parent=5 // pred_check
      %p475 = pneg %p474
    $region78: #{tpu_custom_call.1} parent=5 // pred_check_branch
      %477 = sbr.rel (%p475) target = $region80
    $region79: #{tpu_custom_call.1} parent=5 // pred_region
      // Predicated region
      $region81: #{tpu_custom_call.1} parent=79 // pred_check
        %p478 = pneg %p43
      $region82: #{tpu_custom_call.1} parent=79 // pred_check_branch
        %480 = sbr.rel (%p478) target = $region84
      $region83: #{tpu_custom_call.1} parent=79 // pred_region
        %s481 = smul.u32 4, %s23
        %p482 = scmp.lt.s32.totalorder %s481, 7
        %s483 = scalar_select %p482, %s481, 7
        %s484 = smul.addr %s483, 8
        %s485 = scalar_lea.vmem %s0, %s484
        %s486 = smul.u32 4, %s23
      $region84: #{tpu_custom_call.1} parent=79 // pred_fallthru
        _
    $region80: #{tpu_custom_call.1} parent=5 // pred_fallthru
      _
    %p487 = scmp.le.s32.totalorder 1, %s23
    %p488 = scmp.lt.s32.totalorder %s23, 3
    %p489 = pnand %p487, %p488
    %p490 = pneg %p489
    // Predicated region
    $region85: #{tpu_custom_call.1} parent=5 // pred_check
      _
    $region86: #{tpu_custom_call.1} parent=5 // pred_check_branch
      %492 = sbr.rel (%p489) target = $region88
    $region87: #{tpu_custom_call.1} parent=5 // pred_region
      %s493 = ssub.s32 %s23, 1
      %s494 = smul.u32 4, %s28
      %p495 = scmp.lt.s32.totalorder %s494, 7
      %s496 = scalar_select %p495, %s494, 7
      %s497 = smul.addr %s496, 8
      %s498 = scalar_lea.vmem %s0, %s497
      %p499 = pneg %p49
      %p500 = pneg %p46
      %p501 = pneg %p70
      %p502 = pneg %p67
      %p503 = pneg %p91
      %p504 = pneg %p88
      %p505 = pneg %p112
      %p506 = pneg %p109
      %p507 = pneg %p133
      %p508 = pneg %p130
      %p509 = pneg %p154
      %p510 = pneg %p151
      %p511 = pneg %p175
      %p512 = pneg %p172
      %p513 = pneg %p196
      %p514 = pneg %p193
      %p515 = pneg %p217
      %p516 = pneg %p214
      %p517 = pneg %p238
      %p518 = pneg %p235
      %p519 = pneg %p259
      %p520 = pneg %p256
      %p521 = pneg %p280
      %p522 = pneg %p277
      %p523 = pneg %p301
      %p524 = pneg %p298
      %p525 = pneg %p322
      %p526 = pneg %p319
      %p527 = pneg %p343
      %p528 = pneg %p340
      %p529 = pneg %p364
      %p530 = pneg %p361
      %p531 = pneg %p385
      %p532 = pneg %p382
      %p533 = pneg %p411
      %p534 = pneg %p408
      %s535 = smul.u32 4, %s28
      %p536 = scmp.lt.s32.totalorder %s535, 7
      %s537 = scalar_select %p536, %s535, 7
      %s538 = smul.addr %s537, 8
      %s539 = scalar_lea.vmem %s17, %s538
      %s540 = smul.u32 4, %s28
      %p541 = scmp.lt.s32.totalorder %s540, 7
      %s542 = scalar_select %p541, %s540, 7
      %s543 = smul.addr %s542, 8
      %s544 = scalar_lea.vmem %s0, %s543
      %s545 = smul.u32 4, %s28
      %s546 = smul.u32 4, %s28
      %p547 = scmp.lt.s32.totalorder %s546, 7
      %s548 = scalar_select %p547, %s546, 7
      %s549 = smul.addr %s548, 8
      %s550 = scalar_lea.vmem %s17, %s549
      %s551 = smul.u32 4, %s28
      %v552 = vld [vmem:[%s544] sm:$0xff]
      %v553 = vld [vmem:[%s544 + $0x8] sm:$0xff]
      %v554 = vld [vmem:[%s544 + $0x10] sm:$0xff]
      %v555 = vld [vmem:[%s544 + $0x18] sm:$0xff]
      %v556 = vld [vmem:[%s1] sm:$0xff]
      %v557 = vld [vmem:[%s1 + $0x8] sm:$0xff]
      %v558 = vld [vmem:[%s1 + $0x10] sm:$0xff]
      %v559 = vld [vmem:[%s1 + $0x18] sm:$0xff]
      %v560 = vld [vmem:[%s2] sm:$0x1]
      %v562 = vlaneseq
      %v563 = vshrl.u32 %v562, 7
      %v564 = vsub.s32 0, %v563
      %v565 = vrot.slane %v560, %v564
      %vm567 = vcmask 261120
      %v569 = vsel %vm567, %v552, 0
      %v572 = vsel %vm567, %v553, 0
      %v575 = vsel %vm567, %v554, 0
      %v578 = vsel %vm567, %v555, 0
      %580 = vmatprep.subr.mxu0 0.0
      %581 = vmatpush1.msra.mxu0 %v556
      %582 = vmatprep.subr.mxu0 0.0
      %583 = vmatpush1.msra.mxu0 %v557
      %584 = vmatprep.subr.mxu0 0.0
      %585 = vmatpush1.msra.mxu0 %v558
      %586 = vmatprep.subr.mxu0 0.0
      %587 = vmatpush1.msra.mxu0 %v559
      %588 = vmatprep.subr.mxu0 0.0
      %589 = vmatpush1.msra.mxu0 0.0
      %590 = vmatprep.subr.mxu0 0.0
      %591 = vmatpush1.msra.mxu0 0.0
      %592 = vmatprep.subr.mxu0 0.0
      %593 = vmatpush1.msra.mxu0 0.0
      %594 = vmatprep.subr.mxu0 0.0
      %595 = vmatpush1.msra.mxu0 0.0
      %596 = vmatprep.subr.mxu0 0.0
      %597 = vmatpush1.msra.mxu0 0.0
      %598 = vmatprep.subr.mxu0 0.0
      %599 = vmatpush1.msra.mxu0 0.0
      %600 = vmatprep.subr.mxu0 0.0
      %601 = vmatpush1.msra.mxu0 0.0
      %602 = vmatprep.subr.mxu0 0.0
      %603 = vmatpush1.msra.mxu0 0.0
      %604 = vmatprep.subr.mxu0 0.0
      %605 = vmatpush1.msra.mxu0 0.0
      %606 = vmatprep.subr.mxu0 0.0
      %607 = vmatpush1.msra.mxu0 0.0
      %608 = vmatprep.subr.mxu0 0.0
      %609 = vmatpush1.msra.mxu0 0.0
      %610 = vmatprep.subr.mxu0 0.0
      %611 = vmatpush1.msra.mxu0 0.0
      %612 = vmatprep.subr.mxu0 0.0
      %613 = vmatpush1.msra.mxu0 0.0
      %614 = vmatprep.subr.mxu0 0.0
      %615 = vmatpush1.msra.mxu0 0.0
      %616 = vmatprep.subr.mxu0 0.0
      %617 = vmatpush1.msra.mxu0 0.0
      %618 = vmatprep.subr.mxu0 0.0
      %619 = vmatpush1.msra.mxu0 0.0
      %620 = vmatprep.subr.mxu0 0.0
      %621 = vmatpush1.msra.mxu0 0.0
      %622 = vmatprep.subr.mxu0 0.0
      %623 = vmatpush1.msra.mxu0 0.0
      %624 = vmatprep.subr.mxu0 0.0
      %625 = vmatpush1.msra.mxu0 0.0
      %626 = vmatprep.subr.mxu0 0.0
      %627 = vmatpush1.msra.mxu0 0.0
      %628 = vmatprep.subr.mxu0 0.0
      %629 = vmatpush1.msra.mxu0 0.0
      %630 = vmatprep.subr.mxu0 0.0
      %631 = vmatpush1.msra.mxu0 0.0
      %632 = vmatprep.subr.mxu0 0.0
      %633 = vmatpush1.msra.mxu0 0.0
      %634 = vmatprep.subr.mxu0 0.0
      %635 = vmatpush1.msra.mxu0 0.0
      %636 = vmatprep.subr.mxu0 0.0
      %637 = vmatpush1.msra.mxu0 0.0
      %638 = vmatprep.subr.mxu0 0.0
      %639 = vmatpush1.msra.mxu0 0.0
      %640 = vmatprep.subr.mxu0 0.0
      %641 = vmatpush1.msra.mxu0 0.0
      %642 = vmatprep.subr.mxu0 0.0
      %643 = vmatpush1.msra.mxu0 0.0
      %644 = vmatprep.mubr.f32.mxu0 0.0
      %645 = vmatmul.mubr.f32.gmra.mrb[0].mxu0 %v569
      %v646 = vpop.f32.mrb[0].mxu0
      %v647 = vadd.f32 %v565, %v646
      %v648 = vpop.f32.mrb[0].mxu0
      %649 = vmatprep.mubr.f32.mxu0 0.0
      %650 = vmatmul.mubr.f32.gmra.mrb[0].mxu0 %v572
      %v651 = vpop.f32.mrb[0].mxu0
      %v652 = vadd.f32 %v565, %v651
      %v653 = vpop.f32.mrb[0].mxu0
      %654 = vmatprep.mubr.f32.mxu0 0.0
      %655 = vmatmul.mubr.f32.gmra.mrb[0].mxu0 %v575
      %v656 = vpop.f32.mrb[0].mxu0
      %v657 = vadd.f32 %v565, %v656
      %v658 = vpop.f32.mrb[0].mxu0
      %659 = vmatprep.mubr.f32.mxu0 0.0
      %660 = vmatmul.mubr.f32.gmra.mrb[0].mxu0 %v578
      %v661 = vpop.f32.mrb[0].mxu0
      %v662 = vadd.f32 %v565, %v661
      %v663 = vpop.f32.mrb[0].mxu0
      %664 = vdwg.mxu0
      %v665 = vld [vmem:[%s3] sm:$0xff]
      %v666 = vld [vmem:[%s3 + $0x8] sm:$0xff]
      %v667 = vld [vmem:[%s3 + $0x10] sm:$0xff]
      %v668 = vld [vmem:[%s3 + $0x18] sm:$0xff]
      %v669 = vld [vmem:[%s4] sm:$0x1]
      %v671 = vlaneseq
      %v672 = vshrl.u32 %v671, 7
      %v673 = vsub.s32 0, %v672
      %v674 = vrot.slane %v669, %v673
      %676 = vmatprep.subr.mxu0 0.0
      %677 = vmatpush1.msra.mxu0 %v665
      %678 = vmatprep.subr.mxu0 0.0
      %679 = vmatpush1.msra.mxu0 %v666
      %680 = vmatprep.subr.mxu0 0.0
      %681 = vmatpush1.msra.mxu0 %v667
      %682 = vmatprep.subr.mxu0 0.0
      %683 = vmatpush1.msra.mxu0 %v668
      %684 = vmatprep.subr.mxu0 0.0
      %685 = vmatpush1.msra.mxu0 0.0
      %686 = vmatprep.subr.mxu0 0.0
      %687 = vmatpush1.msra.mxu0 0.0
      %688 = vmatprep.subr.mxu0 0.0
      %689 = vmatpush1.msra.mxu0 0.0
      %690 = vmatprep.subr.mxu0 0.0
      %691 = vmatpush1.msra.mxu0 0.0
      %692 = vmatprep.subr.mxu0 0.0
      %693 = vmatpush1.msra.mxu0 0.0
      %694 = vmatprep.subr.mxu0 0.0
      %695 = vmatpush1.msra.mxu0 0.0
      %696 = vmatprep.subr.mxu0 0.0
      %697 = vmatpush1.msra.mxu0 0.0
      %698 = vmatprep.subr.mxu0 0.0
      %699 = vmatpush1.msra.mxu0 0.0
      %700 = vmatprep.subr.mxu0 0.0
      %701 = vmatpush1.msra.mxu0 0.0
      %702 = vmatprep.subr.mxu0 0.0
      %703 = vmatpush1.msra.mxu0 0.0
      %704 = vmatprep.subr.mxu0 0.0
      %705 = vmatpush1.msra.mxu0 0.0
      %706 = vmatprep.subr.mxu0 0.0
      %707 = vmatpush1.msra.mxu0 0.0
      %708 = vmatprep.subr.mxu0 0.0
      %709 = vmatpush1.msra.mxu0 0.0
      %710 = vmatprep.subr.mxu0 0.0
      %711 = vmatpush1.msra.mxu0 0.0
      %712 = vmatprep.subr.mxu0 0.0
      %713 = vmatpush1.msra.mxu0 0.0
      %714 = vmatprep.subr.mxu0 0.0
      %715 = vmatpush1.msra.mxu0 0.0
      %716 = vmatprep.subr.mxu0 0.0
      %717 = vmatpush1.msra.mxu0 0.0
      %718 = vmatprep.subr.mxu0 0.0
      %719 = vmatpush1.msra.mxu0 0.0
      %720 = vmatprep.subr.mxu0 0.0
      %721 = vmatpush1.msra.mxu0 0.0
      %722 = vmatprep.subr.mxu0 0.0
      %723 = vmatpush1.msra.mxu0 0.0
      %724 = vmatprep.subr.mxu0 0.0
      %725 = vmatpush1.msra.mxu0 0.0
      %726 = vmatprep.subr.mxu0 0.0
      %727 = vmatpush1.msra.mxu0 0.0
      %728 = vmatprep.subr.mxu0 0.0
      %729 = vmatpush1.msra.mxu0 0.0
      %730 = vmatprep.subr.mxu0 0.0
      %731 = vmatpush1.msra.mxu0 0.0
      %732 = vmatprep.subr.mxu0 0.0
      %733 = vmatpush1.msra.mxu0 0.0
      %734 = vmatprep.subr.mxu0 0.0
      %735 = vmatpush1.msra.mxu0 0.0
      %736 = vmatprep.subr.mxu0 0.0
      %737 = vmatpush1.msra.mxu0 0.0
      %738 = vmatprep.subr.mxu0 0.0
      %739 = vmatpush1.msra.mxu0 0.0
      %740 = vmatprep.mubr.f32.mxu0 0.0
      %741 = vmatmul.mubr.f32.gmra.mrb[0].mxu0 %v569
      %v742 = vpop.f32.mrb[0].mxu0
      %v743 = vadd.f32 %v674, %v742
      %v744 = vpop.f32.mrb[0].mxu0
      %745 = vmatprep.mubr.f32.mxu0 0.0
      %746 = vmatmul.mubr.f32.gmra.mrb[0].mxu0 %v572
      %v747 = vpop.f32.mrb[0].mxu0
      %v748 = vadd.f32 %v674, %v747
      %v749 = vpop.f32.mrb[0].mxu0
      %750 = vmatprep.mubr.f32.mxu0 0.0
      %751 = vmatmul.mubr.f32.gmra.mrb[0].mxu0 %v575
      %v752 = vpop.f32.mrb[0].mxu0
      %v753 = vadd.f32 %v674, %v752
      %v754 = vpop.f32.mrb[0].mxu0
      %755 = vmatprep.mubr.f32.mxu0 0.0
      %756 = vmatmul.mubr.f32.gmra.mrb[0].mxu0 %v578
      %v757 = vpop.f32.mrb[0].mxu0
      %v758 = vadd.f32 %v674, %v757
      %v759 = vpop.f32.mrb[0].mxu0
      %760 = vdwg.mxu0
      %v761 = vld [vmem:[%s5] sm:$0xff]
      %v762 = vld [vmem:[%s5 + $0x8] sm:$0xff]
      %v763 = vld [vmem:[%s5 + $0x10] sm:$0xff]
      %v764 = vld [vmem:[%s5 + $0x18] sm:$0xff]
      %v765 = vld [vmem:[%s6] sm:$0x1]
      %v767 = vlaneseq
      %v768 = vshrl.u32 %v767, 7
      %v769 = vsub.s32 0, %v768
      %v770 = vrot.slane %v765, %v769
      %772 = vmatprep.subr.mxu0 0.0
      %773 = vmatpush1.msra.mxu0 %v761
      %774 = vmatprep.subr.mxu0 0.0
      %775 = vmatpush1.msra.mxu0 %v762
      %776 = vmatprep.subr.mxu0 0.0
      %777 = vmatpush1.msra.mxu0 %v763
      %778 = vmatprep.subr.mxu0 0.0
      %779 = vmatpush1.msra.mxu0 %v764
      %780 = vmatprep.subr.mxu0 0.0
      %781 = vmatpush1.msra.mxu0 0.0
      %782 = vmatprep.subr.mxu0 0.0
      %783 = vmatpush1.msra.mxu0 0.0
      %784 = vmatprep.subr.mxu0 0.0
      %785 = vmatpush1.msra.mxu0 0.0
      %786 = vmatprep.subr.mxu0 0.0
      %787 = vmatpush1.msra.mxu0 0.0
      %788 = vmatprep.subr.mxu0 0.0
      %789 = vmatpush1.msra.mxu0 0.0
      %790 = vmatprep.subr.mxu0 0.0
      %791 = vmatpush1.msra.mxu0 0.0
      %792 = vmatprep.subr.mxu0 0.0
      %793 = vmatpush1.msra.mxu0 0.0
      %794 = vmatprep.subr.mxu0 0.0
      %795 = vmatpush1.msra.mxu0 0.0
      %796 = vmatprep.subr.mxu0 0.0
      %797 = vmatpush1.msra.mxu0 0.0
      %798 = vmatprep.subr.mxu0 0.0
      %799 = vmatpush1.msra.mxu0 0.0
      %800 = vmatprep.subr.mxu0 0.0
      %801 = vmatpush1.msra.mxu0 0.0
      %802 = vmatprep.subr.mxu0 0.0
      %803 = vmatpush1.msra.mxu0 0.0
      %804 = vmatprep.subr.mxu0 0.0
      %805 = vmatpush1.msra.mxu0 0.0
      %806 = vmatprep.subr.mxu0 0.0
      %807 = vmatpush1.msra.mxu0 0.0
      %808 = vmatprep.subr.mxu0 0.0
      %809 = vmatpush1.msra.mxu0 0.0
      %810 = vmatprep.subr.mxu0 0.0
      %811 = vmatpush1.msra.mxu0 0.0
      %812 = vmatprep.subr.mxu0 0.0
      %813 = vmatpush1.msra.mxu0 0.0
      %814 = vmatprep.subr.mxu0 0.0
      %815 = vmatpush1.msra.mxu0 0.0
      %816 = vmatprep.subr.mxu0 0.0
      %817 = vmatpush1.msra.mxu0 0.0
      %818 = vmatprep.subr.mxu0 0.0
      %819 = vmatpush1.msra.mxu0 0.0
      %820 = vmatprep.subr.mxu0 0.0
      %821 = vmatpush1.msra.mxu0 0.0
      %822 = vmatprep.subr.mxu0 0.0
      %823 = vmatpush1.msra.mxu0 0.0
      %824 = vmatprep.subr.mxu0 0.0
      %825 = vmatpush1.msra.mxu0 0.0
      %826 = vmatprep.subr.mxu0 0.0
      %827 = vmatpush1.msra.mxu0 0.0
      %828 = vmatprep.subr.mxu0 0.0
      %829 = vmatpush1.msra.mxu0 0.0
      %830 = vmatprep.subr.mxu0 0.0
      %831 = vmatpush1.msra.mxu0 0.0
      %832 = vmatprep.subr.mxu0 0.0
      %833 = vmatpush1.msra.mxu0 0.0
      %834 = vmatprep.subr.mxu0 0.0
      %835 = vmatpush1.msra.mxu0 0.0
      %836 = vmatprep.mubr.f32.mxu0 0.0
      %837 = vmatmul.mubr.f32.gmra.mrb[0].mxu0 %v569
      %v838 = vpop.f32.mrb[0].mxu0
      %v839 = vadd.f32 %v770, %v838
      %v840 = vpop.f32.mrb[0].mxu0
      %841 = vmatprep.mubr.f32.mxu0 0.0
      %842 = vmatmul.mubr.f32.gmra.mrb[0].mxu0 %v572
      %v843 = vpop.f32.mrb[0].mxu0
      %v844 = vadd.f32 %v770, %v843
      %v845 = vpop.f32.mrb[0].mxu0
      %846 = vmatprep.mubr.f32.mxu0 0.0
      %847 = vmatmul.mubr.f32.gmra.mrb[0].mxu0 %v575
      %v848 = vpop.f32.mrb[0].mxu0
      %v849 = vadd.f32 %v770, %v848
      %v850 = vpop.f32.mrb[0].mxu0
      %851 = vmatprep.mubr.f32.mxu0 0.0
      %852 = vmatmul.mubr.f32.gmra.mrb[0].mxu0 %v578
      %v853 = vpop.f32.mrb[0].mxu0
      %v854 = vadd.f32 %v770, %v853
      %v855 = vpop.f32.mrb[0].mxu0
      %856 = vdwg.mxu0
      %v857 = vld [vmem:[%s7] sm:$0xff]
      %v858 = vld [vmem:[%s7 + $0x8] sm:$0xff]
      %v859 = vld [vmem:[%s7 + $0x10] sm:$0xff]
      %v860 = vld [vmem:[%s7 + $0x18] sm:$0xff]
      %v861 = vld [vmem:[%s7 + $0x20] sm:$0xff]
      %v862 = vld [vmem:[%s7 + $0x28] sm:$0xff]
      %v863 = vld [vmem:[%s7 + $0x30] sm:$0xff]
      %v864 = vld [vmem:[%s7 + $0x38] sm:$0xff]
      %vm865 = vcmask 130048
      %v867 = vsel %vm865, %v647, 0
      %v870 = vsel %vm865, %v652, 0
      %v873 = vsel %vm865, %v743, 0
      %v876 = vsel %vm865, %v748, 0
      %878 = vmatprep.subr.mxu0 0.0
      %879 = vmatpush1.xpose.msra.mxu0 %v873
      %880 = vmatprep.subr.mxu0 0.0
      %881 = vmatpush1.xpose.msra.mxu0 %v876
      %882 = vmatprep.subr.mxu0 0.0
      %883 = vmatpush1.xpose.msra.mxu0 0.0
      %884 = vmatprep.subr.mxu0 0.0
      %885 = vmatpush1.xpose.msra.mxu0 0.0
      %886 = vmatprep.subr.mxu0 0.0
      %887 = vmatpush1.xpose.msra.mxu0 0.0
      %888 = vmatprep.subr.mxu0 0.0
      %889 = vmatpush1.xpose.msra.mxu0 0.0
      %890 = vmatprep.subr.mxu0 0.0
      %891 = vmatpush1.xpose.msra.mxu0 0.0
      %892 = vmatprep.subr.mxu0 0.0
      %893 = vmatpush1.xpose.msra.mxu0 0.0
      %894 = vmatprep.subr.mxu0 0.0
      %895 = vmatpush1.xpose.msra.mxu0 0.0
      %896 = vmatprep.subr.mxu0 0.0
      %897 = vmatpush1.xpose.msra.mxu0 0.0
      %898 = vmatprep.subr.mxu0 0.0
      %899 = vmatpush1.xpose.msra.mxu0 0.0
      %900 = vmatprep.subr.mxu0 0.0
      %901 = vmatpush1.xpose.msra.mxu0 0.0
      %902 = vmatprep.subr.mxu0 0.0
      %903 = vmatpush1.xpose.msra.mxu0 0.0
      %904 = vmatprep.subr.mxu0 0.0
      %905 = vmatpush1.xpose.msra.mxu0 0.0
      %906 = vmatprep.subr.mxu0 0.0
      %907 = vmatpush1.xpose.msra.mxu0 0.0
      %908 = vmatprep.subr.mxu0 0.0
      %909 = vmatpush1.xpose.msra.mxu0 0.0
      %910 = vmatprep.subr.mxu0 0.0
      %911 = vmatpush1.xpose.msra.mxu0 0.0
      %912 = vmatprep.subr.mxu0 0.0
      %913 = vmatpush1.xpose.msra.mxu0 0.0
      %914 = vmatprep.subr.mxu0 0.0
      %915 = vmatpush1.xpose.msra.mxu0 0.0
      %916 = vmatprep.subr.mxu0 0.0
      %917 = vmatpush1.xpose.msra.mxu0 0.0
      %918 = vmatprep.subr.mxu0 0.0
      %919 = vmatpush1.xpose.msra.mxu0 0.0
      %920 = vmatprep.subr.mxu0 0.0
      %921 = vmatpush1.xpose.msra.mxu0 0.0
      %922 = vmatprep.subr.mxu0 0.0
      %923 = vmatpush1.xpose.msra.mxu0 0.0
      %924 = vmatprep.subr.mxu0 0.0
      %925 = vmatpush1.xpose.msra.mxu0 0.0
      %926 = vmatprep.subr.mxu0 0.0
      %927 = vmatpush1.xpose.msra.mxu0 0.0
      %928 = vmatprep.subr.mxu0 0.0
      %929 = vmatpush1.xpose.msra.mxu0 0.0
      %930 = vmatprep.subr.mxu0 0.0
      %931 = vmatpush1.xpose.msra.mxu0 0.0
      %932 = vmatprep.subr.mxu0 0.0
      %933 = vmatpush1.xpose.msra.mxu0 0.0
      %934 = vmatprep.subr.mxu0 0.0
      %935 = vmatpush1.xpose.msra.mxu0 0.0
      %936 = vmatprep.subr.mxu0 0.0
      %937 = vmatpush1.xpose.msra.mxu0 0.0
      %938 = vmatprep.subr.mxu0 0.0
      %939 = vmatpush1.xpose.msra.mxu0 0.0
      %940 = vmatprep.subr.mxu0 0.0
      %941 = vmatpush1.xpose.msra.mxu0 0.0
      %942 = vmatprep.mubr.f32.mxu0 0.0
      %943 = vmatmul.mubr.f32.gmra.mrb[0].mxu0 %v867
      %v944 = vpop.f32.mrb[0].mxu0
      %v945 = vadd.f32 0.0, %v944
      %v946 = vpop.f32.mrb[0].mxu0
      %947 = vmatprep.mubr.f32.mxu0 0.0
      %948 = vmatmul.mubr.f32.gmra.mrb[0].mxu0 %v870
      %v949 = vpop.f32.mrb[0].mxu0
      %v950 = vadd.f32 0.0, %v949
      %v951 = vpop.f32.mrb[0].mxu0
      %952 = vdwg.mxu0
      %v954 = vsel %vm865, %v657, 0
      %v957 = vsel %vm865, %v662, 0
      %v960 = vsel %vm865, %v753, 0
      %v963 = vsel %vm865, %v758, 0
      %965 = vmatprep.subr.mxu0 0.0
      %966 = vmatpush1.xpose.msra.mxu0 %v960
      %967 = vmatprep.subr.mxu0 0.0
      %968 = vmatpush1.xpose.msra.mxu0 %v963
      %969 = vmatprep.subr.mxu0 0.0
      %970 = vmatpush1.xpose.msra.mxu0 0.0
      %971 = vmatprep.subr.mxu0 0.0
      %972 = vmatpush1.xpose.msra.mxu0 0.0
      %973 = vmatprep.subr.mxu0 0.0
      %974 = vmatpush1.xpose.msra.mxu0 0.0
      %975 = vmatprep.subr.mxu0 0.0
      %976 = vmatpush1.xpose.msra.mxu0 0.0
      %977 = vmatprep.subr.mxu0 0.0
      %978 = vmatpush1.xpose.msra.mxu0 0.0
      %979 = vmatprep.subr.mxu0 0.0
      %980 = vmatpush1.xpose.msra.mxu0 0.0
      %981 = vmatprep.subr.mxu0 0.0
      %982 = vmatpush1.xpose.msra.mxu0 0.0
      %983 = vmatprep.subr.mxu0 0.0
      %984 = vmatpush1.xpose.msra.mxu0 0.0
      %985 = vmatprep.subr.mxu0 0.0
      %986 = vmatpush1.xpose.msra.mxu0 0.0
      %987 = vmatprep.subr.mxu0 0.0
      %988 = vmatpush1.xpose.msra.mxu0 0.0
      %989 = vmatprep.subr.mxu0 0.0
      %990 = vmatpush1.xpose.msra.mxu0 0.0
      %991 = vmatprep.subr.mxu0 0.0
      %992 = vmatpush1.xpose.msra.mxu0 0.0
      %993 = vmatprep.subr.mxu0 0.0
      %994 = vmatpush1.xpose.msra.mxu0 0.0
      %995 = vmatprep.subr.mxu0 0.0
      %996 = vmatpush1.xpose.msra.mxu0 0.0
      %997 = vmatprep.subr.mxu0 0.0
      %998 = vmatpush1.xpose.msra.mxu0 0.0
      %999 = vmatprep.subr.mxu0 0.0
      %1000 = vmatpush1.xpose.msra.mxu0 0.0
      %1001 = vmatprep.subr.mxu0 0.0
      %1002 = vmatpush1.xpose.msra.mxu0 0.0
      %1003 = vmatprep.subr.mxu0 0.0
      %1004 = vmatpush1.xpose.msra.mxu0 0.0
      %1005 = vmatprep.subr.mxu0 0.0
      %1006 = vmatpush1.xpose.msra.mxu0 0.0
      %1007 = vmatprep.subr.mxu0 0.0
      %1008 = vmatpush1.xpose.msra.mxu0 0.0
      %1009 = vmatprep.subr.mxu0 0.0
      %1010 = vmatpush1.xpose.msra.mxu0 0.0
      %1011 = vmatprep.subr.mxu0 0.0
      %1012 = vmatpush1.xpose.msra.mxu0 0.0
      %1013 = vmatprep.subr.mxu0 0.0
      %1014 = vmatpush1.xpose.msra.mxu0 0.0
      %1015 = vmatprep.subr.mxu0 0.0
      %1016 = vmatpush1.xpose.msra.mxu0 0.0
      %1017 = vmatprep.subr.mxu0 0.0
      %1018 = vmatpush1.xpose.msra.mxu0 0.0
      %1019 = vmatprep.subr.mxu0 0.0
      %1020 = vmatpush1.xpose.msra.mxu0 0.0
      %1021 = vmatprep.subr.mxu0 0.0
      %1022 = vmatpush1.xpose.msra.mxu0 0.0
      %1023 = vmatprep.subr.mxu0 0.0
      %1024 = vmatpush1.xpose.msra.mxu0 0.0
      %1025 = vmatprep.subr.mxu0 0.0
      %1026 = vmatpush1.xpose.msra.mxu0 0.0
      %1027 = vmatprep.subr.mxu0 0.0
      %1028 = vmatpush1.xpose.msra.mxu0 0.0
      %1029 = vmatprep.mubr.f32.mxu0 0.0
      %1030 = vmatmul.mubr.f32.gmra.mrb[0].mxu0 %v954
      %v1031 = vpop.f32.mrb[0].mxu0
      %v1032 = vadd.f32 0.0, %v1031
      %v1033 = vpop.f32.mrb[0].mxu0
      %1034 = vmatprep.mubr.f32.mxu0 0.0
      %1035 = vmatmul.mubr.f32.gmra.mrb[0].mxu0 %v957
      %v1036 = vpop.f32.mrb[0].mxu0
      %v1037 = vadd.f32 0.0, %v1036
      %v1038 = vpop.f32.mrb[0].mxu0
      %1039 = vdwg.mxu0
      %v1040 = vsel %vm865, %v945, -inf
      %1041 = vmax.xlane.f32.xlu0 %v1040
      %v1042 = vpop.xlane.xlu0 %1041
      %v1043 = vsel %vm865, %v950, -inf
      %1044 = vmax.xlane.f32.xlu0 %v1043
      %v1045 = vpop.xlane.xlu0 %1044
      %v1046 = vsel %vm865, %v1032, -inf
      %1047 = vmax.xlane.f32.xlu0 %v1046
      %v1048 = vpop.xlane.xlu0 %1047
      %v1049 = vsel %vm865, %v1037, -inf
      %1050 = vmax.xlane.f32.xlu0 %v1049
      %v1051 = vpop.xlane.xlu0 %1050
      %v1052 = vsub.f32 %v945, %v1042
      %v1053 = vsub.f32 %v950, %v1045
      %v1054 = vsub.f32 %v1032, %v1048
      %v1055 = vsub.f32 %v1037, %v1051
      %v1056 = vmul.f32 %v1052, 1.442695
      %v1057 = vpow.pop %v1056
      %v1058 = vmul.f32 %v1053, 1.442695
      %v1059 = vpow.pop %v1058
      %v1060 = vmul.f32 %v1054, 1.442695
      %v1061 = vpow.pop %v1060
      %v1062 = vmul.f32 %v1055, 1.442695
      %v1063 = vpow.pop %v1062
      %v1064 = vsel %vm865, %v1057, 0.0
      %1065 = vadd.xlane.f32.xlu0 %v1064
      %v1066 = vpop.xlane.xlu0 %1065
      %v1067 = vsel %vm865, %v1059, 0.0
      %1068 = vadd.xlane.f32.xlu0 %v1067
      %v1069 = vpop.xlane.xlu0 %1068
      %v1070 = vsel %vm865, %v1061, 0.0
      %1071 = vadd.xlane.f32.xlu0 %v1070
      %v1072 = vpop.xlane.xlu0 %1071
      %v1073 = vsel %vm865, %v1063, 0.0
      %1074 = vadd.xlane.f32.xlu0 %v1073
      %v1075 = vpop.xlane.xlu0 %1074
      %v1076 = vrcp.pop %v1066
      %v1077 = vrcp.pop %v1069
      %v1078 = vrcp.pop %v1072
      %v1079 = vrcp.pop %v1075
      %v1080 = vmul.f32 %v1057, %v1076
      %v1081 = vmul.f32 %v1059, %v1077
      %v1082 = vmul.f32 %v1061, %v1078
      %v1083 = vmul.f32 %v1063, %v1079
      %v1085 = vsel %vm865, %v1080, 0
      %v1088 = vsel %vm865, %v1081, 0
      %1090 = vmatprep.subr.mxu0 0.0
      %1091 = vmatpush1.msra.mxu0 %v839
      %1092 = vmatprep.subr.mxu0 0.0
      %1093 = vmatpush1.msra.mxu0 %v844
      %1094 = vmatprep.subr.mxu0 0.0
      %1095 = vmatpush1.msra.mxu0 0.0
      %1096 = vmatprep.subr.mxu0 0.0
      %1097 = vmatpush1.msra.mxu0 0.0
      %1098 = vmatprep.subr.mxu0 0.0
      %1099 = vmatpush1.msra.mxu0 0.0
      %1100 = vmatprep.subr.mxu0 0.0
      %1101 = vmatpush1.msra.mxu0 0.0
      %1102 = vmatprep.subr.mxu0 0.0
      %1103 = vmatpush1.msra.mxu0 0.0
      %1104 = vmatprep.subr.mxu0 0.0
      %1105 = vmatpush1.msra.mxu0 0.0
      %1106 = vmatprep.subr.mxu0 0.0
      %1107 = vmatpush1.msra.mxu0 0.0
      %1108 = vmatprep.subr.mxu0 0.0
      %1109 = vmatpush1.msra.mxu0 0.0
      %1110 = vmatprep.subr.mxu0 0.0
      %1111 = vmatpush1.msra.mxu0 0.0
      %1112 = vmatprep.subr.mxu0 0.0
      %1113 = vmatpush1.msra.mxu0 0.0
      %1114 = vmatprep.subr.mxu0 0.0
      %1115 = vmatpush1.msra.mxu0 0.0
      %1116 = vmatprep.subr.mxu0 0.0
      %1117 = vmatpush1.msra.mxu0 0.0
      %1118 = vmatprep.subr.mxu0 0.0
      %1119 = vmatpush1.msra.mxu0 0.0
      %1120 = vmatprep.subr.mxu0 0.0
      %1121 = vmatpush1.msra.mxu0 0.0
      %1122 = vmatprep.subr.mxu0 0.0
      %1123 = vmatpush1.msra.mxu0 0.0
      %1124 = vmatprep.subr.mxu0 0.0
      %1125 = vmatpush1.msra.mxu0 0.0
      %1126 = vmatprep.subr.mxu0 0.0
      %1127 = vmatpush1.msra.mxu0 0.0
      %1128 = vmatprep.subr.mxu0 0.0
      %1129 = vmatpush1.msra.mxu0 0.0
      %1130 = vmatprep.subr.mxu0 0.0
      %1131 = vmatpush1.msra.mxu0 0.0
      %1132 = vmatprep.subr.mxu0 0.0
      %1133 = vmatpush1.msra.mxu0 0.0
      %1134 = vmatprep.subr.mxu0 0.0
      %1135 = vmatpush1.msra.mxu0 0.0
      %1136 = vmatprep.subr.mxu0 0.0
      %1137 = vmatpush1.msra.mxu0 0.0
      %1138 = vmatprep.subr.mxu0 0.0
      %1139 = vmatpush1.msra.mxu0 0.0
      %1140 = vmatprep.subr.mxu0 0.0
      %1141 = vmatpush1.msra.mxu0 0.0
      %1142 = vmatprep.subr.mxu0 0.0
      %1143 = vmatpush1.msra.mxu0 0.0
      %1144 = vmatprep.subr.mxu0 0.0
      %1145 = vmatpush1.msra.mxu0 0.0
      %1146 = vmatprep.subr.mxu0 0.0
      %1147 = vmatpush1.msra.mxu0 0.0
      %1148 = vmatprep.subr.mxu0 0.0
      %1149 = vmatpush1.msra.mxu0 0.0
      %1150 = vmatprep.subr.mxu0 0.0
      %1151 = vmatpush1.msra.mxu0 0.0
      %1152 = vmatprep.subr.mxu0 0.0
      %1153 = vmatpush1.msra.mxu0 0.0
      %1154 = vmatprep.mubr.f32.mxu0 0.0
      %1155 = vmatmul.mubr.f32.gmra.mrb[0].mxu0 %v1085
      %v1156 = vpop.f32.mrb[0].mxu0
      %v1157 = vadd.f32 0.0, %v1156
      %v1158 = vpop.f32.mrb[0].mxu0
      %1159 = vmatprep.mubr.f32.mxu0 0.0
      %1160 = vmatmul.mubr.f32.gmra.mrb[0].mxu0 %v1088
      %v1161 = vpop.f32.mrb[0].mxu0
      %v1162 = vadd.f32 0.0, %v1161
      %v1163 = vpop.f32.mrb[0].mxu0
      %1164 = vdwg.mxu0
      %v1166 = vsel %vm865, %v1082, 0
      %v1169 = vsel %vm865, %v1083, 0
      %1171 = vmatprep.subr.mxu0 0.0
      %1172 = vmatpush1.msra.mxu0 %v849
      %1173 = vmatprep.subr.mxu0 0.0
      %1174 = vmatpush1.msra.mxu0 %v854
      %1175 = vmatprep.subr.mxu0 0.0
      %1176 = vmatpush1.msra.mxu0 0.0
      %1177 = vmatprep.subr.mxu0 0.0
      %1178 = vmatpush1.msra.mxu0 0.0
      %1179 = vmatprep.subr.mxu0 0.0
      %1180 = vmatpush1.msra.mxu0 0.0
      %1181 = vmatprep.subr.mxu0 0.0
      %1182 = vmatpush1.msra.mxu0 0.0
      %1183 = vmatprep.subr.mxu0 0.0
      %1184 = vmatpush1.msra.mxu0 0.0
      %1185 = vmatprep.subr.mxu0 0.0
      %1186 = vmatpush1.msra.mxu0 0.0
      %1187 = vmatprep.subr.mxu0 0.0
      %1188 = vmatpush1.msra.mxu0 0.0
      %1189 = vmatprep.subr.mxu0 0.0
      %1190 = vmatpush1.msra.mxu0 0.0
      %1191 = vmatprep.subr.mxu0 0.0
      %1192 = vmatpush1.msra.mxu0 0.0
      %1193 = vmatprep.subr.mxu0 0.0
      %1194 = vmatpush1.msra.mxu0 0.0
      %1195 = vmatprep.subr.mxu0 0.0
      %1196 = vmatpush1.msra.mxu0 0.0
      %1197 = vmatprep.subr.mxu0 0.0
      %1198 = vmatpush1.msra.mxu0 0.0
      %1199 = vmatprep.subr.mxu0 0.0
      %1200 = vmatpush1.msra.mxu0 0.0
      %1201 = vmatprep.subr.mxu0 0.0
      %1202 = vmatpush1.msra.mxu0 0.0
      %1203 = vmatprep.subr.mxu0 0.0
      %1204 = vmatpush1.msra.mxu0 0.0
      %1205 = vmatprep.subr.mxu0 0.0
      %1206 = vmatpush1.msra.mxu0 0.0
      %1207 = vmatprep.subr.mxu0 0.0
      %1208 = vmatpush1.msra.mxu0 0.0
      %1209 = vmatprep.subr.mxu0 0.0
      %1210 = vmatpush1.msra.mxu0 0.0
      %1211 = vmatprep.subr.mxu0 0.0
      %1212 = vmatpush1.msra.mxu0 0.0
      %1213 = vmatprep.subr.mxu0 0.0
      %1214 = vmatpush1.msra.mxu0 0.0
      %1215 = vmatprep.subr.mxu0 0.0
      %1216 = vmatpush1.msra.mxu0 0.0
      %1217 = vmatprep.subr.mxu0 0.0
      %1218 = vmatpush1.msra.mxu0 0.0
      %1219 = vmatprep.subr.mxu0 0.0
      %1220 = vmatpush1.msra.mxu0 0.0
      %1221 = vmatprep.subr.mxu0 0.0
      %1222 = vmatpush1.msra.mxu0 0.0
      %1223 = vmatprep.subr.mxu0 0.0
      %1224 = vmatpush1.msra.mxu0 0.0
      %1225 = vmatprep.subr.mxu0 0.0
      %1226 = vmatpush1.msra.mxu0 0.0
      %1227 = vmatprep.subr.mxu0 0.0
      %1228 = vmatpush1.msra.mxu0 0.0
      %1229 = vmatprep.subr.mxu0 0.0
      %1230 = vmatpush1.msra.mxu0 0.0
      %1231 = vmatprep.subr.mxu0 0.0
      %1232 = vmatpush1.msra.mxu0 0.0
      %1233 = vmatprep.subr.mxu0 0.0
      %1234 = vmatpush1.msra.mxu0 0.0
      %1235 = vmatprep.mubr.f32.mxu0 0.0
      %1236 = vmatmul.mubr.f32.gmra.mrb[0].mxu0 %v1166
      %v1237 = vpop.f32.mrb[0].mxu0
      %v1238 = vadd.f32 0.0, %v1237
      %v1239 = vpop.f32.mrb[0].mxu0
      %1240 = vmatprep.mubr.f32.mxu0 0.0
      %1241 = vmatmul.mubr.f32.gmra.mrb[0].mxu0 %v1169
      %v1242 = vpop.f32.mrb[0].mxu0
      %v1243 = vadd.f32 0.0, %v1242
      %v1244 = vpop.f32.mrb[0].mxu0
      %1245 = vdwg.mxu0
      %1246 = vrot.lane.b32.xlu0 %v647, 112
      %v1247 = vpop.permute.xlu0 %1246
      %1248 = vrot.lane.b32.xlu0 %v652, 112
      %v1249 = vpop.permute.xlu0 %1248
      %1250 = vrot.lane.b32.xlu0 %v743, 112
      %v1251 = vpop.permute.xlu0 %1250
      %1252 = vrot.lane.b32.xlu0 %v748, 112
      %v1253 = vpop.permute.xlu0 %1252
      %v1254 = vsel %vm865, %v1247, 0
      %v1256 = vsel %vm865, %v1249, 0
      %v1258 = vsel %vm865, %v1251, 0
      %v1260 = vsel %vm865, %v1253, 0
      %1262 = vmatprep.subr.mxu0 0.0
      %1263 = vmatpush1.xpose.msra.mxu0 %v1258
      %1264 = vmatprep.subr.mxu0 0.0
      %1265 = vmatpush1.xpose.msra.mxu0 %v1260
      %1266 = vmatprep.subr.mxu0 0.0
      %1267 = vmatpush1.xpose.msra.mxu0 0.0
      %1268 = vmatprep.subr.mxu0 0.0
      %1269 = vmatpush1.xpose.msra.mxu0 0.0
      %1270 = vmatprep.subr.mxu0 0.0
      %1271 = vmatpush1.xpose.msra.mxu0 0.0
      %1272 = vmatprep.subr.mxu0 0.0
      %1273 = vmatpush1.xpose.msra.mxu0 0.0
      %1274 = vmatprep.subr.mxu0 0.0
      %1275 = vmatpush1.xpose.msra.mxu0 0.0
      %1276 = vmatprep.subr.mxu0 0.0
      %1277 = vmatpush1.xpose.msra.mxu0 0.0
      %1278 = vmatprep.subr.mxu0 0.0
      %1279 = vmatpush1.xpose.msra.mxu0 0.0
      %1280 = vmatprep.subr.mxu0 0.0
      %1281 = vmatpush1.xpose.msra.mxu0 0.0
      %1282 = vmatprep.subr.mxu0 0.0
      %1283 = vmatpush1.xpose.msra.mxu0 0.0
      %1284 = vmatprep.subr.mxu0 0.0
      %1285 = vmatpush1.xpose.msra.mxu0 0.0
      %1286 = vmatprep.subr.mxu0 0.0
      %1287 = vmatpush1.xpose.msra.mxu0 0.0
      %1288 = vmatprep.subr.mxu0 0.0
      %1289 = vmatpush1.xpose.msra.mxu0 0.0
      %1290 = vmatprep.subr.mxu0 0.0
      %1291 = vmatpush1.xpose.msra.mxu0 0.0
      %1292 = vmatprep.subr.mxu0 0.0
      %1293 = vmatpush1.xpose.msra.mxu0 0.0
      %1294 = vmatprep.subr.mxu0 0.0
      %1295 = vmatpush1.xpose.msra.mxu0 0.0
      %1296 = vmatprep.subr.mxu0 0.0
      %1297 = vmatpush1.xpose.msra.mxu0 0.0
      %1298 = vmatprep.subr.mxu0 0.0
      %1299 = vmatpush1.xpose.msra.mxu0 0.0
      %1300 = vmatprep.subr.mxu0 0.0
      %1301 = vmatpush1.xpose.msra.mxu0 0.0
      %1302 = vmatprep.subr.mxu0 0.0
      %1303 = vmatpush1.xpose.msra.mxu0 0.0
      %1304 = vmatprep.subr.mxu0 0.0
      %1305 = vmatpush1.xpose.msra.mxu0 0.0
      %1306 = vmatprep.subr.mxu0 0.0
      %1307 = vmatpush1.xpose.msra.mxu0 0.0
      %1308 = vmatprep.subr.mxu0 0.0
      %1309 = vmatpush1.xpose.msra.mxu0 0.0
      %1310 = vmatprep.subr.mxu0 0.0
      %1311 = vmatpush1.xpose.msra.mxu0 0.0
      %1312 = vmatprep.subr.mxu0 0.0
      %1313 = vmatpush1.xpose.msra.mxu0 0.0
      %1314 = vmatprep.subr.mxu0 0.0
      %1315 = vmatpush1.xpose.msra.mxu0 0.0
      %1316 = vmatprep.subr.mxu0 0.0
      %1317 = vmatpush1.xpose.msra.mxu0 0.0
      %1318 = vmatprep.subr.mxu0 0.0
      %1319 = vmatpush1.xpose.msra.mxu0 0.0
      %1320 = vmatprep.subr.mxu0 0.0
      %1321 = vmatpush1.xpose.msra.mxu0 0.0
      %1322 = vmatprep.subr.mxu0 0.0
      %1323 = vmatpush1.xpose.msra.mxu0 0.0
      %1324 = vmatprep.subr.mxu0 0.0
      %1325 = vmatpush1.xpose.msra.mxu0 0.0
      %1326 = vmatprep.mubr.f32.mxu0 0.0
      %1327 = vmatmul.mubr.f32.gmra.mrb[0].mxu0 %v1254
      %v1328 = vpop.f32.mrb[0].mxu0
      %v1329 = vadd.f32 0.0, %v1328
      %v1330 = vpop.f32.mrb[0].mxu0
      %1331 = vmatprep.mubr.f32.mxu0 0.0
      %1332 = vmatmul.mubr.f32.gmra.mrb[0].mxu0 %v1256
      %v1333 = vpop.f32.mrb[0].mxu0
      %v1334 = vadd.f32 0.0, %v1333
      %v1335 = vpop.f32.mrb[0].mxu0
      %1336 = vdwg.mxu0
      %1337 = vrot.lane.b32.xlu0 %v657, 112
      %v1338 = vpop.permute.xlu0 %1337
      %1339 = vrot.lane.b32.xlu0 %v662, 112
      %v1340 = vpop.permute.xlu0 %1339
      %1341 = vrot.lane.b32.xlu0 %v753, 112
      %v1342 = vpop.permute.xlu0 %1341
      %1343 = vrot.lane.b32.xlu0 %v758, 112
      %v1344 = vpop.permute.xlu0 %1343
      %v1345 = vsel %vm865, %v1338, 0
      %v1347 = vsel %vm865, %v1340, 0
      %v1349 = vsel %vm865, %v1342, 0
      %v1351 = vsel %vm865, %v1344, 0
      %1353 = vmatprep.subr.mxu0 0.0
      %1354 = vmatpush1.xpose.msra.mxu0 %v1349
      %1355 = vmatprep.subr.mxu0 0.0
      %1356 = vmatpush1.xpose.msra.mxu0 %v1351
      %1357 = vmatprep.subr.mxu0 0.0
      %1358 = vmatpush1.xpose.msra.mxu0 0.0
      %1359 = vmatprep.subr.mxu0 0.0
      %1360 = vmatpush1.xpose.msra.mxu0 0.0
      %1361 = vmatprep.subr.mxu0 0.0
      %1362 = vmatpush1.xpose.msra.mxu0 0.0
      %1363 = vmatprep.subr.mxu0 0.0
      %1364 = vmatpush1.xpose.msra.mxu0 0.0
      %1365 = vmatprep.subr.mxu0 0.0
      %1366 = vmatpush1.xpose.msra.mxu0 0.0
      %1367 = vmatprep.subr.mxu0 0.0
      %1368 = vmatpush1.xpose.msra.mxu0 0.0
      %1369 = vmatprep.subr.mxu0 0.0
      %1370 = vmatpush1.xpose.msra.mxu0 0.0
      %1371 = vmatprep.subr.mxu0 0.0
      %1372 = vmatpush1.xpose.msra.mxu0 0.0
      %1373 = vmatprep.subr.mxu0 0.0
      %1374 = vmatpush1.xpose.msra.mxu0 0.0
      %1375 = vmatprep.subr.mxu0 0.0
      %1376 = vmatpush1.xpose.msra.mxu0 0.0
      %1377 = vmatprep.subr.mxu0 0.0
      %1378 = vmatpush1.xpose.msra.mxu0 0.0
      %1379 = vmatprep.subr.mxu0 0.0
      %1380 = vmatpush1.xpose.msra.mxu0 0.0
      %1381 = vmatprep.subr.mxu0 0.0
      %1382 = vmatpush1.xpose.msra.mxu0 0.0
      %1383 = vmatprep.subr.mxu0 0.0
      %1384 = vmatpush1.xpose.msra.mxu0 0.0
      %1385 = vmatprep.subr.mxu0 0.0
      %1386 = vmatpush1.xpose.msra.mxu0 0.0
      %1387 = vmatprep.subr.mxu0 0.0
      %1388 = vmatpush1.xpose.msra.mxu0 0.0
      %1389 = vmatprep.subr.mxu0 0.0
      %1390 = vmatpush1.xpose.msra.mxu0 0.0
      %1391 = vmatprep.subr.mxu0 0.0
      %1392 = vmatpush1.xpose.msra.mxu0 0.0
      %1393 = vmatprep.subr.mxu0 0.0
      %1394 = vmatpush1.xpose.msra.mxu0 0.0
      %1395 = vmatprep.subr.mxu0 0.0
      %1396 = vmatpush1.xpose.msra.mxu0 0.0
      %1397 = vmatprep.subr.mxu0 0.0
      %1398 = vmatpush1.xpose.msra.mxu0 0.0
      %1399 = vmatprep.subr.mxu0 0.0
      %1400 = vmatpush1.xpose.msra.mxu0 0.0
      %1401 = vmatprep.subr.mxu0 0.0
      %1402 = vmatpush1.xpose.msra.mxu0 0.0
      %1403 = vmatprep.subr.mxu0 0.0
      %1404 = vmatpush1.xpose.msra.mxu0 0.0
      %1405 = vmatprep.subr.mxu0 0.0
      %1406 = vmatpush1.xpose.msra.mxu0 0.0
      %1407 = vmatprep.subr.mxu0 0.0
      %1408 = vmatpush1.xpose.msra.mxu0 0.0
      %1409 = vmatprep.subr.mxu0 0.0
      %1410 = vmatpush1.xpose.msra.mxu0 0.0
      %1411 = vmatprep.subr.mxu0 0.0
      %1412 = vmatpush1.xpose.msra.mxu0 0.0
      %1413 = vmatprep.subr.mxu0 0.0
      %1414 = vmatpush1.xpose.msra.mxu0 0.0
      %1415 = vmatprep.subr.mxu0 0.0
      %1416 = vmatpush1.xpose.msra.mxu0 0.0
      %1417 = vmatprep.mubr.f32.mxu0 0.0
      %1418 = vmatmul.mubr.f32.gmra.mrb[0].mxu0 %v1345
      %v1419 = vpop.f32.mrb[0].mxu0
      %v1420 = vadd.f32 0.0, %v1419
      %v1421 = vpop.f32.mrb[0].mxu0
      %1422 = vmatprep.mubr.f32.mxu0 0.0
      %1423 = vmatmul.mubr.f32.gmra.mrb[0].mxu0 %v1347
      %v1424 = vpop.f32.mrb[0].mxu0
      %v1425 = vadd.f32 0.0, %v1424
      %v1426 = vpop.f32.mrb[0].mxu0
      %1427 = vdwg.mxu0
      %v1428 = vsel %vm865, %v1329, -inf
      %1429 = vmax.xlane.f32.xlu0 %v1428
      %v1430 = vpop.xlane.xlu0 %1429
      %v1431 = vsel %vm865, %v1334, -inf
      %1432 = vmax.xlane.f32.xlu0 %v1431
      %v1433 = vpop.xlane.xlu0 %1432
      %v1434 = vsel %vm865, %v1420, -inf
      %1435 = vmax.xlane.f32.xlu0 %v1434
      %v1436 = vpop.xlane.xlu0 %1435
      %v1437 = vsel %vm865, %v1425, -inf
      %1438 = vmax.xlane.f32.xlu0 %v1437
      %v1439 = vpop.xlane.xlu0 %1438
      %v1440 = vsub.f32 %v1329, %v1430
      %v1441 = vsub.f32 %v1334, %v1433
      %v1442 = vsub.f32 %v1420, %v1436
      %v1443 = vsub.f32 %v1425, %v1439
      %v1444 = vmul.f32 %v1440, 1.442695
      %v1445 = vpow.pop %v1444
      %v1446 = vmul.f32 %v1441, 1.442695
      %v1447 = vpow.pop %v1446
      %v1448 = vmul.f32 %v1442, 1.442695
      %v1449 = vpow.pop %v1448
      %v1450 = vmul.f32 %v1443, 1.442695
      %v1451 = vpow.pop %v1450
      %v1452 = vsel %vm865, %v1445, 0.0
      %1453 = vadd.xlane.f32.xlu0 %v1452
      %v1454 = vpop.xlane.xlu0 %1453
      %v1455 = vsel %vm865, %v1447, 0.0
      %1456 = vadd.xlane.f32.xlu0 %v1455
      %v1457 = vpop.xlane.xlu0 %1456
      %v1458 = vsel %vm865, %v1449, 0.0
      %1459 = vadd.xlane.f32.xlu0 %v1458
      %v1460 = vpop.xlane.xlu0 %1459
      %v1461 = vsel %vm865, %v1451, 0.0
      %1462 = vadd.xlane.f32.xlu0 %v1461
      %v1463 = vpop.xlane.xlu0 %1462
      %v1464 = vrcp.pop %v1454
      %v1465 = vrcp.pop %v1457
      %v1466 = vrcp.pop %v1460
      %v1467 = vrcp.pop %v1463
      %v1468 = vmul.f32 %v1445, %v1464
      %v1469 = vmul.f32 %v1447, %v1465
      %v1470 = vmul.f32 %v1449, %v1466
      %v1471 = vmul.f32 %v1451, %v1467
      %1474 = vrot.lane.b32.xlu0 %v839, 112
      %v1475 = vpop.permute.xlu0 %1474
      %1476 = vrot.lane.b32.xlu0 %v844, 112
      %v1477 = vpop.permute.xlu0 %1476
      %v1481 = vsel %vm865, %v1468, 0
      %v1484 = vsel %vm865, %v1469, 0
      %1486 = vmatprep.subr.mxu0 0.0
      %1487 = vmatpush1.msra.mxu0 %v1475
      %1488 = vmatprep.subr.mxu0 0.0
      %1489 = vmatpush1.msra.mxu0 %v1477
      %1490 = vmatprep.subr.mxu0 0.0
      %1491 = vmatpush1.msra.mxu0 0.0
      %1492 = vmatprep.subr.mxu0 0.0
      %1493 = vmatpush1.msra.mxu0 0.0
      %1494 = vmatprep.subr.mxu0 0.0
      %1495 = vmatpush1.msra.mxu0 0.0
      %1496 = vmatprep.subr.mxu0 0.0
      %1497 = vmatpush1.msra.mxu0 0.0
      %1498 = vmatprep.subr.mxu0 0.0
      %1499 = vmatpush1.msra.mxu0 0.0
      %1500 = vmatprep.subr.mxu0 0.0
      %1501 = vmatpush1.msra.mxu0 0.0
      %1502 = vmatprep.subr.mxu0 0.0
      %1503 = vmatpush1.msra.mxu0 0.0
      %1504 = vmatprep.subr.mxu0 0.0
      %1505 = vmatpush1.msra.mxu0 0.0
      %1506 = vmatprep.subr.mxu0 0.0
      %1507 = vmatpush1.msra.mxu0 0.0
      %1508 = vmatprep.subr.mxu0 0.0
      %1509 = vmatpush1.msra.mxu0 0.0
      %1510 = vmatprep.subr.mxu0 0.0
      %1511 = vmatpush1.msra.mxu0 0.0
      %1512 = vmatprep.subr.mxu0 0.0
      %1513 = vmatpush1.msra.mxu0 0.0
      %1514 = vmatprep.subr.mxu0 0.0
      %1515 = vmatpush1.msra.mxu0 0.0
      %1516 = vmatprep.subr.mxu0 0.0
      %1517 = vmatpush1.msra.mxu0 0.0
      %1518 = vmatprep.subr.mxu0 0.0
      %1519 = vmatpush1.msra.mxu0 0.0
      %1520 = vmatprep.subr.mxu0 0.0
      %1521 = vmatpush1.msra.mxu0 0.0
      %1522 = vmatprep.subr.mxu0 0.0
      %1523 = vmatpush1.msra.mxu0 0.0
      %1524 = vmatprep.subr.mxu0 0.0
      %1525 = vmatpush1.msra.mxu0 0.0
      %1526 = vmatprep.subr.mxu0 0.0
      %1527 = vmatpush1.msra.mxu0 0.0
      %1528 = vmatprep.subr.mxu0 0.0
      %1529 = vmatpush1.msra.mxu0 0.0
      %1530 = vmatprep.subr.mxu0 0.0
      %1531 = vmatpush1.msra.mxu0 0.0
      %1532 = vmatprep.subr.mxu0 0.0
      %1533 = vmatpush1.msra.mxu0 0.0
      %1534 = vmatprep.subr.mxu0 0.0
      %1535 = vmatpush1.msra.mxu0 0.0
      %1536 = vmatprep.subr.mxu0 0.0
      %1537 = vmatpush1.msra.mxu0 0.0
      %1538 = vmatprep.subr.mxu0 0.0
      %1539 = vmatpush1.msra.mxu0 0.0
      %1540 = vmatprep.subr.mxu0 0.0
      %1541 = vmatpush1.msra.mxu0 0.0
      %1542 = vmatprep.subr.mxu0 0.0
      %1543 = vmatpush1.msra.mxu0 0.0
      %1544 = vmatprep.subr.mxu0 0.0
      %1545 = vmatpush1.msra.mxu0 0.0
      %1546 = vmatprep.subr.mxu0 0.0
      %1547 = vmatpush1.msra.mxu0 0.0
      %1548 = vmatprep.subr.mxu0 0.0
      %1549 = vmatpush1.msra.mxu0 0.0
      %1550 = vmatprep.mubr.f32.mxu0 0.0
      %1551 = vmatmul.mubr.f32.gmra.mrb[0].mxu0 %v1481
      %v1552 = vpop.f32.mrb[0].mxu0
      %v1553 = vadd.f32 0.0, %v1552
      %v1554 = vpop.f32.mrb[0].mxu0
      %1555 = vmatprep.mubr.f32.mxu0 0.0
      %1556 = vmatmul.mubr.f32.gmra.mrb[0].mxu0 %v1484
      %v1557 = vpop.f32.mrb[0].mxu0
      %v1558 = vadd.f32 0.0, %v1557
      %v1559 = vpop.f32.mrb[0].mxu0
      %1560 = vdwg.mxu0
      %1563 = vrot.lane.b32.xlu0 %v849, 112
      %v1564 = vpop.permute.xlu0 %1563
      %1565 = vrot.lane.b32.xlu0 %v854, 112
      %v1566 = vpop.permute.xlu0 %1565
      %v1570 = vsel %vm865, %v1470, 0
      %v1573 = vsel %vm865, %v1471, 0
      %1575 = vmatprep.subr.mxu0 0.0
      %1576 = vmatpush1.msra.mxu0 %v1564
      %1577 = vmatprep.subr.mxu0 0.0
      %1578 = vmatpush1.msra.mxu0 %v1566
      %1579 = vmatprep.subr.mxu0 0.0
      %1580 = vmatpush1.msra.mxu0 0.0
      %1581 = vmatprep.subr.mxu0 0.0
      %1582 = vmatpush1.msra.mxu0 0.0
      %1583 = vmatprep.subr.mxu0 0.0
      %1584 = vmatpush1.msra.mxu0 0.0
      %1585 = vmatprep.subr.mxu0 0.0
      %1586 = vmatpush1.msra.mxu0 0.0
      %1587 = vmatprep.subr.mxu0 0.0
      %1588 = vmatpush1.msra.mxu0 0.0
      %1589 = vmatprep.subr.mxu0 0.0
      %1590 = vmatpush1.msra.mxu0 0.0
      %1591 = vmatprep.subr.mxu0 0.0
      %1592 = vmatpush1.msra.mxu0 0.0
      %1593 = vmatprep.subr.mxu0 0.0
      %1594 = vmatpush1.msra.mxu0 0.0
      %1595 = vmatprep.subr.mxu0 0.0
      %1596 = vmatpush1.msra.mxu0 0.0
      %1597 = vmatprep.subr.mxu0 0.0
      %1598 = vmatpush1.msra.mxu0 0.0
      %1599 = vmatprep.subr.mxu0 0.0
      %1600 = vmatpush1.msra.mxu0 0.0
      %1601 = vmatprep.subr.mxu0 0.0
      %1602 = vmatpush1.msra.mxu0 0.0
      %1603 = vmatprep.subr.mxu0 0.0
      %1604 = vmatpush1.msra.mxu0 0.0
      %1605 = vmatprep.subr.mxu0 0.0
      %1606 = vmatpush1.msra.mxu0 0.0
      %1607 = vmatprep.subr.mxu0 0.0
      %1608 = vmatpush1.msra.mxu0 0.0
      %1609 = vmatprep.subr.mxu0 0.0
      %1610 = vmatpush1.msra.mxu0 0.0
      %1611 = vmatprep.subr.mxu0 0.0
      %1612 = vmatpush1.msra.mxu0 0.0
      %1613 = vmatprep.subr.mxu0 0.0
      %1614 = vmatpush1.msra.mxu0 0.0
      %1615 = vmatprep.subr.mxu0 0.0
      %1616 = vmatpush1.msra.mxu0 0.0
      %1617 = vmatprep.subr.mxu0 0.0
      %1618 = vmatpush1.msra.mxu0 0.0
      %1619 = vmatprep.subr.mxu0 0.0
      %1620 = vmatpush1.msra.mxu0 0.0
      %1621 = vmatprep.subr.mxu0 0.0
      %1622 = vmatpush1.msra.mxu0 0.0
      %1623 = vmatprep.subr.mxu0 0.0
      %1624 = vmatpush1.msra.mxu0 0.0
      %1625 = vmatprep.subr.mxu0 0.0
      %1626 = vmatpush1.msra.mxu0 0.0
      %1627 = vmatprep.subr.mxu0 0.0
      %1628 = vmatpush1.msra.mxu0 0.0
      %1629 = vmatprep.subr.mxu0 0.0
      %1630 = vmatpush1.msra.mxu0 0.0
      %1631 = vmatprep.subr.mxu0 0.0
      %1632 = vmatpush1.msra.mxu0 0.0
      %1633 = vmatprep.subr.mxu0 0.0
      %1634 = vmatpush1.msra.mxu0 0.0
      %1635 = vmatprep.subr.mxu0 0.0
      %1636 = vmatpush1.msra.mxu0 0.0
      %1637 = vmatprep.subr.mxu0 0.0
      %1638 = vmatpush1.msra.mxu0 0.0
      %1639 = vmatprep.mubr.f32.mxu0 0.0
      %1640 = vmatmul.mubr.f32.gmra.mrb[0].mxu0 %v1570
      %v1641 = vpop.f32.mrb[0].mxu0
      %v1642 = vadd.f32 0.0, %v1641
      %v1643 = vpop.f32.mrb[0].mxu0
      %1644 = vmatprep.mubr.f32.mxu0 0.0
      %1645 = vmatmul.mubr.f32.gmra.mrb[0].mxu0 %v1573
      %v1646 = vpop.f32.mrb[0].mxu0
      %v1647 = vadd.f32 0.0, %v1646
      %v1648 = vpop.f32.mrb[0].mxu0
      %1649 = vdwg.mxu0
      %v1651 = vsel %vm865, %v1553, 0
      %v1654 = vsel %vm865, %v1558, 0
      %v1657 = vsel %vm865, %v1642, 0
      %v1660 = vsel %vm865, %v1647, 0
      %1662 = vmatprep.subr.mxu0 0.0
      %1663 = vmatpush1.msra.mxu0 %v859
      %1664 = vmatprep.subr.mxu0 0.0
      %1665 = vmatpush1.msra.mxu0 %v860
      %1666 = vmatprep.subr.mxu0 0.0
      %1667 = vmatpush1.msra.mxu0 0.0
      %1668 = vmatprep.subr.mxu0 0.0
      %1669 = vmatpush1.msra.mxu0 0.0
      %1670 = vmatprep.subr.mxu0 0.0
      %1671 = vmatpush1.msra.mxu0 0.0
      %1672 = vmatprep.subr.mxu0 0.0
      %1673 = vmatpush1.msra.mxu0 0.0
      %1674 = vmatprep.subr.mxu0 0.0
      %1675 = vmatpush1.msra.mxu0 0.0
      %1676 = vmatprep.subr.mxu0 0.0
      %1677 = vmatpush1.msra.mxu0 0.0
      %1678 = vmatprep.subr.mxu0 0.0
      %1679 = vmatpush1.msra.mxu0 0.0
      %1680 = vmatprep.subr.mxu0 0.0
      %1681 = vmatpush1.msra.mxu0 0.0
      %1682 = vmatprep.subr.mxu0 0.0
      %1683 = vmatpush1.msra.mxu0 0.0
      %1684 = vmatprep.subr.mxu0 0.0
      %1685 = vmatpush1.msra.mxu0 0.0
      %1686 = vmatprep.subr.mxu0 0.0
      %1687 = vmatpush1.msra.mxu0 0.0
      %1688 = vmatprep.subr.mxu0 0.0
      %1689 = vmatpush1.msra.mxu0 0.0
      %1690 = vmatprep.subr.mxu0 0.0
      %1691 = vmatpush1.msra.mxu0 0.0
      %1692 = vmatprep.subr.mxu0 0.0
      %1693 = vmatpush1.msra.mxu0 0.0
      %1694 = vmatprep.subr.mxu0 0.0
      %1695 = vmatpush1.msra.mxu0 0.0
      %1696 = vmatprep.subr.mxu0 0.0
      %1697 = vmatpush1.msra.mxu0 0.0
      %1698 = vmatprep.subr.mxu0 0.0
      %1699 = vmatpush1.msra.mxu0 0.0
      %1700 = vmatprep.subr.mxu0 0.0
      %1701 = vmatpush1.msra.mxu0 0.0
      %1702 = vmatprep.subr.mxu0 0.0
      %1703 = vmatpush1.msra.mxu0 0.0
      %1704 = vmatprep.subr.mxu0 0.0
      %1705 = vmatpush1.msra.mxu0 0.0
      %1706 = vmatprep.subr.mxu0 0.0
      %1707 = vmatpush1.msra.mxu0 0.0
      %1708 = vmatprep.subr.mxu0 0.0
      %1709 = vmatpush1.msra.mxu0 0.0
      %1710 = vmatprep.subr.mxu0 0.0
      %1711 = vmatpush1.msra.mxu0 0.0
      %1712 = vmatprep.subr.mxu0 0.0
      %1713 = vmatpush1.msra.mxu0 0.0
      %1714 = vmatprep.subr.mxu0 0.0
      %1715 = vmatpush1.msra.mxu0 0.0
      %1716 = vmatprep.subr.mxu0 0.0
      %1717 = vmatpush1.msra.mxu0 0.0
      %1718 = vmatprep.subr.mxu0 0.0
      %1719 = vmatpush1.msra.mxu0 0.0
      %1720 = vmatprep.subr.mxu0 0.0
      %1721 = vmatpush1.msra.mxu0 0.0
      %1722 = vmatprep.subr.mxu0 0.0
      %1723 = vmatpush1.msra.mxu0 0.0
      %1724 = vmatprep.subr.mxu0 0.0
      %1725 = vmatpush1.msra.mxu0 0.0
      %1726 = vmatprep.mubr.f32.mxu0 0.0
      %1727 = vmatmul.mubr.f32.gmra.mrb[0].mxu0 %v1651
      %v1728 = vpop.f32.mrb[0].mxu0
      %v1729 = vadd.f32 0.0, %v1728
      %v1730 = vpop.f32.mrb[0].mxu0
      %1731 = vmatprep.mubr.f32.mxu0 0.0
      %1732 = vmatmul.mubr.f32.gmra.mrb[0].mxu0 %v1654
      %v1733 = vpop.f32.mrb[0].mxu0
      %v1734 = vadd.f32 0.0, %v1733
      %v1735 = vpop.f32.mrb[0].mxu0
      %1736 = vmatprep.mubr.f32.mxu0 0.0
      %1737 = vmatmul.mubr.f32.gmra.mrb[0].mxu0 %v1657
      %v1738 = vpop.f32.mrb[0].mxu0
      %v1739 = vadd.f32 0.0, %v1738
      %v1740 = vpop.f32.mrb[0].mxu0
      %1741 = vmatprep.mubr.f32.mxu0 0.0
      %1742 = vmatmul.mubr.f32.gmra.mrb[0].mxu0 %v1660
      %v1743 = vpop.f32.mrb[0].mxu0
      %v1744 = vadd.f32 0.0, %v1743
      %v1745 = vpop.f32.mrb[0].mxu0
      %1746 = vdwg.mxu0
      %v1748 = vsel %vm865, %v1157, 0
      %v1751 = vsel %vm865, %v1162, 0
      %v1754 = vsel %vm865, %v1238, 0
      %v1757 = vsel %vm865, %v1243, 0
      %1759 = vmatprep.subr.mxu0 0.0
      %1760 = vmatpush1.msra.mxu0 %v857
      %1761 = vmatprep.subr.mxu0 0.0
      %1762 = vmatpush1.msra.mxu0 %v858
      %1763 = vmatprep.subr.mxu0 0.0
      %1764 = vmatpush1.msra.mxu0 0.0
      %1765 = vmatprep.subr.mxu0 0.0
      %1766 = vmatpush1.msra.mxu0 0.0
      %1767 = vmatprep.subr.mxu0 0.0
      %1768 = vmatpush1.msra.mxu0 0.0
      %1769 = vmatprep.subr.mxu0 0.0
      %1770 = vmatpush1.msra.mxu0 0.0
      %1771 = vmatprep.subr.mxu0 0.0
      %1772 = vmatpush1.msra.mxu0 0.0
      %1773 = vmatprep.subr.mxu0 0.0
      %1774 = vmatpush1.msra.mxu0 0.0
      %1775 = vmatprep.subr.mxu0 0.0
      %1776 = vmatpush1.msra.mxu0 0.0
      %1777 = vmatprep.subr.mxu0 0.0
      %1778 = vmatpush1.msra.mxu0 0.0
      %1779 = vmatprep.subr.mxu0 0.0
      %1780 = vmatpush1.msra.mxu0 0.0
      %1781 = vmatprep.subr.mxu0 0.0
      %1782 = vmatpush1.msra.mxu0 0.0
      %1783 = vmatprep.subr.mxu0 0.0
      %1784 = vmatpush1.msra.mxu0 0.0
      %1785 = vmatprep.subr.mxu0 0.0
      %1786 = vmatpush1.msra.mxu0 0.0
      %1787 = vmatprep.subr.mxu0 0.0
      %1788 = vmatpush1.msra.mxu0 0.0
      %1789 = vmatprep.subr.mxu0 0.0
      %1790 = vmatpush1.msra.mxu0 0.0
      %1791 = vmatprep.subr.mxu0 0.0
      %1792 = vmatpush1.msra.mxu0 0.0
      %1793 = vmatprep.subr.mxu0 0.0
      %1794 = vmatpush1.msra.mxu0 0.0
      %1795 = vmatprep.subr.mxu0 0.0
      %1796 = vmatpush1.msra.mxu0 0.0
      %1797 = vmatprep.subr.mxu0 0.0
      %1798 = vmatpush1.msra.mxu0 0.0
      %1799 = vmatprep.subr.mxu0 0.0
      %1800 = vmatpush1.msra.mxu0 0.0
      %1801 = vmatprep.subr.mxu0 0.0
      %1802 = vmatpush1.msra.mxu0 0.0
      %1803 = vmatprep.subr.mxu0 0.0
      %1804 = vmatpush1.msra.mxu0 0.0
      %1805 = vmatprep.subr.mxu0 0.0
      %1806 = vmatpush1.msra.mxu0 0.0
      %1807 = vmatprep.subr.mxu0 0.0
      %1808 = vmatpush1.msra.mxu0 0.0
      %1809 = vmatprep.subr.mxu0 0.0
      %1810 = vmatpush1.msra.mxu0 0.0
      %1811 = vmatprep.subr.mxu0 0.0
      %1812 = vmatpush1.msra.mxu0 0.0
      %1813 = vmatprep.subr.mxu0 0.0
      %1814 = vmatpush1.msra.mxu0 0.0
      %1815 = vmatprep.subr.mxu0 0.0
      %1816 = vmatpush1.msra.mxu0 0.0
      %1817 = vmatprep.subr.mxu0 0.0
      %1818 = vmatpush1.msra.mxu0 0.0
      %1819 = vmatprep.subr.mxu0 0.0
      %1820 = vmatpush1.msra.mxu0 0.0
      %1821 = vmatprep.subr.mxu0 0.0
      %1822 = vmatpush1.msra.mxu0 0.0
      %1823 = vmatprep.mubr.f32.mxu0 0.0
      %1824 = vmatmul.mubr.f32.gmra.mrb[0].mxu0 %v1748
      %v1825 = vpop.f32.mrb[0].mxu0
      %v1826 = vadd.f32 %v1729, %v1825
      %v1827 = vpop.f32.mrb[0].mxu0
      %1828 = vmatprep.mubr.f32.mxu0 0.0
      %1829 = vmatmul.mubr.f32.gmra.mrb[0].mxu0 %v1751
      %v1830 = vpop.f32.mrb[0].mxu0
      %v1831 = vadd.f32 %v1734, %v1830
      %v1832 = vpop.f32.mrb[0].mxu0
      %1833 = vmatprep.mubr.f32.mxu0 0.0
      %1834 = vmatmul.mubr.f32.gmra.mrb[0].mxu0 %v1754
      %v1835 = vpop.f32.mrb[0].mxu0
      %v1836 = vadd.f32 %v1739, %v1835
      %v1837 = vpop.f32.mrb[0].mxu0
      %1838 = vmatprep.mubr.f32.mxu0 0.0
      %1839 = vmatmul.mubr.f32.gmra.mrb[0].mxu0 %v1757
      %v1840 = vpop.f32.mrb[0].mxu0
      %v1841 = vadd.f32 %v1744, %v1840
      %v1842 = vpop.f32.mrb[0].mxu0
      %1843 = vdwg.mxu0
      %1844 = vrot.lane.b32.xlu0 %v647, 96
      %v1845 = vpop.permute.xlu0 %1844
      %1846 = vrot.lane.b32.xlu0 %v652, 96
      %v1847 = vpop.permute.xlu0 %1846
      %1848 = vrot.lane.b32.xlu0 %v743, 96
      %v1849 = vpop.permute.xlu0 %1848
      %1850 = vrot.lane.b32.xlu0 %v748, 96
      %v1851 = vpop.permute.xlu0 %1850
      %v1852 = vsel %vm865, %v1845, 0
      %v1854 = vsel %vm865, %v1847, 0
      %v1856 = vsel %vm865, %v1849, 0
      %v1858 = vsel %vm865, %v1851, 0
      %1860 = vmatprep.subr.mxu0 0.0
      %1861 = vmatpush1.xpose.msra.mxu0 %v1856
      %1862 = vmatprep.subr.mxu0 0.0
      %1863 = vmatpush1.xpose.msra.mxu0 %v1858
      %1864 = vmatprep.subr.mxu0 0.0
      %1865 = vmatpush1.xpose.msra.mxu0 0.0
      %1866 = vmatprep.subr.mxu0 0.0
      %1867 = vmatpush1.xpose.msra.mxu0 0.0
      %1868 = vmatprep.subr.mxu0 0.0
      %1869 = vmatpush1.xpose.msra.mxu0 0.0
      %1870 = vmatprep.subr.mxu0 0.0
      %1871 = vmatpush1.xpose.msra.mxu0 0.0
      %1872 = vmatprep.subr.mxu0 0.0
      %1873 = vmatpush1.xpose.msra.mxu0 0.0
      %1874 = vmatprep.subr.mxu0 0.0
      %1875 = vmatpush1.xpose.msra.mxu0 0.0
      %1876 = vmatprep.subr.mxu0 0.0
      %1877 = vmatpush1.xpose.msra.mxu0 0.0
      %1878 = vmatprep.subr.mxu0 0.0
      %1879 = vmatpush1.xpose.msra.mxu0 0.0
      %1880 = vmatprep.subr.mxu0 0.0
      %1881 = vmatpush1.xpose.msra.mxu0 0.0
      %1882 = vmatprep.subr.mxu0 0.0
      %1883 = vmatpush1.xpose.msra.mxu0 0.0
      %1884 = vmatprep.subr.mxu0 0.0
      %1885 = vmatpush1.xpose.msra.mxu0 0.0
      %1886 = vmatprep.subr.mxu0 0.0
      %1887 = vmatpush1.xpose.msra.mxu0 0.0
      %1888 = vmatprep.subr.mxu0 0.0
      %1889 = vmatpush1.xpose.msra.mxu0 0.0
      %1890 = vmatprep.subr.mxu0 0.0
      %1891 = vmatpush1.xpose.msra.mxu0 0.0
      %1892 = vmatprep.subr.mxu0 0.0
      %1893 = vmatpush1.xpose.msra.mxu0 0.0
      %1894 = vmatprep.subr.mxu0 0.0
      %1895 = vmatpush1.xpose.msra.mxu0 0.0
      %1896 = vmatprep.subr.mxu0 0.0
      %1897 = vmatpush1.xpose.msra.mxu0 0.0
      %1898 = vmatprep.subr.mxu0 0.0
      %1899 = vmatpush1.xpose.msra.mxu0 0.0
      %1900 = vmatprep.subr.mxu0 0.0
      %1901 = vmatpush1.xpose.msra.mxu0 0.0
      %1902 = vmatprep.subr.mxu0 0.0
      %1903 = vmatpush1.xpose.msra.mxu0 0.0
      %1904 = vmatprep.subr.mxu0 0.0
      %1905 = vmatpush1.xpose.msra.mxu0 0.0
      %1906 = vmatprep.subr.mxu0 0.0
      %1907 = vmatpush1.xpose.msra.mxu0 0.0
      %1908 = vmatprep.subr.mxu0 0.0
      %1909 = vmatpush1.xpose.msra.mxu0 0.0
      %1910 = vmatprep.subr.mxu0 0.0
      %1911 = vmatpush1.xpose.msra.mxu0 0.0
      %1912 = vmatprep.subr.mxu0 0.0
      %1913 = vmatpush1.xpose.msra.mxu0 0.0
      %1914 = vmatprep.subr.mxu0 0.0
      %1915 = vmatpush1.xpose.msra.mxu0 0.0
      %1916 = vmatprep.subr.mxu0 0.0
      %1917 = vmatpush1.xpose.msra.mxu0 0.0
      %1918 = vmatprep.subr.mxu0 0.0
      %1919 = vmatpush1.xpose.msra.mxu0 0.0
      %1920 = vmatprep.subr.mxu0 0.0
      %1921 = vmatpush1.xpose.msra.mxu0 0.0
      %1922 = vmatprep.subr.mxu0 0.0
      %1923 = vmatpush1.xpose.msra.mxu0 0.0
      %1924 = vmatprep.mubr.f32.mxu0 0.0
      %1925 = vmatmul.mubr.f32.gmra.mrb[0].mxu0 %v1852
      %v1926 = vpop.f32.mrb[0].mxu0
      %v1927 = vadd.f32 0.0, %v1926
      %v1928 = vpop.f32.mrb[0].mxu0
      %1929 = vmatprep.mubr.f32.mxu0 0.0
      %1930 = vmatmul.mubr.f32.gmra.mrb[0].mxu0 %v1854
      %v1931 = vpop.f32.mrb[0].mxu0
      %v1932 = vadd.f32 0.0, %v1931
      %v1933 = vpop.f32.mrb[0].mxu0
      %1934 = vdwg.mxu0
      %1935 = vrot.lane.b32.xlu0 %v657, 96
      %v1936 = vpop.permute.xlu0 %1935
      %1937 = vrot.lane.b32.xlu0 %v662, 96
      %v1938 = vpop.permute.xlu0 %1937
      %1939 = vrot.lane.b32.xlu0 %v753, 96
      %v1940 = vpop.permute.xlu0 %1939
      %1941 = vrot.lane.b32.xlu0 %v758, 96
      %v1942 = vpop.permute.xlu0 %1941
      %v1943 = vsel %vm865, %v1936, 0
      %v1945 = vsel %vm865, %v1938, 0
      %v1947 = vsel %vm865, %v1940, 0
      %v1949 = vsel %vm865, %v1942, 0
      %1951 = vmatprep.subr.mxu0 0.0
      %1952 = vmatpush1.xpose.msra.mxu0 %v1947
      %1953 = vmatprep.subr.mxu0 0.0
      %1954 = vmatpush1.xpose.msra.mxu0 %v1949
      %1955 = vmatprep.subr.mxu0 0.0
      %1956 = vmatpush1.xpose.msra.mxu0 0.0
      %1957 = vmatprep.subr.mxu0 0.0
      %1958 = vmatpush1.xpose.msra.mxu0 0.0
      %1959 = vmatprep.subr.mxu0 0.0
      %1960 = vmatpush1.xpose.msra.mxu0 0.0
      %1961 = vmatprep.subr.mxu0 0.0
      %1962 = vmatpush1.xpose.msra.mxu0 0.0
      %1963 = vmatprep.subr.mxu0 0.0
      %1964 = vmatpush1.xpose.msra.mxu0 0.0
      %1965 = vmatprep.subr.mxu0 0.0
      %1966 = vmatpush1.xpose.msra.mxu0 0.0
      %1967 = vmatprep.subr.mxu0 0.0
      %1968 = vmatpush1.xpose.msra.mxu0 0.0
      %1969 = vmatprep.subr.mxu0 0.0
      %1970 = vmatpush1.xpose.msra.mxu0 0.0
      %1971 = vmatprep.subr.mxu0 0.0
      %1972 = vmatpush1.xpose.msra.mxu0 0.0
      %1973 = vmatprep.subr.mxu0 0.0
      %1974 = vmatpush1.xpose.msra.mxu0 0.0
      %1975 = vmatprep.subr.mxu0 0.0
      %1976 = vmatpush1.xpose.msra.mxu0 0.0
      %1977 = vmatprep.subr.mxu0 0.0
      %1978 = vmatpush1.xpose.msra.mxu0 0.0
      %1979 = vmatprep.subr.mxu0 0.0
      %1980 = vmatpush1.xpose.msra.mxu0 0.0
      %1981 = vmatprep.subr.mxu0 0.0
      %1982 = vmatpush1.xpose.msra.mxu0 0.0
      %1983 = vmatprep.subr.mxu0 0.0
      %1984 = vmatpush1.xpose.msra.mxu0 0.0
      %1985 = vmatprep.subr.mxu0 0.0
      %1986 = vmatpush1.xpose.msra.mxu0 0.0
      %1987 = vmatprep.subr.mxu0 0.0
      %1988 = vmatpush1.xpose.msra.mxu0 0.0
      %1989 = vmatprep.subr.mxu0 0.0
      %1990 = vmatpush1.xpose.msra.mxu0 0.0
      %1991 = vmatprep.subr.mxu0 0.0
      %1992 = vmatpush1.xpose.msra.mxu0 0.0
      %1993 = vmatprep.subr.mxu0 0.0
      %1994 = vmatpush1.xpose.msra.mxu0 0.0
      %1995 = vmatprep.subr.mxu0 0.0
      %1996 = vmatpush1.xpose.msra.mxu0 0.0
      %1997 = vmatprep.subr.mxu0 0.0
      %1998 = vmatpush1.xpose.msra.mxu0 0.0
      %1999 = vmatprep.subr.mxu0 0.0
      %2000 = vmatpush1.xpose.msra.mxu0 0.0
      %2001 = vmatprep.subr.mxu0 0.0
      %2002 = vmatpush1.xpose.msra.mxu0 0.0
      %2003 = vmatprep.subr.mxu0 0.0
      %2004 = vmatpush1.xpose.msra.mxu0 0.0
      %2005 = vmatprep.subr.mxu0 0.0
      %2006 = vmatpush1.xpose.msra.mxu0 0.0
      %2007 = vmatprep.subr.mxu0 0.0
      %2008 = vmatpush1.xpose.msra.mxu0 0.0
      %2009 = vmatprep.subr.mxu0 0.0
      %2010 = vmatpush1.xpose.msra.mxu0 0.0
      %2011 = vmatprep.subr.mxu0 0.0
      %2012 = vmatpush1.xpose.msra.mxu0 0.0
      %2013 = vmatprep.subr.mxu0 0.0
      %2014 = vmatpush1.xpose.msra.mxu0 0.0
      %2015 = vmatprep.mubr.f32.mxu0 0.0
      %2016 = vmatmul.mubr.f32.gmra.mrb[0].mxu0 %v1943
      %v2017 = vpop.f32.mrb[0].mxu0
      %v2018 = vadd.f32 0.0, %v2017
      %v2019 = vpop.f32.mrb[0].mxu0
      %2020 = vmatprep.mubr.f32.mxu0 0.0
      %2021 = vmatmul.mubr.f32.gmra.mrb[0].mxu0 %v1945
      %v2022 = vpop.f32.mrb[0].mxu0
      %v2023 = vadd.f32 0.0, %v2022
      %v2024 = vpop.f32.mrb[0].mxu0
      %2025 = vdwg.mxu0
      %v2026 = vsel %vm865, %v1927, -inf
      %2027 = vmax.xlane.f32.xlu0 %v2026
      %v2028 = vpop.xlane.xlu0 %2027
      %v2029 = vsel %vm865, %v1932, -inf
      %2030 = vmax.xlane.f32.xlu0 %v2029
      %v2031 = vpop.xlane.xlu0 %2030
      %v2032 = vsel %vm865, %v2018, -inf
      %2033 = vmax.xlane.f32.xlu0 %v2032
      %v2034 = vpop.xlane.xlu0 %2033
      %v2035 = vsel %vm865, %v2023, -inf
      %2036 = vmax.xlane.f32.xlu0 %v2035
      %v2037 = vpop.xlane.xlu0 %2036
      %v2038 = vsub.f32 %v1927, %v2028
      %v2039 = vsub.f32 %v1932, %v2031
      %v2040 = vsub.f32 %v2018, %v2034
      %v2041 = vsub.f32 %v2023, %v2037
      %v2042 = vmul.f32 %v2038, 1.442695
      %v2043 = vpow.pop %v2042
      %v2044 = vmul.f32 %v2039, 1.442695
      %v2045 = vpow.pop %v2044
      %v2046 = vmul.f32 %v2040, 1.442695
      %v2047 = vpow.pop %v2046
      %v2048 = vmul.f32 %v2041, 1.442695
      %v2049 = vpow.pop %v2048
      %v2050 = vsel %vm865, %v2043, 0.0
      %2051 = vadd.xlane.f32.xlu0 %v2050
      %v2052 = vpop.xlane.xlu0 %2051
      %v2053 = vsel %vm865, %v2045, 0.0
      %2054 = vadd.xlane.f32.xlu0 %v2053
      %v2055 = vpop.xlane.xlu0 %2054
      %v2056 = vsel %vm865, %v2047, 0.0
      %2057 = vadd.xlane.f32.xlu0 %v2056
      %v2058 = vpop.xlane.xlu0 %2057
      %v2059 = vsel %vm865, %v2049, 0.0
      %2060 = vadd.xlane.f32.xlu0 %v2059
      %v2061 = vpop.xlane.xlu0 %2060
      %v2062 = vrcp.pop %v2052
      %v2063 = vrcp.pop %v2055
      %v2064 = vrcp.pop %v2058
      %v2065 = vrcp.pop %v2061
      %v2066 = vmul.f32 %v2043, %v2062
      %v2067 = vmul.f32 %v2045, %v2063
      %v2068 = vmul.f32 %v2047, %v2064
      %v2069 = vmul.f32 %v2049, %v2065
      %2070 = vrot.lane.b32.xlu0 %v839, 96
      %v2071 = vpop.permute.xlu0 %2070
      %2072 = vrot.lane.b32.xlu0 %v844, 96
      %v2073 = vpop.permute.xlu0 %2072
      %v2077 = vsel %vm865, %v2066, 0
      %v2080 = vsel %vm865, %v2067, 0
      %2082 = vmatprep.subr.mxu0 0.0
      %2083 = vmatpush1.msra.mxu0 %v2071
      %2084 = vmatprep.subr.mxu0 0.0
      %2085 = vmatpush1.msra.mxu0 %v2073
      %2086 = vmatprep.subr.mxu0 0.0
      %2087 = vmatpush1.msra.mxu0 0.0
      %2088 = vmatprep.subr.mxu0 0.0
      %2089 = vmatpush1.msra.mxu0 0.0
      %2090 = vmatprep.subr.mxu0 0.0
      %2091 = vmatpush1.msra.mxu0 0.0
      %2092 = vmatprep.subr.mxu0 0.0
      %2093 = vmatpush1.msra.mxu0 0.0
      %2094 = vmatprep.subr.mxu0 0.0
      %2095 = vmatpush1.msra.mxu0 0.0
      %2096 = vmatprep.subr.mxu0 0.0
      %2097 = vmatpush1.msra.mxu0 0.0
      %2098 = vmatprep.subr.mxu0 0.0
      %2099 = vmatpush1.msra.mxu0 0.0
      %2100 = vmatprep.subr.mxu0 0.0
      %2101 = vmatpush1.msra.mxu0 0.0
      %2102 = vmatprep.subr.mxu0 0.0
      %2103 = vmatpush1.msra.mxu0 0.0
      %2104 = vmatprep.subr.mxu0 0.0
      %2105 = vmatpush1.msra.mxu0 0.0
      %2106 = vmatprep.subr.mxu0 0.0
      %2107 = vmatpush1.msra.mxu0 0.0
      %2108 = vmatprep.subr.mxu0 0.0
      %2109 = vmatpush1.msra.mxu0 0.0
      %2110 = vmatprep.subr.mxu0 0.0
      %2111 = vmatpush1.msra.mxu0 0.0
      %2112 = vmatprep.subr.mxu0 0.0
      %2113 = vmatpush1.msra.mxu0 0.0
      %2114 = vmatprep.subr.mxu0 0.0
      %2115 = vmatpush1.msra.mxu0 0.0
      %2116 = vmatprep.subr.mxu0 0.0
      %2117 = vmatpush1.msra.mxu0 0.0
      %2118 = vmatprep.subr.mxu0 0.0
      %2119 = vmatpush1.msra.mxu0 0.0
      %2120 = vmatprep.subr.mxu0 0.0
      %2121 = vmatpush1.msra.mxu0 0.0
      %2122 = vmatprep.subr.mxu0 0.0
      %2123 = vmatpush1.msra.mxu0 0.0
      %2124 = vmatprep.subr.mxu0 0.0
      %2125 = vmatpush1.msra.mxu0 0.0
      %2126 = vmatprep.subr.mxu0 0.0
      %2127 = vmatpush1.msra.mxu0 0.0
      %2128 = vmatprep.subr.mxu0 0.0
      %2129 = vmatpush1.msra.mxu0 0.0
      %2130 = vmatprep.subr.mxu0 0.0
      %2131 = vmatpush1.msra.mxu0 0.0
      %2132 = vmatprep.subr.mxu0 0.0
      %2133 = vmatpush1.msra.mxu0 0.0
      %2134 = vmatprep.subr.mxu0 0.0
      %2135 = vmatpush1.msra.mxu0 0.0
      %2136 = vmatprep.subr.mxu0 0.0
      %2137 = vmatpush1.msra.mxu0 0.0
      %2138 = vmatprep.subr.mxu0 0.0
      %2139 = vmatpush1.msra.mxu0 0.0
      %2140 = vmatprep.subr.mxu0 0.0
      %2141 = vmatpush1.msra.mxu0 0.0
      %2142 = vmatprep.subr.mxu0 0.0
      %2143 = vmatpush1.msra.mxu0 0.0
      %2144 = vmatprep.subr.mxu0 0.0
      %2145 = vmatpush1.msra.mxu0 0.0
      %2146 = vmatprep.mubr.f32.mxu0 0.0
      %2147 = vmatmul.mubr.f32.gmra.mrb[0].mxu0 %v2077
      %v2148 = vpop.f32.mrb[0].mxu0
      %v2149 = vadd.f32 0.0, %v2148
      %v2150 = vpop.f32.mrb[0].mxu0
      %2151 = vmatprep.mubr.f32.mxu0 0.0
      %2152 = vmatmul.mubr.f32.gmra.mrb[0].mxu0 %v2080
      %v2153 = vpop.f32.mrb[0].mxu0
      %v2154 = vadd.f32 0.0, %v2153
      %v2155 = vpop.f32.mrb[0].mxu0
      %2156 = vdwg.mxu0
      %2157 = vrot.lane.b32.xlu0 %v849, 96
      %v2158 = vpop.permute.xlu0 %2157
      %2159 = vrot.lane.b32.xlu0 %v854, 96
      %v2160 = vpop.permute.xlu0 %2159
      %v2164 = vsel %vm865, %v2068, 0
      %v2167 = vsel %vm865, %v2069, 0
      %2169 = vmatprep.subr.mxu0 0.0
      %2170 = vmatpush1.msra.mxu0 %v2158
      %2171 = vmatprep.subr.mxu0 0.0
      %2172 = vmatpush1.msra.mxu0 %v2160
      %2173 = vmatprep.subr.mxu0 0.0
      %2174 = vmatpush1.msra.mxu0 0.0
      %2175 = vmatprep.subr.mxu0 0.0
      %2176 = vmatpush1.msra.mxu0 0.0
      %2177 = vmatprep.subr.mxu0 0.0
      %2178 = vmatpush1.msra.mxu0 0.0
      %2179 = vmatprep.subr.mxu0 0.0
      %2180 = vmatpush1.msra.mxu0 0.0
      %2181 = vmatprep.subr.mxu0 0.0
      %2182 = vmatpush1.msra.mxu0 0.0
      %2183 = vmatprep.subr.mxu0 0.0
      %2184 = vmatpush1.msra.mxu0 0.0
      %2185 = vmatprep.subr.mxu0 0.0
      %2186 = vmatpush1.msra.mxu0 0.0
      %2187 = vmatprep.subr.mxu0 0.0
      %2188 = vmatpush1.msra.mxu0 0.0
      %2189 = vmatprep.subr.mxu0 0.0
      %2190 = vmatpush1.msra.mxu0 0.0
      %2191 = vmatprep.subr.mxu0 0.0
      %2192 = vmatpush1.msra.mxu0 0.0
      %2193 = vmatprep.subr.mxu0 0.0
      %2194 = vmatpush1.msra.mxu0 0.0
      %2195 = vmatprep.subr.mxu0 0.0
      %2196 = vmatpush1.msra.mxu0 0.0
      %2197 = vmatprep.subr.mxu0 0.0
      %2198 = vmatpush1.msra.mxu0 0.0
      %2199 = vmatprep.subr.mxu0 0.0
      %2200 = vmatpush1.msra.mxu0 0.0
      %2201 = vmatprep.subr.mxu0 0.0
      %2202 = vmatpush1.msra.mxu0 0.0
      %2203 = vmatprep.subr.mxu0 0.0
      %2204 = vmatpush1.msra.mxu0 0.0
      %2205 = vmatprep.subr.mxu0 0.0
      %2206 = vmatpush1.msra.mxu0 0.0
      %2207 = vmatprep.subr.mxu0 0.0
      %2208 = vmatpush1.msra.mxu0 0.0
      %2209 = vmatprep.subr.mxu0 0.0
      %2210 = vmatpush1.msra.mxu0 0.0
      %2211 = vmatprep.subr.mxu0 0.0
      %2212 = vmatpush1.msra.mxu0 0.0
      %2213 = vmatprep.subr.mxu0 0.0
      %2214 = vmatpush1.msra.mxu0 0.0
      %2215 = vmatprep.subr.mxu0 0.0
      %2216 = vmatpush1.msra.mxu0 0.0
      %2217 = vmatprep.subr.mxu0 0.0
      %2218 = vmatpush1.msra.mxu0 0.0
      %2219 = vmatprep.subr.mxu0 0.0
      %2220 = vmatpush1.msra.mxu0 0.0
      %2221 = vmatprep.subr.mxu0 0.0
      %2222 = vmatpush1.msra.mxu0 0.0
      %2223 = vmatprep.subr.mxu0 0.0
      %2224 = vmatpush1.msra.mxu0 0.0
      %2225 = vmatprep.subr.mxu0 0.0
      %2226 = vmatpush1.msra.mxu0 0.0
      %2227 = vmatprep.subr.mxu0 0.0
      %2228 = vmatpush1.msra.mxu0 0.0
      %2229 = vmatprep.subr.mxu0 0.0
      %2230 = vmatpush1.msra.mxu0 0.0
      %2231 = vmatprep.subr.mxu0 0.0
      %2232 = vmatpush1.msra.mxu0 0.0
      %2233 = vmatprep.mubr.f32.mxu0 0.0
      %2234 = vmatmul.mubr.f32.gmra.mrb[0].mxu0 %v2164
      %v2235 = vpop.f32.mrb[0].mxu0
      %v2236 = vadd.f32 0.0, %v2235
      %v2237 = vpop.f32.mrb[0].mxu0
      %2238 = vmatprep.mubr.f32.mxu0 0.0
      %2239 = vmatmul.mubr.f32.gmra.mrb[0].mxu0 %v2167
      %v2240 = vpop.f32.mrb[0].mxu0
      %v2241 = vadd.f32 0.0, %v2240
      %v2242 = vpop.f32.mrb[0].mxu0
      %2243 = vdwg.mxu0
      %v2245 = vsel %vm865, %v2149, 0
      %v2248 = vsel %vm865, %v2154, 0
      %v2251 = vsel %vm865, %v2236, 0
      %v2254 = vsel %vm865, %v2241, 0
      %2256 = vmatprep.subr.mxu0 0.0
      %2257 = vmatpush1.msra.mxu0 %v861
      %2258 = vmatprep.subr.mxu0 0.0
      %2259 = vmatpush1.msra.mxu0 %v862
      %2260 = vmatprep.subr.mxu0 0.0
      %2261 = vmatpush1.msra.mxu0 0.0
      %2262 = vmatprep.subr.mxu0 0.0
      %2263 = vmatpush1.msra.mxu0 0.0
      %2264 = vmatprep.subr.mxu0 0.0
      %2265 = vmatpush1.msra.mxu0 0.0
      %2266 = vmatprep.subr.mxu0 0.0
      %2267 = vmatpush1.msra.mxu0 0.0
      %2268 = vmatprep.subr.mxu0 0.0
      %2269 = vmatpush1.msra.mxu0 0.0
      %2270 = vmatprep.subr.mxu0 0.0
      %2271 = vmatpush1.msra.mxu0 0.0
      %2272 = vmatprep.subr.mxu0 0.0
      %2273 = vmatpush1.msra.mxu0 0.0
      %2274 = vmatprep.subr.mxu0 0.0
      %2275 = vmatpush1.msra.mxu0 0.0
      %2276 = vmatprep.subr.mxu0 0.0
      %2277 = vmatpush1.msra.mxu0 0.0
      %2278 = vmatprep.subr.mxu0 0.0
      %2279 = vmatpush1.msra.mxu0 0.0
      %2280 = vmatprep.subr.mxu0 0.0
      %2281 = vmatpush1.msra.mxu0 0.0
      %2282 = vmatprep.subr.mxu0 0.0
      %2283 = vmatpush1.msra.mxu0 0.0
      %2284 = vmatprep.subr.mxu0 0.0
      %2285 = vmatpush1.msra.mxu0 0.0
      %2286 = vmatprep.subr.mxu0 0.0
      %2287 = vmatpush1.msra.mxu0 0.0
      %2288 = vmatprep.subr.mxu0 0.0
      %2289 = vmatpush1.msra.mxu0 0.0
      %2290 = vmatprep.subr.mxu0 0.0
      %2291 = vmatpush1.msra.mxu0 0.0
      %2292 = vmatprep.subr.mxu0 0.0
      %2293 = vmatpush1.msra.mxu0 0.0
      %2294 = vmatprep.subr.mxu0 0.0
      %2295 = vmatpush1.msra.mxu0 0.0
      %2296 = vmatprep.subr.mxu0 0.0
      %2297 = vmatpush1.msra.mxu0 0.0
      %2298 = vmatprep.subr.mxu0 0.0
      %2299 = vmatpush1.msra.mxu0 0.0
      %2300 = vmatprep.subr.mxu0 0.0
      %2301 = vmatpush1.msra.mxu0 0.0
      %2302 = vmatprep.subr.mxu0 0.0
      %2303 = vmatpush1.msra.mxu0 0.0
      %2304 = vmatprep.subr.mxu0 0.0
      %2305 = vmatpush1.msra.mxu0 0.0
      %2306 = vmatprep.subr.mxu0 0.0
      %2307 = vmatpush1.msra.mxu0 0.0
      %2308 = vmatprep.subr.mxu0 0.0
      %2309 = vmatpush1.msra.mxu0 0.0
      %2310 = vmatprep.subr.mxu0 0.0
      %2311 = vmatpush1.msra.mxu0 0.0
      %2312 = vmatprep.subr.mxu0 0.0
      %2313 = vmatpush1.msra.mxu0 0.0
      %2314 = vmatprep.subr.mxu0 0.0
      %2315 = vmatpush1.msra.mxu0 0.0
      %2316 = vmatprep.subr.mxu0 0.0
      %2317 = vmatpush1.msra.mxu0 0.0
      %2318 = vmatprep.subr.mxu0 0.0
      %2319 = vmatpush1.msra.mxu0 0.0
      %2320 = vmatprep.mubr.f32.mxu0 0.0
      %2321 = vmatmul.mubr.f32.gmra.mrb[0].mxu0 %v2245
      %v2322 = vpop.f32.mrb[0].mxu0
      %v2323 = vadd.f32 0.0, %v2322
      %v2324 = vpop.f32.mrb[0].mxu0
      %2325 = vmatprep.mubr.f32.mxu0 0.0
      %2326 = vmatmul.mubr.f32.gmra.mrb[0].mxu0 %v2248
      %v2327 = vpop.f32.mrb[0].mxu0
      %v2328 = vadd.f32 0.0, %v2327
      %v2329 = vpop.f32.mrb[0].mxu0
      %2330 = vmatprep.mubr.f32.mxu0 0.0
      %2331 = vmatmul.mubr.f32.gmra.mrb[0].mxu0 %v2251
      %v2332 = vpop.f32.mrb[0].mxu0
      %v2333 = vadd.f32 0.0, %v2332
      %v2334 = vpop.f32.mrb[0].mxu0
      %2335 = vmatprep.mubr.f32.mxu0 0.0
      %2336 = vmatmul.mubr.f32.gmra.mrb[0].mxu0 %v2254
      %v2337 = vpop.f32.mrb[0].mxu0
      %v2338 = vadd.f32 0.0, %v2337
      %v2339 = vpop.f32.mrb[0].mxu0
      %2340 = vdwg.mxu0
      %v2341 = vadd.f32 %v1826, %v2323
      %v2342 = vadd.f32 %v1831, %v2328
      %v2343 = vadd.f32 %v1836, %v2333
      %v2344 = vadd.f32 %v1841, %v2338
      %2345 = vrot.lane.b32.xlu0 %v647, 80
      %v2346 = vpop.permute.xlu0 %2345
      %2347 = vrot.lane.b32.xlu0 %v652, 80
      %v2348 = vpop.permute.xlu0 %2347
      %2349 = vrot.lane.b32.xlu0 %v743, 80
      %v2350 = vpop.permute.xlu0 %2349
      %2351 = vrot.lane.b32.xlu0 %v748, 80
      %v2352 = vpop.permute.xlu0 %2351
      %v2353 = vsel %vm865, %v2346, 0
      %v2355 = vsel %vm865, %v2348, 0
      %v2357 = vsel %vm865, %v2350, 0
      %v2359 = vsel %vm865, %v2352, 0
      %2361 = vmatprep.subr.mxu0 0.0
      %2362 = vmatpush1.xpose.msra.mxu0 %v2357
      %2363 = vmatprep.subr.mxu0 0.0
      %2364 = vmatpush1.xpose.msra.mxu0 %v2359
      %2365 = vmatprep.subr.mxu0 0.0
      %2366 = vmatpush1.xpose.msra.mxu0 0.0
      %2367 = vmatprep.subr.mxu0 0.0
      %2368 = vmatpush1.xpose.msra.mxu0 0.0
      %2369 = vmatprep.subr.mxu0 0.0
      %2370 = vmatpush1.xpose.msra.mxu0 0.0
      %2371 = vmatprep.subr.mxu0 0.0
      %2372 = vmatpush1.xpose.msra.mxu0 0.0
      %2373 = vmatprep.subr.mxu0 0.0
      %2374 = vmatpush1.xpose.msra.mxu0 0.0
      %2375 = vmatprep.subr.mxu0 0.0
      %2376 = vmatpush1.xpose.msra.mxu0 0.0
      %2377 = vmatprep.subr.mxu0 0.0
      %2378 = vmatpush1.xpose.msra.mxu0 0.0
      %2379 = vmatprep.subr.mxu0 0.0
      %2380 = vmatpush1.xpose.msra.mxu0 0.0
      %2381 = vmatprep.subr.mxu0 0.0
      %2382 = vmatpush1.xpose.msra.mxu0 0.0
      %2383 = vmatprep.subr.mxu0 0.0
      %2384 = vmatpush1.xpose.msra.mxu0 0.0
      %2385 = vmatprep.subr.mxu0 0.0
      %2386 = vmatpush1.xpose.msra.mxu0 0.0
      %2387 = vmatprep.subr.mxu0 0.0
      %2388 = vmatpush1.xpose.msra.mxu0 0.0
      %2389 = vmatprep.subr.mxu0 0.0
      %2390 = vmatpush1.xpose.msra.mxu0 0.0
      %2391 = vmatprep.subr.mxu0 0.0
      %2392 = vmatpush1.xpose.msra.mxu0 0.0
      %2393 = vmatprep.subr.mxu0 0.0
      %2394 = vmatpush1.xpose.msra.mxu0 0.0
      %2395 = vmatprep.subr.mxu0 0.0
      %2396 = vmatpush1.xpose.msra.mxu0 0.0
      %2397 = vmatprep.subr.mxu0 0.0
      %2398 = vmatpush1.xpose.msra.mxu0 0.0
      %2399 = vmatprep.subr.mxu0 0.0
      %2400 = vmatpush1.xpose.msra.mxu0 0.0
      %2401 = vmatprep.subr.mxu0 0.0
      %2402 = vmatpush1.xpose.msra.mxu0 0.0
      %2403 = vmatprep.subr.mxu0 0.0
      %2404 = vmatpush1.xpose.msra.mxu0 0.0
      %2405 = vmatprep.subr.mxu0 0.0
      %2406 = vmatpush1.xpose.msra.mxu0 0.0
      %2407 = vmatprep.subr.mxu0 0.0
      %2408 = vmatpush1.xpose.msra.mxu0 0.0
      %2409 = vmatprep.subr.mxu0 0.0
      %2410 = vmatpush1.xpose.msra.mxu0 0.0
      %2411 = vmatprep.subr.mxu0 0.0
      %2412 = vmatpush1.xpose.msra.mxu0 0.0
      %2413 = vmatprep.subr.mxu0 0.0
      %2414 = vmatpush1.xpose.msra.mxu0 0.0
      %2415 = vmatprep.subr.mxu0 0.0
      %2416 = vmatpush1.xpose.msra.mxu0 0.0
      %2417 = vmatprep.subr.mxu0 0.0
      %2418 = vmatpush1.xpose.msra.mxu0 0.0
      %2419 = vmatprep.subr.mxu0 0.0
      %2420 = vmatpush1.xpose.msra.mxu0 0.0
      %2421 = vmatprep.subr.mxu0 0.0
      %2422 = vmatpush1.xpose.msra.mxu0 0.0
      %2423 = vmatprep.subr.mxu0 0.0
      %2424 = vmatpush1.xpose.msra.mxu0 0.0
      %2425 = vmatprep.mubr.f32.mxu0 0.0
      %2426 = vmatmul.mubr.f32.gmra.mrb[0].mxu0 %v2353
      %v2427 = vpop.f32.mrb[0].mxu0
      %v2428 = vadd.f32 0.0, %v2427
      %v2429 = vpop.f32.mrb[0].mxu0
      %2430 = vmatprep.mubr.f32.mxu0 0.0
      %2431 = vmatmul.mubr.f32.gmra.mrb[0].mxu0 %v2355
      %v2432 = vpop.f32.mrb[0].mxu0
      %v2433 = vadd.f32 0.0, %v2432
      %v2434 = vpop.f32.mrb[0].mxu0
      %2435 = vdwg.mxu0
      %2436 = vrot.lane.b32.xlu0 %v657, 80
      %v2437 = vpop.permute.xlu0 %2436
      %2438 = vrot.lane.b32.xlu0 %v662, 80
      %v2439 = vpop.permute.xlu0 %2438
      %2440 = vrot.lane.b32.xlu0 %v753, 80
      %v2441 = vpop.permute.xlu0 %2440
      %2442 = vrot.lane.b32.xlu0 %v758, 80
      %v2443 = vpop.permute.xlu0 %2442
      %v2444 = vsel %vm865, %v2437, 0
      %v2446 = vsel %vm865, %v2439, 0
      %v2448 = vsel %vm865, %v2441, 0
      %v2450 = vsel %vm865, %v2443, 0
      %2452 = vmatprep.subr.mxu0 0.0
      %2453 = vmatpush1.xpose.msra.mxu0 %v2448
      %2454 = vmatprep.subr.mxu0 0.0
      %2455 = vmatpush1.xpose.msra.mxu0 %v2450
      %2456 = vmatprep.subr.mxu0 0.0
      %2457 = vmatpush1.xpose.msra.mxu0 0.0
      %2458 = vmatprep.subr.mxu0 0.0
      %2459 = vmatpush1.xpose.msra.mxu0 0.0
      %2460 = vmatprep.subr.mxu0 0.0
      %2461 = vmatpush1.xpose.msra.mxu0 0.0
      %2462 = vmatprep.subr.mxu0 0.0
      %2463 = vmatpush1.xpose.msra.mxu0 0.0
      %2464 = vmatprep.subr.mxu0 0.0
      %2465 = vmatpush1.xpose.msra.mxu0 0.0
      %2466 = vmatprep.subr.mxu0 0.0
      %2467 = vmatpush1.xpose.msra.mxu0 0.0
      %2468 = vmatprep.subr.mxu0 0.0
      %2469 = vmatpush1.xpose.msra.mxu0 0.0
      %2470 = vmatprep.subr.mxu0 0.0
      %2471 = vmatpush1.xpose.msra.mxu0 0.0
      %2472 = vmatprep.subr.mxu0 0.0
      %2473 = vmatpush1.xpose.msra.mxu0 0.0
      %2474 = vmatprep.subr.mxu0 0.0
      %2475 = vmatpush1.xpose.msra.mxu0 0.0
      %2476 = vmatprep.subr.mxu0 0.0
      %2477 = vmatpush1.xpose.msra.mxu0 0.0
      %2478 = vmatprep.subr.mxu0 0.0
      %2479 = vmatpush1.xpose.msra.mxu0 0.0
      %2480 = vmatprep.subr.mxu0 0.0
      %2481 = vmatpush1.xpose.msra.mxu0 0.0
      %2482 = vmatprep.subr.mxu0 0.0
      %2483 = vmatpush1.xpose.msra.mxu0 0.0
      %2484 = vmatprep.subr.mxu0 0.0
      %2485 = vmatpush1.xpose.msra.mxu0 0.0
      %2486 = vmatprep.subr.mxu0 0.0
      %2487 = vmatpush1.xpose.msra.mxu0 0.0
      %2488 = vmatprep.subr.mxu0 0.0
      %2489 = vmatpush1.xpose.msra.mxu0 0.0
      %2490 = vmatprep.subr.mxu0 0.0
      %2491 = vmatpush1.xpose.msra.mxu0 0.0
      %2492 = vmatprep.subr.mxu0 0.0
      %2493 = vmatpush1.xpose.msra.mxu0 0.0
      %2494 = vmatprep.subr.mxu0 0.0
      %2495 = vmatpush1.xpose.msra.mxu0 0.0
      %2496 = vmatprep.subr.mxu0 0.0
      %2497 = vmatpush1.xpose.msra.mxu0 0.0
      %2498 = vmatprep.subr.mxu0 0.0
      %2499 = vmatpush1.xpose.msra.mxu0 0.0
      %2500 = vmatprep.subr.mxu0 0.0
      %2501 = vmatpush1.xpose.msra.mxu0 0.0
      %2502 = vmatprep.subr.mxu0 0.0
      %2503 = vmatpush1.xpose.msra.mxu0 0.0
      %2504 = vmatprep.subr.mxu0 0.0
      %2505 = vmatpush1.xpose.msra.mxu0 0.0
      %2506 = vmatprep.subr.mxu0 0.0
      %2507 = vmatpush1.xpose.msra.mxu0 0.0
      %2508 = vmatprep.subr.mxu0 0.0
      %2509 = vmatpush1.xpose.msra.mxu0 0.0
      %2510 = vmatprep.subr.mxu0 0.0
      %2511 = vmatpush1.xpose.msra.mxu0 0.0
      %2512 = vmatprep.subr.mxu0 0.0
      %2513 = vmatpush1.xpose.msra.mxu0 0.0
      %2514 = vmatprep.subr.mxu0 0.0
      %2515 = vmatpush1.xpose.msra.mxu0 0.0
      %2516 = vmatprep.mubr.f32.mxu0 0.0
      %2517 = vmatmul.mubr.f32.gmra.mrb[0].mxu0 %v2444
      %v2518 = vpop.f32.mrb[0].mxu0
      %v2519 = vadd.f32 0.0, %v2518
      %v2520 = vpop.f32.mrb[0].mxu0
      %2521 = vmatprep.mubr.f32.mxu0 0.0
      %2522 = vmatmul.mubr.f32.gmra.mrb[0].mxu0 %v2446
      %v2523 = vpop.f32.mrb[0].mxu0
      %v2524 = vadd.f32 0.0, %v2523
      %v2525 = vpop.f32.mrb[0].mxu0
      %2526 = vdwg.mxu0
      %v2527 = vsel %vm865, %v2428, -inf
      %2528 = vmax.xlane.f32.xlu0 %v2527
      %v2529 = vpop.xlane.xlu0 %2528
      %v2530 = vsel %vm865, %v2433, -inf
      %2531 = vmax.xlane.f32.xlu0 %v2530
      %v2532 = vpop.xlane.xlu0 %2531
      %v2533 = vsel %vm865, %v2519, -inf
      %2534 = vmax.xlane.f32.xlu0 %v2533
      %v2535 = vpop.xlane.xlu0 %2534
      %v2536 = vsel %vm865, %v2524, -inf
      %2537 = vmax.xlane.f32.xlu0 %v2536
      %v2538 = vpop.xlane.xlu0 %2537
      %v2539 = vsub.f32 %v2428, %v2529
      %v2540 = vsub.f32 %v2433, %v2532
      %v2541 = vsub.f32 %v2519, %v2535
      %v2542 = vsub.f32 %v2524, %v2538
      %v2543 = vmul.f32 %v2539, 1.442695
      %v2544 = vpow.pop %v2543
      %v2545 = vmul.f32 %v2540, 1.442695
      %v2546 = vpow.pop %v2545
      %v2547 = vmul.f32 %v2541, 1.442695
      %v2548 = vpow.pop %v2547
      %v2549 = vmul.f32 %v2542, 1.442695
      %v2550 = vpow.pop %v2549
      %v2551 = vsel %vm865, %v2544, 0.0
      %2552 = vadd.xlane.f32.xlu0 %v2551
      %v2553 = vpop.xlane.xlu0 %2552
      %v2554 = vsel %vm865, %v2546, 0.0
      %2555 = vadd.xlane.f32.xlu0 %v2554
      %v2556 = vpop.xlane.xlu0 %2555
      %v2557 = vsel %vm865, %v2548, 0.0
      %2558 = vadd.xlane.f32.xlu0 %v2557
      %v2559 = vpop.xlane.xlu0 %2558
      %v2560 = vsel %vm865, %v2550, 0.0
      %2561 = vadd.xlane.f32.xlu0 %v2560
      %v2562 = vpop.xlane.xlu0 %2561
      %v2563 = vrcp.pop %v2553
      %v2564 = vrcp.pop %v2556
      %v2565 = vrcp.pop %v2559
      %v2566 = vrcp.pop %v2562
      %v2567 = vmul.f32 %v2544, %v2563
      %v2568 = vmul.f32 %v2546, %v2564
      %v2569 = vmul.f32 %v2548, %v2565
      %v2570 = vmul.f32 %v2550, %v2566
      %2571 = vrot.lane.b32.xlu0 %v839, 80
      %v2572 = vpop.permute.xlu0 %2571
      %2573 = vrot.lane.b32.xlu0 %v844, 80
      %v2574 = vpop.permute.xlu0 %2573
      %v2578 = vsel %vm865, %v2567, 0
      %v2581 = vsel %vm865, %v2568, 0
      %2583 = vmatprep.subr.mxu0 0.0
      %2584 = vmatpush1.msra.mxu0 %v2572
      %2585 = vmatprep.subr.mxu0 0.0
      %2586 = vmatpush1.msra.mxu0 %v2574
      %2587 = vmatprep.subr.mxu0 0.0
      %2588 = vmatpush1.msra.mxu0 0.0
      %2589 = vmatprep.subr.mxu0 0.0
      %2590 = vmatpush1.msra.mxu0 0.0
      %2591 = vmatprep.subr.mxu0 0.0
      %2592 = vmatpush1.msra.mxu0 0.0
      %2593 = vmatprep.subr.mxu0 0.0
      %2594 = vmatpush1.msra.mxu0 0.0
      %2595 = vmatprep.subr.mxu0 0.0
      %2596 = vmatpush1.msra.mxu0 0.0
      %2597 = vmatprep.subr.mxu0 0.0
      %2598 = vmatpush1.msra.mxu0 0.0
      %2599 = vmatprep.subr.mxu0 0.0
      %2600 = vmatpush1.msra.mxu0 0.0
      %2601 = vmatprep.subr.mxu0 0.0
      %2602 = vmatpush1.msra.mxu0 0.0
      %2603 = vmatprep.subr.mxu0 0.0
      %2604 = vmatpush1.msra.mxu0 0.0
      %2605 = vmatprep.subr.mxu0 0.0
      %2606 = vmatpush1.msra.mxu0 0.0
      %2607 = vmatprep.subr.mxu0 0.0
      %2608 = vmatpush1.msra.mxu0 0.0
      %2609 = vmatprep.subr.mxu0 0.0
      %2610 = vmatpush1.msra.mxu0 0.0
      %2611 = vmatprep.subr.mxu0 0.0
      %2612 = vmatpush1.msra.mxu0 0.0
      %2613 = vmatprep.subr.mxu0 0.0
      %2614 = vmatpush1.msra.mxu0 0.0
      %2615 = vmatprep.subr.mxu0 0.0
      %2616 = vmatpush1.msra.mxu0 0.0
      %2617 = vmatprep.subr.mxu0 0.0
      %2618 = vmatpush1.msra.mxu0 0.0
      %2619 = vmatprep.subr.mxu0 0.0
      %2620 = vmatpush1.msra.mxu0 0.0
      %2621 = vmatprep.subr.mxu0 0.0
      %2622 = vmatpush1.msra.mxu0 0.0
      %2623 = vmatprep.subr.mxu0 0.0
      %2624 = vmatpush1.msra.mxu0 0.0
      %2625 = vmatprep.subr.mxu0 0.0
      %2626 = vmatpush1.msra.mxu0 0.0
      %2627 = vmatprep.subr.mxu0 0.0
      %2628 = vmatpush1.msra.mxu0 0.0
      %2629 = vmatprep.subr.mxu0 0.0
      %2630 = vmatpush1.msra.mxu0 0.0
      %2631 = vmatprep.subr.mxu0 0.0
      %2632 = vmatpush1.msra.mxu0 0.0
      %2633 = vmatprep.subr.mxu0 0.0
      %2634 = vmatpush1.msra.mxu0 0.0
      %2635 = vmatprep.subr.mxu0 0.0
      %2636 = vmatpush1.msra.mxu0 0.0
      %2637 = vmatprep.subr.mxu0 0.0
      %2638 = vmatpush1.msra.mxu0 0.0
      %2639 = vmatprep.subr.mxu0 0.0
      %2640 = vmatpush1.msra.mxu0 0.0
      %2641 = vmatprep.subr.mxu0 0.0
      %2642 = vmatpush1.msra.mxu0 0.0
      %2643 = vmatprep.subr.mxu0 0.0
      %2644 = vmatpush1.msra.mxu0 0.0
      %2645 = vmatprep.subr.mxu0 0.0
      %2646 = vmatpush1.msra.mxu0 0.0
      %2647 = vmatprep.mubr.f32.mxu0 0.0
      %2648 = vmatmul.mubr.f32.gmra.mrb[0].mxu0 %v2578
      %v2649 = vpop.f32.mrb[0].mxu0
      %v2650 = vadd.f32 0.0, %v2649
      %v2651 = vpop.f32.mrb[0].mxu0
      %2652 = vmatprep.mubr.f32.mxu0 0.0
      %2653 = vmatmul.mubr.f32.gmra.mrb[0].mxu0 %v2581
      %v2654 = vpop.f32.mrb[0].mxu0
      %v2655 = vadd.f32 0.0, %v2654
      %v2656 = vpop.f32.mrb[0].mxu0
      %2657 = vdwg.mxu0
      %2658 = vrot.lane.b32.xlu0 %v849, 80
      %v2659 = vpop.permute.xlu0 %2658
      %2660 = vrot.lane.b32.xlu0 %v854, 80
      %v2661 = vpop.permute.xlu0 %2660
      %v2665 = vsel %vm865, %v2569, 0
      %v2668 = vsel %vm865, %v2570, 0
      %2670 = vmatprep.subr.mxu0 0.0
      %2671 = vmatpush1.msra.mxu0 %v2659
      %2672 = vmatprep.subr.mxu0 0.0
      %2673 = vmatpush1.msra.mxu0 %v2661
      %2674 = vmatprep.subr.mxu0 0.0
      %2675 = vmatpush1.msra.mxu0 0.0
      %2676 = vmatprep.subr.mxu0 0.0
      %2677 = vmatpush1.msra.mxu0 0.0
      %2678 = vmatprep.subr.mxu0 0.0
      %2679 = vmatpush1.msra.mxu0 0.0
      %2680 = vmatprep.subr.mxu0 0.0
      %2681 = vmatpush1.msra.mxu0 0.0
      %2682 = vmatprep.subr.mxu0 0.0
      %2683 = vmatpush1.msra.mxu0 0.0
      %2684 = vmatprep.subr.mxu0 0.0
      %2685 = vmatpush1.msra.mxu0 0.0
      %2686 = vmatprep.subr.mxu0 0.0
      %2687 = vmatpush1.msra.mxu0 0.0
      %2688 = vmatprep.subr.mxu0 0.0
      %2689 = vmatpush1.msra.mxu0 0.0
      %2690 = vmatprep.subr.mxu0 0.0
      %2691 = vmatpush1.msra.mxu0 0.0
      %2692 = vmatprep.subr.mxu0 0.0
      %2693 = vmatpush1.msra.mxu0 0.0
      %2694 = vmatprep.subr.mxu0 0.0
      %2695 = vmatpush1.msra.mxu0 0.0
      %2696 = vmatprep.subr.mxu0 0.0
      %2697 = vmatpush1.msra.mxu0 0.0
      %2698 = vmatprep.subr.mxu0 0.0
      %2699 = vmatpush1.msra.mxu0 0.0
      %2700 = vmatprep.subr.mxu0 0.0
      %2701 = vmatpush1.msra.mxu0 0.0
      %2702 = vmatprep.subr.mxu0 0.0
      %2703 = vmatpush1.msra.mxu0 0.0
      %2704 = vmatprep.subr.mxu0 0.0
      %2705 = vmatpush1.msra.mxu0 0.0
      %2706 = vmatprep.subr.mxu0 0.0
      %2707 = vmatpush1.msra.mxu0 0.0
      %2708 = vmatprep.subr.mxu0 0.0
      %2709 = vmatpush1.msra.mxu0 0.0
      %2710 = vmatprep.subr.mxu0 0.0
      %2711 = vmatpush1.msra.mxu0 0.0
      %2712 = vmatprep.subr.mxu0 0.0
      %2713 = vmatpush1.msra.mxu0 0.0
      %2714 = vmatprep.subr.mxu0 0.0
      %2715 = vmatpush1.msra.mxu0 0.0
      %2716 = vmatprep.subr.mxu0 0.0
      %2717 = vmatpush1.msra.mxu0 0.0
      %2718 = vmatprep.subr.mxu0 0.0
      %2719 = vmatpush1.msra.mxu0 0.0
      %2720 = vmatprep.subr.mxu0 0.0
      %2721 = vmatpush1.msra.mxu0 0.0
      %2722 = vmatprep.subr.mxu0 0.0
      %2723 = vmatpush1.msra.mxu0 0.0
      %2724 = vmatprep.subr.mxu0 0.0
      %2725 = vmatpush1.msra.mxu0 0.0
      %2726 = vmatprep.subr.mxu0 0.0
      %2727 = vmatpush1.msra.mxu0 0.0
      %2728 = vmatprep.subr.mxu0 0.0
      %2729 = vmatpush1.msra.mxu0 0.0
      %2730 = vmatprep.subr.mxu0 0.0
      %2731 = vmatpush1.msra.mxu0 0.0
      %2732 = vmatprep.subr.mxu0 0.0
      %2733 = vmatpush1.msra.mxu0 0.0
      %2734 = vmatprep.mubr.f32.mxu0 0.0
      %2735 = vmatmul.mubr.f32.gmra.mrb[0].mxu0 %v2665
      %v2736 = vpop.f32.mrb[0].mxu0
      %v2737 = vadd.f32 0.0, %v2736
      %v2738 = vpop.f32.mrb[0].mxu0
      %2739 = vmatprep.mubr.f32.mxu0 0.0
      %2740 = vmatmul.mubr.f32.gmra.mrb[0].mxu0 %v2668
      %v2741 = vpop.f32.mrb[0].mxu0
      %v2742 = vadd.f32 0.0, %v2741
      %v2743 = vpop.f32.mrb[0].mxu0
      %2744 = vdwg.mxu0
      %v2746 = vsel %vm865, %v2650, 0
      %v2749 = vsel %vm865, %v2655, 0
      %v2752 = vsel %vm865, %v2737, 0
      %v2755 = vsel %vm865, %v2742, 0
      %2757 = vmatprep.subr.mxu0 0.0
      %2758 = vmatpush1.msra.mxu0 %v863
      %2759 = vmatprep.subr.mxu0 0.0
      %2760 = vmatpush1.msra.mxu0 %v864
      %2761 = vmatprep.subr.mxu0 0.0
      %2762 = vmatpush1.msra.mxu0 0.0
      %2763 = vmatprep.subr.mxu0 0.0
      %2764 = vmatpush1.msra.mxu0 0.0
      %2765 = vmatprep.subr.mxu0 0.0
      %2766 = vmatpush1.msra.mxu0 0.0
      %2767 = vmatprep.subr.mxu0 0.0
      %2768 = vmatpush1.msra.mxu0 0.0
      %2769 = vmatprep.subr.mxu0 0.0
      %2770 = vmatpush1.msra.mxu0 0.0
      %2771 = vmatprep.subr.mxu0 0.0
      %2772 = vmatpush1.msra.mxu0 0.0
      %2773 = vmatprep.subr.mxu0 0.0
      %2774 = vmatpush1.msra.mxu0 0.0
      %2775 = vmatprep.subr.mxu0 0.0
      %2776 = vmatpush1.msra.mxu0 0.0
      %2777 = vmatprep.subr.mxu0 0.0
      %2778 = vmatpush1.msra.mxu0 0.0
      %2779 = vmatprep.subr.mxu0 0.0
      %2780 = vmatpush1.msra.mxu0 0.0
      %2781 = vmatprep.subr.mxu0 0.0
      %2782 = vmatpush1.msra.mxu0 0.0
      %2783 = vmatprep.subr.mxu0 0.0
      %2784 = vmatpush1.msra.mxu0 0.0
      %2785 = vmatprep.subr.mxu0 0.0
      %2786 = vmatpush1.msra.mxu0 0.0
      %2787 = vmatprep.subr.mxu0 0.0
      %2788 = vmatpush1.msra.mxu0 0.0
      %2789 = vmatprep.subr.mxu0 0.0
      %2790 = vmatpush1.msra.mxu0 0.0
      %2791 = vmatprep.subr.mxu0 0.0
      %2792 = vmatpush1.msra.mxu0 0.0
      %2793 = vmatprep.subr.mxu0 0.0
      %2794 = vmatpush1.msra.mxu0 0.0
      %2795 = vmatprep.subr.mxu0 0.0
      %2796 = vmatpush1.msra.mxu0 0.0
      %2797 = vmatprep.subr.mxu0 0.0
      %2798 = vmatpush1.msra.mxu0 0.0
      %2799 = vmatprep.subr.mxu0 0.0
      %2800 = vmatpush1.msra.mxu0 0.0
      %2801 = vmatprep.subr.mxu0 0.0
      %2802 = vmatpush1.msra.mxu0 0.0
      %2803 = vmatprep.subr.mxu0 0.0
      %2804 = vmatpush1.msra.mxu0 0.0
      %2805 = vmatprep.subr.mxu0 0.0
      %2806 = vmatpush1.msra.mxu0 0.0
      %2807 = vmatprep.subr.mxu0 0.0
      %2808 = vmatpush1.msra.mxu0 0.0
      %2809 = vmatprep.subr.mxu0 0.0
      %2810 = vmatpush1.msra.mxu0 0.0
      %2811 = vmatprep.subr.mxu0 0.0
      %2812 = vmatpush1.msra.mxu0 0.0
      %2813 = vmatprep.subr.mxu0 0.0
      %2814 = vmatpush1.msra.mxu0 0.0
      %2815 = vmatprep.subr.mxu0 0.0
      %2816 = vmatpush1.msra.mxu0 0.0
      %2817 = vmatprep.subr.mxu0 0.0
      %2818 = vmatpush1.msra.mxu0 0.0
      %2819 = vmatprep.subr.mxu0 0.0
      %2820 = vmatpush1.msra.mxu0 0.0
      %2821 = vmatprep.mubr.f32.mxu0 0.0
      %2822 = vmatmul.mubr.f32.gmra.mrb[0].mxu0 %v2746
      %v2823 = vpop.f32.mrb[0].mxu0
      %v2824 = vadd.f32 0.0, %v2823
      %v2825 = vpop.f32.mrb[0].mxu0
      %2826 = vmatprep.mubr.f32.mxu0 0.0
      %2827 = vmatmul.mubr.f32.gmra.mrb[0].mxu0 %v2749
      %v2828 = vpop.f32.mrb[0].mxu0
      %v2829 = vadd.f32 0.0, %v2828
      %v2830 = vpop.f32.mrb[0].mxu0
      %2831 = vmatprep.mubr.f32.mxu0 0.0
      %2832 = vmatmul.mubr.f32.gmra.mrb[0].mxu0 %v2752
      %v2833 = vpop.f32.mrb[0].mxu0
      %v2834 = vadd.f32 0.0, %v2833
      %v2835 = vpop.f32.mrb[0].mxu0
      %2836 = vmatprep.mubr.f32.mxu0 0.0
      %2837 = vmatmul.mubr.f32.gmra.mrb[0].mxu0 %v2755
      %v2838 = vpop.f32.mrb[0].mxu0
      %v2839 = vadd.f32 0.0, %v2838
      %v2840 = vpop.f32.mrb[0].mxu0
      %2841 = vdwg.mxu0
      %v2842 = vadd.f32 %v2341, %v2824
      %v2843 = vadd.f32 %v2342, %v2829
      %v2844 = vadd.f32 %v2343, %v2834
      %v2845 = vadd.f32 %v2344, %v2839
      %v2846 = vld [vmem:[%s8] sm:$0x1]
      %v2848 = vlaneseq
      %v2849 = vshrl.u32 %v2848, 7
      %v2850 = vsub.s32 0, %v2849
      %v2851 = vrot.slane %v2846, %v2850
      %v2853 = vadd.f32 %v2842, %v2851
      %v2854 = vadd.f32 %v2843, %v2851
      %v2855 = vadd.f32 %v2844, %v2851
      %v2856 = vadd.f32 %v2845, %v2851
      %v2857 = vadd.f32 %v552, %v2853
      %v2858 = vadd.f32 %v553, %v2854
      %v2859 = vadd.f32 %v554, %v2855
      %v2860 = vadd.f32 %v555, %v2856
      %v2861 = vld [vmem:[%s13] sm:$0x1]
      %v2862 = vld [vmem:[%s14] sm:$0x1]
      %v2863 = vsel %vm567, %v2857, 0.0
      %2864 = vadd.xlane.f32.xlu0 %v2863
      %v2865 = vpop.xlane.xlu0 %2864
      %v2866 = vsel %vm567, %v2858, 0.0
      %2867 = vadd.xlane.f32.xlu0 %v2866
      %v2868 = vpop.xlane.xlu0 %2867
      %v2869 = vsel %vm567, %v2859, 0.0
      %2870 = vadd.xlane.f32.xlu0 %v2869
      %v2871 = vpop.xlane.xlu0 %2870
      %v2872 = vsel %vm567, %v2860, 0.0
      %2873 = vadd.xlane.f32.xlu0 %v2872
      %v2874 = vpop.xlane.xlu0 %2873
      %v2875 = vrcp.pop 32.0
      %v2876 = vmul.f32 %v2865, %v2875
      %v2877 = vmul.f32 %v2868, %v2875
      %v2878 = vmul.f32 %v2871, %v2875
      %v2879 = vmul.f32 %v2874, %v2875
      %v2880 = vsub.f32 %v2857, %v2876
      %v2881 = vsub.f32 %v2858, %v2877
      %v2882 = vsub.f32 %v2859, %v2878
      %v2883 = vsub.f32 %v2860, %v2879
      %v2884 = vmul.f32 %v2880, %v2880
      %v2885 = vmul.f32 %v2881, %v2881
      %v2886 = vmul.f32 %v2882, %v2882
      %v2887 = vmul.f32 %v2883, %v2883
      %v2888 = vsel %vm567, %v2884, 0.0
      %2889 = vadd.xlane.f32.xlu0 %v2888
      %v2890 = vpop.xlane.xlu0 %2889
      %v2891 = vsel %vm567, %v2885, 0.0
      %2892 = vadd.xlane.f32.xlu0 %v2891
      %v2893 = vpop.xlane.xlu0 %2892
      %v2894 = vsel %vm567, %v2886, 0.0
      %2895 = vadd.xlane.f32.xlu0 %v2894
      %v2896 = vpop.xlane.xlu0 %2895
      %v2897 = vsel %vm567, %v2887, 0.0
      %2898 = vadd.xlane.f32.xlu0 %v2897
      %v2899 = vpop.xlane.xlu0 %2898
      %v2900 = vmul.f32 %v2890, %v2875
      %v2901 = vmul.f32 %v2893, %v2875
      %v2902 = vmul.f32 %v2896, %v2875
      %v2903 = vmul.f32 %v2899, %v2875
      %v2904 = vadd.f32 %v2900, 1e-05
      %v2905 = vadd.f32 %v2901, 1e-05
      %v2906 = vadd.f32 %v2902, 1e-05
      %v2907 = vadd.f32 %v2903, 1e-05
      %v2908 = vrsqrt.pop %v2904
      %v2909 = vrsqrt.pop %v2905
      %v2910 = vrsqrt.pop %v2906
      %v2911 = vrsqrt.pop %v2907
      %v2912 = vmul.f32 %v2880, %v2908
      %v2913 = vmul.f32 %v2881, %v2909
      %v2914 = vmul.f32 %v2882, %v2910
      %v2915 = vmul.f32 %v2883, %v2911
      %v2917 = vlaneseq
      %v2918 = vshrl.u32 %v2917, 7
      %v2919 = vsub.s32 0, %v2918
      %v2920 = vrot.slane %v2861, %v2919
      %v2922 = vmul.f32 %v2912, %v2920
      %v2923 = vmul.f32 %v2913, %v2920
      %v2924 = vmul.f32 %v2914, %v2920
      %v2925 = vmul.f32 %v2915, %v2920
      %v2927 = vlaneseq
      %v2928 = vshrl.u32 %v2927, 7
      %v2929 = vsub.s32 0, %v2928
      %v2930 = vrot.slane %v2862, %v2929
      %v2932 = vadd.f32 %v2922, %v2930
      %v2933 = vadd.f32 %v2923, %v2930
      %v2934 = vadd.f32 %v2924, %v2930
      %v2935 = vadd.f32 %v2925, %v2930
      %v2936 = vld [vmem:[%s9] sm:$0xff]
      %v2937 = vld [vmem:[%s9 + $0x8] sm:$0xff]
      %v2938 = vld [vmem:[%s9 + $0x10] sm:$0xff]
      %v2939 = vld [vmem:[%s9 + $0x18] sm:$0xff]
      %v2940 = vld [vmem:[%s10] sm:$0x1]
      %v2942 = vlaneseq
      %v2943 = vshrl.u32 %v2942, 7
      %v2944 = vsub.s32 0, %v2943
      %v2945 = vrot.slane %v2940, %v2944
      %v2948 = vsel %vm567, %v2932, 0
      %v2951 = vsel %vm567, %v2933, 0
      %v2954 = vsel %vm567, %v2934, 0
      %v2957 = vsel %vm567, %v2935, 0
      %2959 = vmatprep.subr.mxu0 0.0
      %2960 = vmatpush1.msra.mxu0 %v2936
      %2961 = vmatprep.subr.mxu0 0.0
      %2962 = vmatpush1.msra.mxu0 %v2937
      %2963 = vmatprep.subr.mxu0 0.0
      %2964 = vmatpush1.msra.mxu0 %v2938
      %2965 = vmatprep.subr.mxu0 0.0
      %2966 = vmatpush1.msra.mxu0 %v2939
      %2967 = vmatprep.subr.mxu0 0.0
      %2968 = vmatpush1.msra.mxu0 0.0
      %2969 = vmatprep.subr.mxu0 0.0
      %2970 = vmatpush1.msra.mxu0 0.0
      %2971 = vmatprep.subr.mxu0 0.0
      %2972 = vmatpush1.msra.mxu0 0.0
      %2973 = vmatprep.subr.mxu0 0.0
      %2974 = vmatpush1.msra.mxu0 0.0
      %2975 = vmatprep.subr.mxu0 0.0
      %2976 = vmatpush1.msra.mxu0 0.0
      %2977 = vmatprep.subr.mxu0 0.0
      %2978 = vmatpush1.msra.mxu0 0.0
      %2979 = vmatprep.subr.mxu0 0.0
      %2980 = vmatpush1.msra.mxu0 0.0
      %2981 = vmatprep.subr.mxu0 0.0
      %2982 = vmatpush1.msra.mxu0 0.0
      %2983 = vmatprep.subr.mxu0 0.0
      %2984 = vmatpush1.msra.mxu0 0.0
      %2985 = vmatprep.subr.mxu0 0.0
      %2986 = vmatpush1.msra.mxu0 0.0
      %2987 = vmatprep.subr.mxu0 0.0
      %2988 = vmatpush1.msra.mxu0 0.0
      %2989 = vmatprep.subr.mxu0 0.0
      %2990 = vmatpush1.msra.mxu0 0.0
      %2991 = vmatprep.subr.mxu0 0.0
      %2992 = vmatpush1.msra.mxu0 0.0
      %2993 = vmatprep.subr.mxu0 0.0
      %2994 = vmatpush1.msra.mxu0 0.0
      %2995 = vmatprep.subr.mxu0 0.0
      %2996 = vmatpush1.msra.mxu0 0.0
      %2997 = vmatprep.subr.mxu0 0.0
      %2998 = vmatpush1.msra.mxu0 0.0
      %2999 = vmatprep.subr.mxu0 0.0
      %3000 = vmatpush1.msra.mxu0 0.0
      %3001 = vmatprep.subr.mxu0 0.0
      %3002 = vmatpush1.msra.mxu0 0.0
      %3003 = vmatprep.subr.mxu0 0.0
      %3004 = vmatpush1.msra.mxu0 0.0
      %3005 = vmatprep.subr.mxu0 0.0
      %3006 = vmatpush1.msra.mxu0 0.0
      %3007 = vmatprep.subr.mxu0 0.0
      %3008 = vmatpush1.msra.mxu0 0.0
      %3009 = vmatprep.subr.mxu0 0.0
      %3010 = vmatpush1.msra.mxu0 0.0
      %3011 = vmatprep.subr.mxu0 0.0
      %3012 = vmatpush1.msra.mxu0 0.0
      %3013 = vmatprep.subr.mxu0 0.0
      %3014 = vmatpush1.msra.mxu0 0.0
      %3015 = vmatprep.subr.mxu0 0.0
      %3016 = vmatpush1.msra.mxu0 0.0
      %3017 = vmatprep.subr.mxu0 0.0
      %3018 = vmatpush1.msra.mxu0 0.0
      %3019 = vmatprep.subr.mxu0 0.0
      %3020 = vmatpush1.msra.mxu0 0.0
      %3021 = vmatprep.subr.mxu0 0.0
      %3022 = vmatpush1.msra.mxu0 0.0
      %3023 = vmatprep.mubr.f32.mxu0 0.0
      %3024 = vmatmul.mubr.f32.gmra.mrb[0].mxu0 %v2948
      %v3025 = vpop.f32.mrb[0].mxu0
      %v3026 = vadd.f32 %v2945, %v3025
      %v3027 = vpop.f32.mrb[0].mxu0
      %3028 = vmatprep.mubr.f32.mxu0 0.0
      %3029 = vmatmul.mubr.f32.gmra.mrb[0].mxu0 %v2951
      %v3030 = vpop.f32.mrb[0].mxu0
      %v3031 = vadd.f32 %v2945, %v3030
      %v3032 = vpop.f32.mrb[0].mxu0
      %3033 = vmatprep.mubr.f32.mxu0 0.0
      %3034 = vmatmul.mubr.f32.gmra.mrb[0].mxu0 %v2954
      %v3035 = vpop.f32.mrb[0].mxu0
      %v3036 = vadd.f32 %v2945, %v3035
      %v3037 = vpop.f32.mrb[0].mxu0
      %3038 = vmatprep.mubr.f32.mxu0 0.0
      %3039 = vmatmul.mubr.f32.gmra.mrb[0].mxu0 %v2957
      %v3040 = vpop.f32.mrb[0].mxu0
      %v3041 = vadd.f32 %v2945, %v3040
      %v3042 = vpop.f32.mrb[0].mxu0
      %3043 = vdwg.mxu0
      %v3044 = vmax.f32 %v3026, 0.0
      %v3045 = vmax.f32 %v3031, 0.0
      %v3046 = vmax.f32 %v3036, 0.0
      %v3047 = vmax.f32 %v3041, 0.0
      %v3048 = vld [vmem:[%s11] sm:$0xff]
      %v3049 = vld [vmem:[%s11 + $0x8] sm:$0xff]
      %v3050 = vld [vmem:[%s11 + $0x10] sm:$0xff]
      %v3051 = vld [vmem:[%s11 + $0x18] sm:$0xff]
      %v3052 = vld [vmem:[%s11 + $0x20] sm:$0xff]
      %v3053 = vld [vmem:[%s11 + $0x28] sm:$0xff]
      %v3054 = vld [vmem:[%s11 + $0x30] sm:$0xff]
      %v3055 = vld [vmem:[%s11 + $0x38] sm:$0xff]
      %v3056 = vld [vmem:[%s12] sm:$0x1]
      %v3058 = vlaneseq
      %v3059 = vshrl.u32 %v3058, 7
      %v3060 = vsub.s32 0, %v3059
      %v3061 = vrot.slane %v3056, %v3060
      %vm3063 = vcmask 523264
      %v3065 = vsel %vm3063, %v3044, 0
      %v3068 = vsel %vm3063, %v3045, 0
      %v3071 = vsel %vm3063, %v3046, 0
      %v3074 = vsel %vm3063, %v3047, 0
      %3076 = vmatprep.subr.mxu0 0.0
      %3077 = vmatpush1.msra.mxu0 %v3048
      %3078 = vmatprep.subr.mxu0 0.0
      %3079 = vmatpush1.msra.mxu0 %v3049
      %3080 = vmatprep.subr.mxu0 0.0
      %3081 = vmatpush1.msra.mxu0 %v3050
      %3082 = vmatprep.subr.mxu0 0.0
      %3083 = vmatpush1.msra.mxu0 %v3051
      %3084 = vmatprep.subr.mxu0 0.0
      %3085 = vmatpush1.msra.mxu0 %v3052
      %3086 = vmatprep.subr.mxu0 0.0
      %3087 = vmatpush1.msra.mxu0 %v3053
      %3088 = vmatprep.subr.mxu0 0.0
      %3089 = vmatpush1.msra.mxu0 %v3054
      %3090 = vmatprep.subr.mxu0 0.0
      %3091 = vmatpush1.msra.mxu0 %v3055
      %3092 = vmatprep.subr.mxu0 0.0
      %3093 = vmatpush1.msra.mxu0 0.0
      %3094 = vmatprep.subr.mxu0 0.0
      %3095 = vmatpush1.msra.mxu0 0.0
      %3096 = vmatprep.subr.mxu0 0.0
      %3097 = vmatpush1.msra.mxu0 0.0
      %3098 = vmatprep.subr.mxu0 0.0
      %3099 = vmatpush1.msra.mxu0 0.0
      %3100 = vmatprep.subr.mxu0 0.0
      %3101 = vmatpush1.msra.mxu0 0.0
      %3102 = vmatprep.subr.mxu0 0.0
      %3103 = vmatpush1.msra.mxu0 0.0
      %3104 = vmatprep.subr.mxu0 0.0
      %3105 = vmatpush1.msra.mxu0 0.0
      %3106 = vmatprep.subr.mxu0 0.0
      %3107 = vmatpush1.msra.mxu0 0.0
      %3108 = vmatprep.subr.mxu0 0.0
      %3109 = vmatpush1.msra.mxu0 0.0
      %3110 = vmatprep.subr.mxu0 0.0
      %3111 = vmatpush1.msra.mxu0 0.0
      %3112 = vmatprep.subr.mxu0 0.0
      %3113 = vmatpush1.msra.mxu0 0.0
      %3114 = vmatprep.subr.mxu0 0.0
      %3115 = vmatpush1.msra.mxu0 0.0
      %3116 = vmatprep.subr.mxu0 0.0
      %3117 = vmatpush1.msra.mxu0 0.0
      %3118 = vmatprep.subr.mxu0 0.0
      %3119 = vmatpush1.msra.mxu0 0.0
      %3120 = vmatprep.subr.mxu0 0.0
      %3121 = vmatpush1.msra.mxu0 0.0
      %3122 = vmatprep.subr.mxu0 0.0
      %3123 = vmatpush1.msra.mxu0 0.0
      %3124 = vmatprep.subr.mxu0 0.0
      %3125 = vmatpush1.msra.mxu0 0.0
      %3126 = vmatprep.subr.mxu0 0.0
      %3127 = vmatpush1.msra.mxu0 0.0
      %3128 = vmatprep.subr.mxu0 0.0
      %3129 = vmatpush1.msra.mxu0 0.0
      %3130 = vmatprep.subr.mxu0 0.0
      %3131 = vmatpush1.msra.mxu0 0.0
      %3132 = vmatprep.subr.mxu0 0.0
      %3133 = vmatpush1.msra.mxu0 0.0
      %3134 = vmatprep.subr.mxu0 0.0
      %3135 = vmatpush1.msra.mxu0 0.0
      %3136 = vmatprep.subr.mxu0 0.0
      %3137 = vmatpush1.msra.mxu0 0.0
      %3138 = vmatprep.subr.mxu0 0.0
      %3139 = vmatpush1.msra.mxu0 0.0
      %3140 = vmatprep.mubr.f32.mxu0 0.0
      %3141 = vmatmul.mubr.f32.gmra.mrb[0].mxu0 %v3065
      %v3142 = vpop.f32.mrb[0].mxu0
      %v3143 = vadd.f32 %v3061, %v3142
      %v3144 = vpop.f32.mrb[0].mxu0
      %3145 = vmatprep.mubr.f32.mxu0 0.0
      %3146 = vmatmul.mubr.f32.gmra.mrb[0].mxu0 %v3068
      %v3147 = vpop.f32.mrb[0].mxu0
      %v3148 = vadd.f32 %v3061, %v3147
      %v3149 = vpop.f32.mrb[0].mxu0
      %3150 = vmatprep.mubr.f32.mxu0 0.0
      %3151 = vmatmul.mubr.f32.gmra.mrb[0].mxu0 %v3071
      %v3152 = vpop.f32.mrb[0].mxu0
      %v3153 = vadd.f32 %v3061, %v3152
      %v3154 = vpop.f32.mrb[0].mxu0
      %3155 = vmatprep.mubr.f32.mxu0 0.0
      %3156 = vmatmul.mubr.f32.gmra.mrb[0].mxu0 %v3074
      %v3157 = vpop.f32.mrb[0].mxu0
      %v3158 = vadd.f32 %v3061, %v3157
      %v3159 = vpop.f32.mrb[0].mxu0
      %3160 = vdwg.mxu0
      %v3161 = vadd.f32 %v2932, %v3143
      %v3162 = vadd.f32 %v2933, %v3148
      %v3163 = vadd.f32 %v2934, %v3153
      %v3164 = vadd.f32 %v2935, %v3158
      %v3165 = vld [vmem:[%s15] sm:$0x1]
      %v3166 = vld [vmem:[%s16] sm:$0x1]
      %v3167 = vsel %vm567, %v3161, 0.0
      %3168 = vadd.xlane.f32.xlu0 %v3167
      %v3169 = vpop.xlane.xlu0 %3168
      %v3170 = vsel %vm567, %v3162, 0.0
      %3171 = vadd.xlane.f32.xlu0 %v3170
      %v3172 = vpop.xlane.xlu0 %3171
      %v3173 = vsel %vm567, %v3163, 0.0
      %3174 = vadd.xlane.f32.xlu0 %v3173
      %v3175 = vpop.xlane.xlu0 %3174
      %v3176 = vsel %vm567, %v3164, 0.0
      %3177 = vadd.xlane.f32.xlu0 %v3176
      %v3178 = vpop.xlane.xlu0 %3177
      %v3179 = vmul.f32 %v3169, %v2875
      %v3180 = vmul.f32 %v3172, %v2875
      %v3181 = vmul.f32 %v3175, %v2875
      %v3182 = vmul.f32 %v3178, %v2875
      %v3183 = vsub.f32 %v3161, %v3179
      %v3184 = vsub.f32 %v3162, %v3180
      %v3185 = vsub.f32 %v3163, %v3181
      %v3186 = vsub.f32 %v3164, %v3182
      %v3187 = vmul.f32 %v3183, %v3183
      %v3188 = vmul.f32 %v3184, %v3184
      %v3189 = vmul.f32 %v3185, %v3185
      %v3190 = vmul.f32 %v3186, %v3186
      %v3191 = vsel %vm567, %v3187, 0.0
      %3192 = vadd.xlane.f32.xlu0 %v3191
      %v3193 = vpop.xlane.xlu0 %3192
      %v3194 = vsel %vm567, %v3188, 0.0
      %3195 = vadd.xlane.f32.xlu0 %v3194
      %v3196 = vpop.xlane.xlu0 %3195
      %v3197 = vsel %vm567, %v3189, 0.0
      %3198 = vadd.xlane.f32.xlu0 %v3197
      %v3199 = vpop.xlane.xlu0 %3198
      %v3200 = vsel %vm567, %v3190, 0.0
      %3201 = vadd.xlane.f32.xlu0 %v3200
      %v3202 = vpop.xlane.xlu0 %3201
      %v3203 = vmul.f32 %v3193, %v2875
      %v3204 = vmul.f32 %v3196, %v2875
      %v3205 = vmul.f32 %v3199, %v2875
      %v3206 = vmul.f32 %v3202, %v2875
      %v3207 = vadd.f32 %v3203, 1e-05
      %v3208 = vadd.f32 %v3204, 1e-05
      %v3209 = vadd.f32 %v3205, 1e-05
      %v3210 = vadd.f32 %v3206, 1e-05
      %v3211 = vrsqrt.pop %v3207
      %v3212 = vrsqrt.pop %v3208
      %v3213 = vrsqrt.pop %v3209
      %v3214 = vrsqrt.pop %v3210
      %v3215 = vmul.f32 %v3183, %v3211
      %v3216 = vmul.f32 %v3184, %v3212
      %v3217 = vmul.f32 %v3185, %v3213
      %v3218 = vmul.f32 %v3186, %v3214
      %v3220 = vlaneseq
      %v3221 = vshrl.u32 %v3220, 7
      %v3222 = vsub.s32 0, %v3221
      %v3223 = vrot.slane %v3165, %v3222
      %v3225 = vmul.f32 %v3215, %v3223
      %v3226 = vmul.f32 %v3216, %v3223
      %v3227 = vmul.f32 %v3217, %v3223
      %v3228 = vmul.f32 %v3218, %v3223
      %v3230 = vlaneseq
      %v3231 = vshrl.u32 %v3230, 7
      %v3232 = vsub.s32 0, %v3231
      %v3233 = vrot.slane %v3166, %v3232
      %v3235 = vadd.f32 %v3225, %v3233
      %v3236 = vadd.f32 %v3226, %v3233
      %v3237 = vadd.f32 %v3227, %v3233
      %v3238 = vadd.f32 %v3228, %v3233
      %3239 = vst.msk [vmem:[%s550] sm:$0xff] %vm567, %v3235
      %3240 = vst.msk [vmem:[%s550 + $0x8] sm:$0xff] %vm567, %v3236
      %3241 = vst.msk [vmem:[%s550 + $0x10] sm:$0xff] %vm567, %v3237
      %3242 = vst.msk [vmem:[%s550 + $0x18] sm:$0xff] %vm567, %v3238
      %s3243 = smul.u32 4, %s28
      %p3244 = scmp.lt.s32.totalorder %s3243, 7
      %s3245 = scalar_select %p3244, %s3243, 7
      %s3246 = smul.addr %s3245, 8
      %s3247 = scalar_lea.vmem %s17, %s3246
      // Predicated region
      $region89: #{tpu_custom_call.1} parent=87 // pred_check
        %p3248 = pneg %p408
      $region90: #{tpu_custom_call.1} parent=87 // pred_check_branch
        %3250 = sbr.rel (%p3248) target = $region92
      $region91: #{tpu_custom_call.1} parent=87 // pred_region
        %s3251 = smul.u32 4, %s28
      $region92: #{tpu_custom_call.1} parent=87 // pred_fallthru
        _
    $region88: #{tpu_custom_call.1} parent=5 // pred_fallthru
      _
    %p3252 = scmp.le.s32.totalorder 2, %s23
    // Predicated region
    $region93: #{tpu_custom_call.1} parent=5 // pred_check
      %p3253 = pneg %p3252
    $region94: #{tpu_custom_call.1} parent=5 // pred_check_branch
      %3255 = sbr.rel (%p3253) target = $region96
    $region95: #{tpu_custom_call.1} parent=5 // pred_region
      %s3256 = ssub.s32 %s23, 2
      // Predicated region
      $region97: #{tpu_custom_call.1} parent=95 // pred_check
        %p3257 = pneg %p414
      $region98: #{tpu_custom_call.1} parent=95 // pred_check_branch
        %3259 = sbr.rel (%p3257) target = $region100
      $region99: #{tpu_custom_call.1} parent=95 // pred_region
        %s3260 = smul.u32 4, %s29
        %p3261 = scmp.lt.s32.totalorder %s3260, 7
        %s3262 = scalar_select %p3261, %s3260, 7
        %s3263 = smul.addr %s3262, 8
        %s3264 = scalar_lea.vmem %s17, %s3263
      $region100: #{tpu_custom_call.1} parent=95 // pred_fallthru
        _
    $region96: #{tpu_custom_call.1} parent=5 // pred_fallthru
      _
  $region6: #{tpu_custom_call.1} parent=0 // loop_footer
    %s27 = sadd.s32 1, %s23
  $region7: #{tpu_custom_call.1} parent=0 // loop_footer_branch
    %22 = sbr.rel target = $region3
  $region8: #{tpu_custom_call.1} parent=0 // loop_exit
    _

</llo_original>
